<compile_context>
chip_gen: v7x
topology: tpu7x:2x2x1
jax: 0.10.0
libtpu: 0.0.40
codegen_flags: <defaults>
</compile_context>

<pallas_src>
import functools
import math

import jax
import jax.numpy as jnp
from jax import lax
from jax.experimental import pallas as pl
from jax.experimental.pallas import tpu as pltpu

_DECAY_CLAMP = 40.0  # clamp for the factored intra-sub-chunk decay (log-space)


def _rodimus_kernel(x_ref, conv_w_ref, conv_b_ref, w_rkm_ref, b_rkm_ref,
                    ch_w0_ref, ch_w1_ref, ch_b1_ref, res_w_ref,
                    o_ref,
                    state_ref, tail_ref,
                    *, scale, norm_eps, subchunk):
    C, D = x_ref.shape
    W = conv_w_ref.shape[0]
    Mp = w_rkm_ref.shape[1] // 4
    c = subchunk
    nsub = C // c

    li = pl.program_id(1)

    # Reset carried state at the start of every sequence sweep (per batch).
    @pl.when(li == 0)
    def _():
        state_ref[...] = jnp.zeros_like(state_ref)
        tail_ref[...] = jnp.zeros_like(tail_ref)

    x = x_ref[...]                                            # (C, D) f32

    # ---- ShortConv: causal depthwise conv (left context carried) + SiLU ----
    conv_w = conv_w_ref[...]                                  # (W, D) tap-major, f32
    xpad = jnp.concatenate([tail_ref[...], x], axis=0)        # (C + W - 1, D)
    y = conv_b_ref[...]                                       # (1, D) broadcasts
    for w in range(W):                                        # static unroll, W = 4
        y = y + xpad[w:w + C, :] * conv_w[w:w + 1, :]
    shift_hs = y * jax.nn.sigmoid(y)                          # SiLU, (C, D) f32
    tail_ref[...] = x[C - (W - 1):, :]                        # ctx for next chunk

    # ---- fused [in_proj | mem_gate_proj] projection: bf16 MXU, f32 accum ----
    rkm = jnp.dot(shift_hs.astype(jnp.bfloat16), w_rkm_ref[...],
                  preferred_element_type=jnp.float32) + b_rkm_ref[...]  # (C, 4Mp)
    r = rkm[:, 0 * Mp:1 * Mp]
    k = rkm[:, 1 * Mp:2 * Mp]
    sel = jax.nn.softplus(rkm[:, 2 * Mp:3 * Mp])
    tau = jax.nn.sigmoid(rkm[:, 3 * Mp:4 * Mp])

    # ---- low-rank channel gate (bf16 MXU, zero-padded rank) ----
    g_low = jnp.dot(x.astype(jnp.bfloat16), ch_w0_ref[...],
                    preferred_element_type=jnp.float32)
    g_full = jnp.dot(g_low.astype(jnp.bfloat16), ch_w1_ref[...],
                     preferred_element_type=jnp.float32) + ch_b1_ref[...]
    u = jax.nn.sigmoid(g_full) * x                            # (C, D) f32

    # ---- memory gates (kept in f32) ----
    it_gate = jnp.exp(tau * jnp.log(jnp.maximum(sel, 1e-30))) # sel ** tau (sel > 0)
    d_log = -sel * tau                                        # per-step log decay <= 0

    # F.normalize(k, dim=-1, eps): rsqrt of clamped sum-of-squares (one EUP op)
    ssq = jnp.sum(k * k, axis=-1, keepdims=True)
    k = k * lax.rsqrt(jnp.maximum(ssq, norm_eps * norm_eps))

    q = r * scale                                             # (C, Mp)
    kk = k * it_gate                                          # (C, Mp)

    # chunk-wide inclusive cumulative log-decay: one (C,C)x(C,Mp) f32 matmul
    rows = lax.broadcasted_iota(jnp.int32, (C, C), 0)
    cols = lax.broadcasted_iota(jnp.int32, (C, C), 1)
    tril_full = (rows >= cols).astype(jnp.float32)
    b_full = jnp.dot(tril_full, d_log, preferred_element_type=jnp.float32)  # (C, Mp)

    rs = lax.broadcasted_iota(jnp.int32, (c, c), 0)
    cs = lax.broadcasted_iota(jnp.int32, (c, c), 1)
    causal = rs >= cs                                         # lower-tri incl. diag

    res_w = res_w_ref[...]                                    # (1, D)
    S = state_ref[...]                                        # (D, Mp) f32 state

    for i in range(nsub):                                     # static unroll
        lo = i * c
        q_i = q[lo:lo + c, :]
        k_i = kk[lo:lo + c, :]
        u_i = u[lo:lo + c, :]
        b_i = b_full[lo:lo + c, :]
        if i > 0:
            b_i = b_i - b_full[lo - 1:lo, :]                  # rel. to sub-chunk start

        # factored decay; masked-in exponents are <= 0, clamp only drops
        # contributions that already underflow
        b_cl = jnp.maximum(b_i, -_DECAY_CLAMP)
        qg = (q_i * jnp.exp(b_cl)).astype(jnp.bfloat16)       # (c, Mp)
        kg = (k_i * jnp.exp(-b_cl)).astype(jnp.bfloat16)      # (c, Mp)
        u_b = u_i.astype(jnp.bfloat16)

        # contribution of everything before this sub-chunk (carried state)
        o_i = lax.dot_general(qg, S.astype(jnp.bfloat16),
                              (((1,), (1,)), ((), ())),
                              preferred_element_type=jnp.float32)       # (c, D)

        # intra-sub-chunk attention: two MXU matmuls instead of a (c,c,Mp) tensor
        a = lax.dot_general(qg, kg, (((1,), (1,)), ((), ())),
                            preferred_element_type=jnp.float32)         # (c, c)
        a = jnp.where(causal, a, 0.0)
        o_i = o_i + jnp.dot(a.astype(jnp.bfloat16), u_b,
                            preferred_element_type=jnp.float32)         # (c, D)

        # carry the state (exponents <= 0 -> exact & stable); f32 state,
        # bf16 matmul operands with f32 accumulation
        b_last = b_i[c - 1:c, :]                                        # (1, Mp)
        k_carry = (k_i * jnp.exp(b_last - b_i)).astype(jnp.bfloat16)    # (c, Mp)
        S = S * jnp.exp(b_last) + lax.dot_general(
            u_b, k_carry, (((0,), (0,)), ((), ())),
            preferred_element_type=jnp.float32)                         # (D, Mp)

        # dense, sublane-aligned per-sub-chunk store (residual fused in f32)
        o_ref[lo:lo + c, :] = (o_i + shift_hs[lo:lo + c, :] * res_w
                               ).astype(o_ref.dtype)

    state_ref[...] = S


def _round_up(v, m):
    return ((v + m - 1) // m) * m


def _choose_chunks(L):
    """(chunk, sub-chunk): chunk multiple of sub-chunk, both multiples of 8."""
    if L >= 256:
        return 256, 64
    if L >= 128:
        return 128, 64
    if L >= 64:
        return 64, 64
    Lp = _round_up(L, 8)
    return Lp, Lp


def rodimus_flow_inner(x, conv_w, conv_b, in_w, ch_w0, ch_w1, ch_b1,
                       mem_w, mem_b, res_w, *, normalize_eps=1e-12):
    B, L, D = x.shape
    W = conv_w.shape[0]
    M = in_w.shape[1] // 2
    R = ch_w0.shape[1]

    C, c = _choose_chunks(L)
    L_pad = _round_up(L, C)
    if L_pad != L:
        # pad at the end: padded rows only affect their own (discarded) outputs
        x = jnp.pad(x, ((0, 0), (0, L_pad - L), (0, 0)))
    NT = L_pad // C

    # ---- lane-align the memory dim: zero-padded q/k columns are exact no-ops
    Mp = max(128, _round_up(M, 128))

    def pad_halves(w2):  # (*, 2M) -> (*, 2Mp), each half zero-padded on the right
        return jnp.concatenate(
            [jnp.pad(w2[:, :M], ((0, 0), (0, Mp - M))),
             jnp.pad(w2[:, M:], ((0, 0), (0, Mp - M)))], axis=1)

    # fused [in_proj | mem_gate_proj] as a single (D, 4*Mp) bf16 weight
    w_rkm = jnp.concatenate([pad_halves(in_w), pad_halves(mem_w)],
                            axis=1).astype(jnp.bfloat16)
    b_rkm = jnp.concatenate([jnp.zeros((1, 2 * Mp), jnp.float32),
                             pad_halves(mem_b).astype(jnp.float32)], axis=1)

    # low-rank channel gate, zero-padded to a lane-aligned rank, stored bf16
    Rp = max(128, _round_up(R, 128))
    ch_w0p = jnp.pad(ch_w0, ((0, 0), (0, Rp - R))).astype(jnp.bfloat16)
    ch_w1p = jnp.pad(ch_w1, ((0, Rp - R), (0, 0))).astype(jnp.bfloat16)

    kernel = functools.partial(_rodimus_kernel,
                               scale=1.0 / math.sqrt(M),
                               norm_eps=normalize_eps,
                               subchunk=c)

    # ---- explicit VMEM budget (weights single-buffered, 2x in/out buffers) ----
    weight_bytes = (2 * D * 4 * Mp + 2 * 2 * D * Rp          # bf16 weights
                    + 4 * (W * D + 4 * D + 4 * Mp))          # f32 conv/bias/residual
    io_bytes = 4 * 4 * C * D                                  # 2x in + 2x out blocks
    scratch_bytes = 4 * (D * Mp + (W - 1) * D)
    interm_bytes = 4 * (C * (12 * Mp + 8 * D) + 2 * C * C)
    vmem_limit = int(min(
        max(int(1.3 * (weight_bytes + io_bytes + scratch_bytes + interm_bytes))
            + (4 << 20), 32 << 20),
        64 << 20))

    flops = B * NT * (2 * C * D * 4 * Mp + 4 * C * D * Rp + 2 * W * C * D
                      + 2 * C * C * Mp + 4 * C * Mp * D + 2 * C * c * Mp
                      + 2 * C * c * D)
    transcendentals = B * L_pad * (8 * Mp + 3 * D)
    bytes_accessed = 4 * 2 * B * L_pad * D + weight_bytes

    args = (x, conv_w, conv_b, w_rkm, b_rkm, ch_w0p, ch_w1p, ch_b1, res_w)

    def make_call(single_buffer_weights):
        # invariant weight/bias blocks: request single buffering to halve their
        # VMEM footprint (they are fetched once; the index_map is constant)
        kw = {"pipeline_mode": pl.Buffered(1)} if single_buffer_weights else {}
        in_specs = [
            pl.BlockSpec((None, C, D), lambda b, l: (b, l, 0)),        # hidden_states
            pl.BlockSpec((W, D), lambda b, l: (0, 0), **kw),           # conv1d weight
            pl.BlockSpec((1, D), lambda b, l: (0, 0), **kw),           # conv1d bias
            pl.BlockSpec((D, 4 * Mp), lambda b, l: (0, 0), **kw),      # [in|mem] weight
            pl.BlockSpec((1, 4 * Mp), lambda b, l: (0, 0), **kw),      # [0|mem] bias
            pl.BlockSpec((D, Rp), lambda b, l: (0, 0), **kw),          # ch_gate w0
            pl.BlockSpec((Rp, D), lambda b, l: (0, 0), **kw),          # ch_gate w1
            pl.BlockSpec((1, D), lambda b, l: (0, 0), **kw),           # ch_gate b1
            pl.BlockSpec((1, D), lambda b, l: (0, 0), **kw),           # residual_weight
        ]
        return pl.pallas_call(
            kernel,
            out_shape=jax.ShapeDtypeStruct((B, L_pad, D), jnp.float32),
            grid=(B, NT),
            in_specs=in_specs,
            out_specs=pl.BlockSpec((None, C, D), lambda b, l: (b, l, 0)),
            scratch_shapes=[
                pltpu.VMEM((D, Mp), jnp.float32),      # GLA state (transposed)
                pltpu.VMEM((W - 1, D), jnp.float32),   # conv left context
            ],
            compiler_params=pltpu.CompilerParams(
                dimension_semantics=("parallel", "arbitrary"),
                vmem_limit_bytes=vmem_limit),
            cost_estimate=pl.CostEstimate(flops=flops,
                                          transcendentals=transcendentals,
                                          bytes_accessed=bytes_accessed),
        )

    try:
        out = make_call(True)(*args)
    except Exception:
        # pl.Buffered(1) not supported by this jax/libtpu combo: fall back to
        # the default double-buffered weight blocks (correctness unchanged).
        out = make_call(False)(*args)

    if L_pad != L:
        out = out[:, :L, :]
    return out


def _reference(x, conv_w, conv_b, in_w, ch_w0, ch_w1, ch_b1, mem_w, mem_b, res_w):
    """Pure-JAX f32 reference of the same forward pass (sequential scan)."""
    B, L, D = x.shape
    W = conv_w.shape[0]
    M = in_w.shape[1] // 2
    xpad = jnp.pad(x, ((0, 0), (W - 1, 0), (0, 0)))
    y = jnp.zeros_like(x) + conv_b
    for w in range(W):
        y = y + xpad[:, w:w + L, :] * conv_w[w][None, None, :]
    shift_hs = y * jax.nn.sigmoid(y)
    rk = shift_hs @ in_w
    r, k = rk[..., :M], rk[..., M:]
    u = jax.nn.sigmoid(x @ ch_w0 @ ch_w1 + ch_b1) * x
    mem = shift_hs @ mem_w + mem_b
    sel = jax.nn.softplus(mem[..., :M])
    tau = jax.nn.sigmoid(mem[..., M:])
    it_gate = jnp.exp(tau * jnp.log(jnp.maximum(sel, 1e-30)))
    rt_log = -sel * tau
    k = k / jnp.maximum(jnp.sqrt(jnp.sum(k * k, -1, keepdims=True)), 1e-12)
    rr, kk, gg = r / math.sqrt(M), k * it_gate, jnp.exp(rt_log)

    def step(S, inp):
        r_t, k_t, u_t, g_t = inp
        S = S * g_t[:, None] + k_t[:, None] * u_t[None, :]
        return S, r_t @ S

    def per_batch(rr_b, kk_b, uu_b, gg_b):
        _, o = lax.scan(step, jnp.zeros((M, D), jnp.float32),
                        (rr_b, kk_b, uu_b, gg_b))
        return o

    o = jax.vmap(per_batch)(rr, kk, u, gg)
    return o + shift_hs * res_w


def _make_params(key, D, M, W, R):
    ks = jax.random.split(key, 9)

    def xavier(k, shape):
        lim = math.sqrt(6.0 / (shape[0] + shape[1]))
        return jax.random.uniform(k, shape, jnp.float32, -lim, lim)

    conv_w = jax.random.normal(ks[0], (W, D), jnp.float32) / math.sqrt(W)
    conv_b = jax.random.normal(ks[1], (1, D), jnp.float32) * 0.1
    in_w = xavier(ks[2], (D, 2 * M))
    ch_w0 = xavier(ks[3], (D, R))
    ch_w1 = xavier(ks[4], (R, D))
    ch_b1 = (jax.random.uniform(ks[5], (1, D), jnp.float32) - 0.5) * 0.2
    mem_w = xavier(ks[6], (D, 2 * M))
    # mem_gate_proj bias = concat(rt_bias, tau_bias) as in _init_weights
    u_rt = jax.random.uniform(ks[7], (M,), jnp.float32)
    mx, mn = 1 - 0.9, 1 - 0.999
    rt_bias = jnp.exp(u_rt * (math.log(mx) - math.log(mn)) + math.log(mn))
    rt_bias = jnp.clip(rt_bias, 1e-4, None)
    rt_bias = rt_bias + jnp.log(-jnp.expm1(-rt_bias))
    u_tau = jax.random.uniform(ks[8], (M,), jnp.float32, 1.0 / 16, 0.9)
    tau_bias = jnp.log(u_tau) - jnp.log1p(-u_tau)
    mem_b = jnp.concatenate([rt_bias, tau_bias])[None, :]
    res_w = jnp.ones((1, D), jnp.float32)   # residual_weight init = ones
    return (conv_w, conv_b, in_w, ch_w0, ch_w1, ch_b1, mem_w, mem_b, res_w)


def _run_case(key, B, L, D, M, W, R):
    kp, kx = jax.random.split(key)
    params = _make_params(kp, D, M, W, R)
    x = jax.random.normal(kx, (B, L, D), jnp.float32)

    out = jax.block_until_ready(rodimus_flow_inner(x, *params))
    ref = jax.block_until_ready(_reference(x, *params))

    assert out.shape == (B, L, D)
    # Kernel uses bf16 matmul operands (f32 accumulation / f32 state), so a
    # slightly looser tolerance than a pure-f32 comparison is expected.
    max_err = float(jnp.max(jnp.abs(out - ref)))
    assert max_err < 2e-2, f"mismatch vs reference (L={L}): {max_err}"


if __name__ == "__main__":
    key = jax.random.PRNGKey(0)
    k1, k2, k3 = jax.random.split(key, 3)
    # single-chunk, single-sub-chunk case
    _run_case(k1, B=2, L=8, D=32, M=64, W=4, R=8)
    # multi-chunk case: carried GLA state, carried conv tail, end padding
    _run_case(k2, B=2, L=72, D=32, M=64, W=4, R=8)
    # multi-sub-chunk case (C=128, c=64): exercises the i > 0 sub-chunk path
    _run_case(k3, B=2, L=200, D=32, M=64, W=4, R=8)
    print("KERNEL_OK")
</pallas_src>

<mosaic_0001>
module attributes {stable_mosaic.version = 11 : i64} {
  func.func @_rodimus_kernel(%arg0: i32, %arg1: i32, %arg2: memref<1x8x32xf32, #tpu.memory_space<vmem>>, %arg3: memref<4x32xf32, #tpu.memory_space<vmem>>, %arg4: memref<1x32xf32, #tpu.memory_space<vmem>>, %arg5: memref<32x512xbf16, #tpu.memory_space<vmem>>, %arg6: memref<1x512xf32, #tpu.memory_space<vmem>>, %arg7: memref<32x128xbf16, #tpu.memory_space<vmem>>, %arg8: memref<128x32xbf16, #tpu.memory_space<vmem>>, %arg9: memref<1x32xf32, #tpu.memory_space<vmem>>, %arg10: memref<1x32xf32, #tpu.memory_space<vmem>>, %arg11: memref<1x8x32xf32, #tpu.memory_space<vmem>>, %arg12: memref<32x128xf32, #tpu.memory_space<vmem>>, %arg13: memref<3x32xf32, #tpu.memory_space<vmem>>) attributes {dimension_semantics = [#tpu.dimension_semantics<parallel>, #tpu.dimension_semantics<arbitrary>], iteration_bounds = array<i64: 2, 1>, scalar_prefetch = 0 : i64, scratch_operands = 2 : i64, tpu.core_type = #tpu.core_type<tc>, window_params = [{transform_indices = @transform_0, window_bounds = array<i64: 1, 8, 32>}, {pipeline_mode = #tpu.pipeline_mode<synchronous>, transform_indices = @transform_1, window_bounds = array<i64: 4, 32>}, {pipeline_mode = #tpu.pipeline_mode<synchronous>, transform_indices = @transform_2, window_bounds = array<i64: 1, 32>}, {pipeline_mode = #tpu.pipeline_mode<synchronous>, transform_indices = @transform_3, window_bounds = array<i64: 32, 512>}, {pipeline_mode = #tpu.pipeline_mode<synchronous>, transform_indices = @transform_4, window_bounds = array<i64: 1, 512>}, {pipeline_mode = #tpu.pipeline_mode<synchronous>, transform_indices = @transform_5, window_bounds = array<i64: 32, 128>}, {pipeline_mode = #tpu.pipeline_mode<synchronous>, transform_indices = @transform_6, window_bounds = array<i64: 128, 32>}, {pipeline_mode = #tpu.pipeline_mode<synchronous>, transform_indices = @transform_7, window_bounds = array<i64: 1, 32>}, {pipeline_mode = #tpu.pipeline_mode<synchronous>, transform_indices = @transform_8, window_bounds = array<i64: 1, 32>}, {transform_indices = @transform_9, window_bounds = array<i64: 1, 8, 32>}]} {
    %c0_i32 = arith.constant 0 : i32
    %0 = arith.cmpi eq, %arg1, %c0_i32 : i32
    %1 = arith.extui %0 : i1 to i32
    %c0_i32_0 = arith.constant 0 : i32
    %2 = arith.cmpi ne, %1, %c0_i32_0 : i32
    scf.if %2 {
      %cst_50 = arith.constant 0.000000e+00 : f32
      %149 = vector.broadcast %cst_50 : f32 to vector<32x128xf32>
      %c0_51 = arith.constant 0 : index
      %c0_52 = arith.constant 0 : index
      %150 = vector.load %arg12[%c0_51, %c0_52] : memref<32x128xf32, #tpu.memory_space<vmem>>, vector<32x128xf32>
      tpu.vector_store %arg12[%c0_51, %c0_52], %149 {strides = array<i32>} : memref<32x128xf32, #tpu.memory_space<vmem>>, vector<32x128xf32>,
      %cst_53 = arith.constant 0.000000e+00 : f32
      %151 = vector.broadcast %cst_53 : f32 to vector<3x32xf32>
      %c0_54 = arith.constant 0 : index
      %c0_55 = arith.constant 0 : index
      %152 = vector.load %arg13[%c0_54, %c0_55] : memref<3x32xf32, #tpu.memory_space<vmem>>, vector<3x32xf32>
      tpu.vector_store %arg13[%c0_54, %c0_55], %151 {strides = array<i32>} : memref<3x32xf32, #tpu.memory_space<vmem>>, vector<3x32xf32>,
    } else {
    }
    %c0 = arith.constant 0 : index
    %c0_1 = arith.constant 0 : index
    %c0_2 = arith.constant 0 : index
    %3 = vector.load %arg2[%c0, %c0_1, %c0_2] : memref<1x8x32xf32, #tpu.memory_space<vmem>>, vector<1x8x32xf32>
    %4 = vector.shape_cast %3 : vector<1x8x32xf32> to vector<8x32xf32>
    %c0_3 = arith.constant 0 : index
    %c0_4 = arith.constant 0 : index
    %5 = vector.load %arg3[%c0_3, %c0_4] : memref<4x32xf32, #tpu.memory_space<vmem>>, vector<4x32xf32>
    %c0_5 = arith.constant 0 : index
    %c0_6 = arith.constant 0 : index
    %6 = vector.load %arg13[%c0_5, %c0_6] : memref<3x32xf32, #tpu.memory_space<vmem>>, vector<3x32xf32>
    %7 = tpu.concatenate %6, %4 in 0 : vector<3x32xf32>, vector<8x32xf32> -> vector<11x32xf32>
    %c0_7 = arith.constant 0 : index
    %c0_8 = arith.constant 0 : index
    %8 = vector.load %arg4[%c0_7, %c0_8] : memref<1x32xf32, #tpu.memory_space<vmem>>, vector<1x32xf32>
    %9 = vector.extract_strided_slice %7 {offsets = [0, 0], sizes = [8, 32], strides = [1, 1]} : vector<11x32xf32> to vector<8x32xf32>
    %10 = vector.extract_strided_slice %5 {offsets = [0, 0], sizes = [1, 32], strides = [1, 1]} : vector<4x32xf32> to vector<1x32xf32>
    %11 = vector.broadcast %10 : vector<1x32xf32> to vector<8x32xf32>
    %12 = arith.mulf %9, %11 : vector<8x32xf32>
    %13 = vector.broadcast %8 : vector<1x32xf32> to vector<8x32xf32>
    %14 = arith.addf %13, %12 : vector<8x32xf32>
    %15 = vector.extract_strided_slice %7 {offsets = [1, 0], sizes = [8, 32], strides = [1, 1]} : vector<11x32xf32> to vector<8x32xf32>
    %16 = vector.extract_strided_slice %5 {offsets = [1, 0], sizes = [1, 32], strides = [1, 1]} : vector<4x32xf32> to vector<1x32xf32>
    %17 = vector.broadcast %16 : vector<1x32xf32> to vector<8x32xf32>
    %18 = arith.mulf %15, %17 : vector<8x32xf32>
    %19 = arith.addf %14, %18 : vector<8x32xf32>
    %20 = vector.extract_strided_slice %7 {offsets = [2, 0], sizes = [8, 32], strides = [1, 1]} : vector<11x32xf32> to vector<8x32xf32>
    %21 = vector.extract_strided_slice %5 {offsets = [2, 0], sizes = [1, 32], strides = [1, 1]} : vector<4x32xf32> to vector<1x32xf32>
    %22 = vector.broadcast %21 : vector<1x32xf32> to vector<8x32xf32>
    %23 = arith.mulf %20, %22 : vector<8x32xf32>
    %24 = arith.addf %19, %23 : vector<8x32xf32>
    %25 = vector.extract_strided_slice %7 {offsets = [3, 0], sizes = [8, 32], strides = [1, 1]} : vector<11x32xf32> to vector<8x32xf32>
    %26 = vector.extract_strided_slice %5 {offsets = [3, 0], sizes = [1, 32], strides = [1, 1]} : vector<4x32xf32> to vector<1x32xf32>
    %27 = vector.broadcast %26 : vector<1x32xf32> to vector<8x32xf32>
    %28 = arith.mulf %25, %27 : vector<8x32xf32>
    %29 = arith.addf %24, %28 : vector<8x32xf32>
    %30 = arith.negf %29 : vector<8x32xf32>
    %31 = math.exp %30 : vector<8x32xf32>
    %cst = arith.constant 1.000000e+00 : f32
    %32 = vector.broadcast %cst : f32 to vector<8x32xf32>
    %33 = arith.addf %32, %31 : vector<8x32xf32>
    %34 = arith.divf %32, %33 : vector<8x32xf32>
    %35 = arith.mulf %29, %34 : vector<8x32xf32>
    %36 = vector.extract_strided_slice %4 {offsets = [5, 0], sizes = [3, 32], strides = [1, 1]} : vector<8x32xf32> to vector<3x32xf32>
    %c0_9 = arith.constant 0 : index
    %c0_10 = arith.constant 0 : index
    %37 = vector.load %arg13[%c0_9, %c0_10] : memref<3x32xf32, #tpu.memory_space<vmem>>, vector<3x32xf32>
    tpu.vector_store %arg13[%c0_9, %c0_10], %36 {strides = array<i32>} : memref<3x32xf32, #tpu.memory_space<vmem>>, vector<3x32xf32>,
    %38 = arith.truncf %35 : vector<8x32xf32> to vector<8x32xbf16>
    %c0_11 = arith.constant 0 : index
    %c0_12 = arith.constant 0 : index
    %39 = vector.load %arg5[%c0_11, %c0_12] : memref<32x512xbf16, #tpu.memory_space<vmem>>, vector<32x512xbf16>
    %cst_13 = arith.constant dense<0.000000e+00> : vector<8x512xf32>
    %40 = tpu.matmul %38, %39, %cst_13 {dimension_numbers = #tpu.dot_dimension_numbers<[1], [0], [0], [1], [0, 0, 1, 1], [], []>} : vector<8x32xbf16>, vector<32x512xbf16>, vector<8x512xf32> -> vector<8x512xf32>
    %c0_14 = arith.constant 0 : index
    %c0_15 = arith.constant 0 : index
    %41 = vector.load %arg6[%c0_14, %c0_15] : memref<1x512xf32, #tpu.memory_space<vmem>>, vector<1x512xf32>
    %42 = vector.broadcast %41 : vector<1x512xf32> to vector<8x512xf32>
    %43 = arith.addf %40, %42 : vector<8x512xf32>
    %44 = vector.extract_strided_slice %43 {offsets = [0, 0], sizes = [8, 128], strides = [1, 1]} : vector<8x512xf32> to vector<8x128xf32>
    %45 = vector.extract_strided_slice %43 {offsets = [0, 128], sizes = [8, 128], strides = [1, 1]} : vector<8x512xf32> to vector<8x128xf32>
    %46 = vector.extract_strided_slice %43 {offsets = [0, 256], sizes = [8, 128], strides = [1, 1]} : vector<8x512xf32> to vector<8x128xf32>
    %cst_16 = arith.constant 0.000000e+00 : f32
    %47 = vector.broadcast %cst_16 : f32 to vector<8x128xf32>
    %48 = arith.maximumf %46, %47 : vector<8x128xf32>
    %49 = vector.broadcast %cst_16 : f32 to vector<8x128xf32>
    %50 = arith.subf %46, %49 : vector<8x128xf32>
    %51 = arith.cmpf one, %50, %50 : vector<8x128xf32>
    %52 = vector.broadcast %cst_16 : f32 to vector<8x128xf32>
    %53 = arith.addf %46, %52 : vector<8x128xf32>
    %54 = math.absf %50 : vector<8x128xf32>
    %cst_17 = arith.constant 0.000000e+00 : f32
    %55 = vector.broadcast %cst_17 : f32 to vector<8x128xf32>
    %56 = arith.subf %55, %54 : vector<8x128xf32>
    %57 = math.exp %56 : vector<8x128xf32>
    %58 = math.log1p %57 : vector<8x128xf32>
    %59 = arith.addf %48, %58 : vector<8x128xf32>
    %60 = arith.select %51, %53, %59 : vector<8x128xi1>, vector<8x128xf32>
    %61 = vector.extract_strided_slice %43 {offsets = [0, 384], sizes = [8, 128], strides = [1, 1]} : vector<8x512xf32> to vector<8x128xf32>
    %62 = arith.negf %61 : vector<8x128xf32>
    %63 = math.exp %62 : vector<8x128xf32>
    %cst_18 = arith.constant 1.000000e+00 : f32
    %64 = vector.broadcast %cst_18 : f32 to vector<8x128xf32>
    %65 = arith.addf %64, %63 : vector<8x128xf32>
    %66 = arith.divf %64, %65 : vector<8x128xf32>
    %67 = arith.truncf %4 : vector<8x32xf32> to vector<8x32xbf16>
    %c0_19 = arith.constant 0 : index
    %c0_20 = arith.constant 0 : index
    %68 = vector.load %arg7[%c0_19, %c0_20] : memref<32x128xbf16, #tpu.memory_space<vmem>>, vector<32x128xbf16>
    %cst_21 = arith.constant dense<0.000000e+00> : vector<8x128xf32>
    %69 = tpu.matmul %67, %68, %cst_21 {dimension_numbers = #tpu.dot_dimension_numbers<[1], [0], [0], [1], [0, 0, 1, 1], [], []>} : vector<8x32xbf16>, vector<32x128xbf16>, vector<8x128xf32> -> vector<8x128xf32>
    %70 = arith.truncf %69 : vector<8x128xf32> to vector<8x128xbf16>
    %c0_22 = arith.constant 0 : index
    %c0_23 = arith.constant 0 : index
    %71 = vector.load %arg8[%c0_22, %c0_23] : memref<128x32xbf16, #tpu.memory_space<vmem>>, vector<128x32xbf16>
    %cst_24 = arith.constant dense<0.000000e+00> : vector<8x32xf32>
    %72 = tpu.matmul %70, %71, %cst_24 {dimension_numbers = #tpu.dot_dimension_numbers<[1], [0], [0], [1], [0, 0, 1, 1], [], []>} : vector<8x128xbf16>, vector<128x32xbf16>, vector<8x32xf32> -> vector<8x32xf32>
    %c0_25 = arith.constant 0 : index
    %c0_26 = arith.constant 0 : index
    %73 = vector.load %arg9[%c0_25, %c0_26] : memref<1x32xf32, #tpu.memory_space<vmem>>, vector<1x32xf32>
    %74 = vector.broadcast %73 : vector<1x32xf32> to vector<8x32xf32>
    %75 = arith.addf %72, %74 : vector<8x32xf32>
    %76 = arith.negf %75 : vector<8x32xf32>
    %77 = math.exp %76 : vector<8x32xf32>
    %cst_27 = arith.constant 1.000000e+00 : f32
    %78 = vector.broadcast %cst_27 : f32 to vector<8x32xf32>
    %79 = arith.addf %78, %77 : vector<8x32xf32>
    %80 = arith.divf %78, %79 : vector<8x32xf32>
    %81 = arith.mulf %80, %4 : vector<8x32xf32>
    %cst_28 = arith.constant 1.000000e-30 : f32
    %82 = vector.broadcast %cst_28 : f32 to vector<8x128xf32>
    %83 = arith.maximumf %60, %82 : vector<8x128xf32>
    %84 = math.log %83 : vector<8x128xf32>
    %85 = arith.mulf %66, %84 : vector<8x128xf32>
    %86 = math.exp %85 : vector<8x128xf32>
    %cst_29 = arith.constant 0.000000e+00 : f32
    %87 = vector.broadcast %cst_29 : f32 to vector<8x128xf32>
    %88 = arith.subf %87, %60 : vector<8x128xf32>
    %89 = arith.mulf %88, %66 : vector<8x128xf32>
    %90 = arith.mulf %45, %45 : vector<8x128xf32>
    %cst_30 = arith.constant dense<0.000000e+00> : vector<8xf32>
    %91 = vector.multi_reduction <add>, %90, %cst_30 [1] : vector<8x128xf32> to vector<8xf32>
    %92 = vector.shape_cast %91 : vector<8xf32> to vector<8x1xf32>
    %cst_31 = arith.constant 1.000000e-24 : f32
    %93 = vector.broadcast %cst_31 : f32 to vector<8x1xf32>
    %94 = arith.maximumf %92, %93 : vector<8x1xf32>
    %95 = math.rsqrt %94 : vector<8x1xf32>
    %96 = vector.broadcast %95 : vector<8x1xf32> to vector<8x128xf32>
    %97 = arith.mulf %45, %96 : vector<8x128xf32>
    %cst_32 = arith.constant 1.250000e-01 : f32
    %98 = vector.broadcast %cst_32 : f32 to vector<8x128xf32>
    %99 = arith.mulf %44, %98 : vector<8x128xf32>
    %100 = arith.mulf %97, %86 : vector<8x128xf32>
    %101 = tpu.iota {dimensions = array<i32: 0>} : vector<8x8xi32>
    %102 = tpu.iota {dimensions = array<i32: 1>} : vector<8x8xi32>
    %103 = arith.cmpi sge, %101, %102 : vector<8x8xi32>
    %104 = arith.extui %103 : vector<8x8xi1> to vector<8x8xi32>
    %105 = arith.sitofp %104 : vector<8x8xi32> to vector<8x8xf32>
    %cst_33 = arith.constant dense<0.000000e+00> : vector<8x128xf32>
    %106 = tpu.matmul %105, %89, %cst_33 {dimension_numbers = #tpu.dot_dimension_numbers<[1], [0], [0], [1], [0, 0, 1, 1], [], []>} : vector<8x8xf32>, vector<8x128xf32>, vector<8x128xf32> -> vector<8x128xf32>
    %107 = tpu.iota {dimensions = array<i32: 0>} : vector<8x8xi32>
    %108 = tpu.iota {dimensions = array<i32: 1>} : vector<8x8xi32>
    %109 = arith.cmpi sge, %107, %108 : vector<8x8xi32>
    %c0_34 = arith.constant 0 : index
    %c0_35 = arith.constant 0 : index
    %110 = vector.load %arg10[%c0_34, %c0_35] : memref<1x32xf32, #tpu.memory_space<vmem>>, vector<1x32xf32>
    %c0_36 = arith.constant 0 : index
    %c0_37 = arith.constant 0 : index
    %111 = vector.load %arg12[%c0_36, %c0_37] : memref<32x128xf32, #tpu.memory_space<vmem>>, vector<32x128xf32>
    %cst_38 = arith.constant -4.000000e+01 : f32
    %112 = vector.broadcast %cst_38 : f32 to vector<8x128xf32>
    %113 = arith.maximumf %106, %112 : vector<8x128xf32>
    %114 = math.exp %113 : vector<8x128xf32>
    %115 = arith.mulf %99, %114 : vector<8x128xf32>
    %116 = arith.truncf %115 : vector<8x128xf32> to vector<8x128xbf16>
    %cst_39 = arith.constant 0.000000e+00 : f32
    %117 = vector.broadcast %cst_39 : f32 to vector<8x128xf32>
    %118 = arith.subf %117, %113 : vector<8x128xf32>
    %119 = math.exp %118 : vector<8x128xf32>
    %120 = arith.mulf %100, %119 : vector<8x128xf32>
    %121 = arith.truncf %120 : vector<8x128xf32> to vector<8x128xbf16>
    %122 = arith.truncf %81 : vector<8x32xf32> to vector<8x32xbf16>
    %123 = arith.truncf %111 : vector<32x128xf32> to vector<32x128xbf16>
    %cst_40 = arith.constant dense<0.000000e+00> : vector<8x32xf32>
    %124 = tpu.matmul %116, %123, %cst_40 {dimension_numbers = #tpu.dot_dimension_numbers<[1], [1], [0], [0], [0, 0, 1, 0], [], []>} : vector<8x128xbf16>, vector<32x128xbf16>, vector<8x32xf32> -> vector<8x32xf32>
    %cst_41 = arith.constant dense<0.000000e+00> : vector<8x8xf32>
    %125 = tpu.matmul %116, %121, %cst_41 {dimension_numbers = #tpu.dot_dimension_numbers<[1], [1], [0], [0], [0, 0, 1, 0], [], []>} : vector<8x128xbf16>, vector<8x128xbf16>, vector<8x8xf32> -> vector<8x8xf32>
    %cst_42 = arith.constant 0.000000e+00 : f32
    %126 = vector.broadcast %cst_42 : f32 to vector<8x8xf32>
    %127 = arith.select %109, %125, %126 : vector<8x8xi1>, vector<8x8xf32>
    %128 = arith.truncf %127 : vector<8x8xf32> to vector<8x8xbf16>
    %cst_43 = arith.constant dense<0.000000e+00> : vector<8x32xf32>
    %129 = tpu.matmul %128, %122, %cst_43 {dimension_numbers = #tpu.dot_dimension_numbers<[1], [0], [0], [1], [0, 0, 1, 1], [], []>} : vector<8x8xbf16>, vector<8x32xbf16>, vector<8x32xf32> -> vector<8x32xf32>
    %130 = arith.addf %124, %129 : vector<8x32xf32>
    %131 = vector.extract_strided_slice %106 {offsets = [7, 0], sizes = [1, 128], strides = [1, 1]} : vector<8x128xf32> to vector<1x128xf32>
    %132 = vector.broadcast %131 : vector<1x128xf32> to vector<8x128xf32>
    %133 = arith.subf %132, %106 : vector<8x128xf32>
    %134 = math.exp %133 : vector<8x128xf32>
    %135 = arith.mulf %100, %134 : vector<8x128xf32>
    %136 = arith.truncf %135 : vector<8x128xf32> to vector<8x128xbf16>
    %137 = math.exp %131 : vector<1x128xf32>
    %138 = vector.broadcast %137 : vector<1x128xf32> to vector<32x128xf32>
    %139 = arith.mulf %111, %138 : vector<32x128xf32>
    %cst_44 = arith.constant dense<0.000000e+00> : vector<32x128xf32>
    %140 = tpu.matmul %122, %136, %cst_44 {dimension_numbers = #tpu.dot_dimension_numbers<[0], [0], [1], [1], [0, 1, 1, 1], [], []>} : vector<8x32xbf16>, vector<8x128xbf16>, vector<32x128xf32> -> vector<32x128xf32>
    %141 = arith.addf %139, %140 : vector<32x128xf32>
    %142 = vector.broadcast %110 : vector<1x32xf32> to vector<8x32xf32>
    %143 = arith.mulf %35, %142 : vector<8x32xf32>
    %144 = arith.addf %130, %143 : vector<8x32xf32>
    %c0_45 = arith.constant 0 : index
    %c0_46 = arith.constant 0 : index
    %c0_47 = arith.constant 0 : index
    %145 = vector.load %arg11[%c0_45, %c0_46, %c0_47] : memref<1x8x32xf32, #tpu.memory_space<vmem>>, vector<1x8x32xf32>
    %146 = vector.shape_cast %145 : vector<1x8x32xf32> to vector<8x32xf32>
    %147 = vector.shape_cast %144 : vector<8x32xf32> to vector<1x8x32xf32>
    tpu.vector_store %arg11[%c0_45, %c0_46, %c0_47], %147 {strides = array<i32>} : memref<1x8x32xf32, #tpu.memory_space<vmem>>, vector<1x8x32xf32>,
    %c0_48 = arith.constant 0 : index
    %c0_49 = arith.constant 0 : index
    %148 = vector.load %arg12[%c0_48, %c0_49] : memref<32x128xf32, #tpu.memory_space<vmem>>, vector<32x128xf32>
    tpu.vector_store %arg12[%c0_48, %c0_49], %141 {strides = array<i32>} : memref<32x128xf32, #tpu.memory_space<vmem>>, vector<32x128xf32>,
    return
  }
  func.func @transform_0(%arg0: i32, %arg1: i32) -> (i32, i32, i32) {
    %c0_i32 = arith.constant 0 : i32
    %c0_i32_0 = arith.constant 0 : i32
    return %arg0, %arg1, %c0_i32 : i32, i32, i32
  }
  func.func @transform_1(%arg0: i32, %arg1: i32) -> (i32, i32) {
    %c0_i32 = arith.constant 0 : i32
    %c0_i32_0 = arith.constant 0 : i32
    %c0_i32_1 = arith.constant 0 : i32
    return %c0_i32, %c0_i32_0 : i32, i32
  }
  func.func @transform_2(%arg0: i32, %arg1: i32) -> (i32, i32) {
    %c0_i32 = arith.constant 0 : i32
    %c0_i32_0 = arith.constant 0 : i32
    %c0_i32_1 = arith.constant 0 : i32
    return %c0_i32, %c0_i32_0 : i32, i32
  }
  func.func @transform_3(%arg0: i32, %arg1: i32) -> (i32, i32) {
    %c0_i32 = arith.constant 0 : i32
    %c0_i32_0 = arith.constant 0 : i32
    %c0_i32_1 = arith.constant 0 : i32
    return %c0_i32, %c0_i32_0 : i32, i32
  }
  func.func @transform_4(%arg0: i32, %arg1: i32) -> (i32, i32) {
    %c0_i32 = arith.constant 0 : i32
    %c0_i32_0 = arith.constant 0 : i32
    %c0_i32_1 = arith.constant 0 : i32
    return %c0_i32, %c0_i32_0 : i32, i32
  }
  func.func @transform_5(%arg0: i32, %arg1: i32) -> (i32, i32) {
    %c0_i32 = arith.constant 0 : i32
    %c0_i32_0 = arith.constant 0 : i32
    %c0_i32_1 = arith.constant 0 : i32
    return %c0_i32, %c0_i32_0 : i32, i32
  }
  func.func @transform_6(%arg0: i32, %arg1: i32) -> (i32, i32) {
    %c0_i32 = arith.constant 0 : i32
    %c0_i32_0 = arith.constant 0 : i32
    %c0_i32_1 = arith.constant 0 : i32
    return %c0_i32, %c0_i32_0 : i32, i32
  }
  func.func @transform_7(%arg0: i32, %arg1: i32) -> (i32, i32) {
    %c0_i32 = arith.constant 0 : i32
    %c0_i32_0 = arith.constant 0 : i32
    %c0_i32_1 = arith.constant 0 : i32
    return %c0_i32, %c0_i32_0 : i32, i32
  }
  func.func @transform_8(%arg0: i32, %arg1: i32) -> (i32, i32) {
    %c0_i32 = arith.constant 0 : i32
    %c0_i32_0 = arith.constant 0 : i32
    %c0_i32_1 = arith.constant 0 : i32
    return %c0_i32, %c0_i32_0 : i32, i32
  }
  func.func @transform_9(%arg0: i32, %arg1: i32) -> (i32, i32, i32) {
    %c0_i32 = arith.constant 0 : i32
    %c0_i32_0 = arith.constant 0 : i32
    return %arg0, %arg1, %c0_i32 : i32, i32, i32
  }
}

module attributes {stable_mosaic.version = 11 : i64} {
  func.func @_rodimus_kernel(%arg0: i32, %arg1: i32, %arg2: memref<1x8x32xf32, #tpu.memory_space<vmem>>, %arg3: memref<4x32xf32, #tpu.memory_space<vmem>>, %arg4: memref<1x32xf32, #tpu.memory_space<vmem>>, %arg5: memref<32x512xbf16, #tpu.memory_space<vmem>>, %arg6: memref<1x512xf32, #tpu.memory_space<vmem>>, %arg7: memref<32x128xbf16, #tpu.memory_space<vmem>>, %arg8: memref<128x32xbf16, #tpu.memory_space<vmem>>, %arg9: memref<1x32xf32, #tpu.memory_space<vmem>>, %arg10: memref<1x32xf32, #tpu.memory_space<vmem>>, %arg11: memref<1x8x32xf32, #tpu.memory_space<vmem>>, %arg12: memref<32x128xf32, #tpu.memory_space<vmem>>, %arg13: memref<3x32xf32, #tpu.memory_space<vmem>>) attributes {dimension_semantics = [#tpu.dimension_semantics<parallel>, #tpu.dimension_semantics<arbitrary>], iteration_bounds = array<i64: 2, 1>, scalar_prefetch = 0 : i64, scratch_operands = 2 : i64, tpu.core_type = #tpu.core_type<tc>, window_params = [{transform_indices = @transform_0, window_bounds = array<i64: 1, 8, 32>}, {pipeline_mode = #tpu.pipeline_mode<synchronous>, transform_indices = @transform_1, window_bounds = array<i64: 4, 32>}, {pipeline_mode = #tpu.pipeline_mode<synchronous>, transform_indices = @transform_2, window_bounds = array<i64: 1, 32>}, {pipeline_mode = #tpu.pipeline_mode<synchronous>, transform_indices = @transform_3, window_bounds = array<i64: 32, 512>}, {pipeline_mode = #tpu.pipeline_mode<synchronous>, transform_indices = @transform_4, window_bounds = array<i64: 1, 512>}, {pipeline_mode = #tpu.pipeline_mode<synchronous>, transform_indices = @transform_5, window_bounds = array<i64: 32, 128>}, {pipeline_mode = #tpu.pipeline_mode<synchronous>, transform_indices = @transform_6, window_bounds = array<i64: 128, 32>}, {pipeline_mode = #tpu.pipeline_mode<synchronous>, transform_indices = @transform_7, window_bounds = array<i64: 1, 32>}, {pipeline_mode = #tpu.pipeline_mode<synchronous>, transform_indices = @transform_8, window_bounds = array<i64: 1, 32>}, {transform_indices = @transform_9, window_bounds = array<i64: 1, 8, 32>}]} {
    %c0_i32 = arith.constant 0 : i32
    %0 = arith.cmpi eq, %arg1, %c0_i32 : i32
    %1 = arith.extui %0 : i1 to i32
    %c0_i32_0 = arith.constant 0 : i32
    %2 = arith.cmpi ne, %1, %c0_i32_0 : i32
    scf.if %2 {
      %cst_50 = arith.constant 0.000000e+00 : f32
      %149 = vector.broadcast %cst_50 : f32 to vector<32x128xf32>
      %c0_51 = arith.constant 0 : index
      %c0_52 = arith.constant 0 : index
      %150 = vector.load %arg12[%c0_51, %c0_52] : memref<32x128xf32, #tpu.memory_space<vmem>>, vector<32x128xf32>
      tpu.vector_store %arg12[%c0_51, %c0_52], %149 {strides = array<i32>} : memref<32x128xf32, #tpu.memory_space<vmem>>, vector<32x128xf32>,
      %cst_53 = arith.constant 0.000000e+00 : f32
      %151 = vector.broadcast %cst_53 : f32 to vector<3x32xf32>
      %c0_54 = arith.constant 0 : index
      %c0_55 = arith.constant 0 : index
      %152 = vector.load %arg13[%c0_54, %c0_55] : memref<3x32xf32, #tpu.memory_space<vmem>>, vector<3x32xf32>
      tpu.vector_store %arg13[%c0_54, %c0_55], %151 {strides = array<i32>} : memref<3x32xf32, #tpu.memory_space<vmem>>, vector<3x32xf32>,
    } else {
    }
    %c0 = arith.constant 0 : index
    %c0_1 = arith.constant 0 : index
    %c0_2 = arith.constant 0 : index
    %3 = vector.load %arg2[%c0, %c0_1, %c0_2] : memref<1x8x32xf32, #tpu.memory_space<vmem>>, vector<1x8x32xf32>
    %4 = vector.shape_cast %3 : vector<1x8x32xf32> to vector<8x32xf32>
    %c0_3 = arith.constant 0 : index
    %c0_4 = arith.constant 0 : index
    %5 = vector.load %arg3[%c0_3, %c0_4] : memref<4x32xf32, #tpu.memory_space<vmem>>, vector<4x32xf32>
    %c0_5 = arith.constant 0 : index
    %c0_6 = arith.constant 0 : index
    %6 = vector.load %arg13[%c0_5, %c0_6] : memref<3x32xf32, #tpu.memory_space<vmem>>, vector<3x32xf32>
    %7 = tpu.concatenate %6, %4 in 0 : vector<3x32xf32>, vector<8x32xf32> -> vector<11x32xf32>
    %c0_7 = arith.constant 0 : index
    %c0_8 = arith.constant 0 : index
    %8 = vector.load %arg4[%c0_7, %c0_8] : memref<1x32xf32, #tpu.memory_space<vmem>>, vector<1x32xf32>
    %9 = vector.extract_strided_slice %7 {offsets = [0, 0], sizes = [8, 32], strides = [1, 1]} : vector<11x32xf32> to vector<8x32xf32>
    %10 = vector.extract_strided_slice %5 {offsets = [0, 0], sizes = [1, 32], strides = [1, 1]} : vector<4x32xf32> to vector<1x32xf32>
    %11 = vector.broadcast %10 : vector<1x32xf32> to vector<8x32xf32>
    %12 = arith.mulf %9, %11 : vector<8x32xf32>
    %13 = vector.broadcast %8 : vector<1x32xf32> to vector<8x32xf32>
    %14 = arith.addf %13, %12 : vector<8x32xf32>
    %15 = vector.extract_strided_slice %7 {offsets = [1, 0], sizes = [8, 32], strides = [1, 1]} : vector<11x32xf32> to vector<8x32xf32>
    %16 = vector.extract_strided_slice %5 {offsets = [1, 0], sizes = [1, 32], strides = [1, 1]} : vector<4x32xf32> to vector<1x32xf32>
    %17 = vector.broadcast %16 : vector<1x32xf32> to vector<8x32xf32>
    %18 = arith.mulf %15, %17 : vector<8x32xf32>
    %19 = arith.addf %14, %18 : vector<8x32xf32>
    %20 = vector.extract_strided_slice %7 {offsets = [2, 0], sizes = [8, 32], strides = [1, 1]} : vector<11x32xf32> to vector<8x32xf32>
    %21 = vector.extract_strided_slice %5 {offsets = [2, 0], sizes = [1, 32], strides = [1, 1]} : vector<4x32xf32> to vector<1x32xf32>
    %22 = vector.broadcast %21 : vector<1x32xf32> to vector<8x32xf32>
    %23 = arith.mulf %20, %22 : vector<8x32xf32>
    %24 = arith.addf %19, %23 : vector<8x32xf32>
    %25 = vector.extract_strided_slice %7 {offsets = [3, 0], sizes = [8, 32], strides = [1, 1]} : vector<11x32xf32> to vector<8x32xf32>
    %26 = vector.extract_strided_slice %5 {offsets = [3, 0], sizes = [1, 32], strides = [1, 1]} : vector<4x32xf32> to vector<1x32xf32>
    %27 = vector.broadcast %26 : vector<1x32xf32> to vector<8x32xf32>
    %28 = arith.mulf %25, %27 : vector<8x32xf32>
    %29 = arith.addf %24, %28 : vector<8x32xf32>
    %30 = arith.negf %29 : vector<8x32xf32>
    %31 = math.exp %30 : vector<8x32xf32>
    %cst = arith.constant 1.000000e+00 : f32
    %32 = vector.broadcast %cst : f32 to vector<8x32xf32>
    %33 = arith.addf %32, %31 : vector<8x32xf32>
    %34 = arith.divf %32, %33 : vector<8x32xf32>
    %35 = arith.mulf %29, %34 : vector<8x32xf32>
    %36 = vector.extract_strided_slice %4 {offsets = [5, 0], sizes = [3, 32], strides = [1, 1]} : vector<8x32xf32> to vector<3x32xf32>
    %c0_9 = arith.constant 0 : index
    %c0_10 = arith.constant 0 : index
    %37 = vector.load %arg13[%c0_9, %c0_10] : memref<3x32xf32, #tpu.memory_space<vmem>>, vector<3x32xf32>
    tpu.vector_store %arg13[%c0_9, %c0_10], %36 {strides = array<i32>} : memref<3x32xf32, #tpu.memory_space<vmem>>, vector<3x32xf32>,
    %38 = arith.truncf %35 : vector<8x32xf32> to vector<8x32xbf16>
    %c0_11 = arith.constant 0 : index
    %c0_12 = arith.constant 0 : index
    %39 = vector.load %arg5[%c0_11, %c0_12] : memref<32x512xbf16, #tpu.memory_space<vmem>>, vector<32x512xbf16>
    %cst_13 = arith.constant dense<0.000000e+00> : vector<8x512xf32>
    %40 = tpu.matmul %38, %39, %cst_13 {dimension_numbers = #tpu.dot_dimension_numbers<[1], [0], [0], [1], [0, 0, 1, 1], [], []>} : vector<8x32xbf16>, vector<32x512xbf16>, vector<8x512xf32> -> vector<8x512xf32>
    %c0_14 = arith.constant 0 : index
    %c0_15 = arith.constant 0 : index
    %41 = vector.load %arg6[%c0_14, %c0_15] : memref<1x512xf32, #tpu.memory_space<vmem>>, vector<1x512xf32>
    %42 = vector.broadcast %41 : vector<1x512xf32> to vector<8x512xf32>
    %43 = arith.addf %40, %42 : vector<8x512xf32>
    %44 = vector.extract_strided_slice %43 {offsets = [0, 0], sizes = [8, 128], strides = [1, 1]} : vector<8x512xf32> to vector<8x128xf32>
    %45 = vector.extract_strided_slice %43 {offsets = [0, 128], sizes = [8, 128], strides = [1, 1]} : vector<8x512xf32> to vector<8x128xf32>
    %46 = vector.extract_strided_slice %43 {offsets = [0, 256], sizes = [8, 128], strides = [1, 1]} : vector<8x512xf32> to vector<8x128xf32>
    %cst_16 = arith.constant 0.000000e+00 : f32
    %47 = vector.broadcast %cst_16 : f32 to vector<8x128xf32>
    %48 = arith.maximumf %46, %47 : vector<8x128xf32>
    %49 = vector.broadcast %cst_16 : f32 to vector<8x128xf32>
    %50 = arith.subf %46, %49 : vector<8x128xf32>
    %51 = arith.cmpf one, %50, %50 : vector<8x128xf32>
    %52 = vector.broadcast %cst_16 : f32 to vector<8x128xf32>
    %53 = arith.addf %46, %52 : vector<8x128xf32>
    %54 = math.absf %50 : vector<8x128xf32>
    %cst_17 = arith.constant 0.000000e+00 : f32
    %55 = vector.broadcast %cst_17 : f32 to vector<8x128xf32>
    %56 = arith.subf %55, %54 : vector<8x128xf32>
    %57 = math.exp %56 : vector<8x128xf32>
    %58 = math.log1p %57 : vector<8x128xf32>
    %59 = arith.addf %48, %58 : vector<8x128xf32>
    %60 = arith.select %51, %53, %59 : vector<8x128xi1>, vector<8x128xf32>
    %61 = vector.extract_strided_slice %43 {offsets = [0, 384], sizes = [8, 128], strides = [1, 1]} : vector<8x512xf32> to vector<8x128xf32>
    %62 = arith.negf %61 : vector<8x128xf32>
    %63 = math.exp %62 : vector<8x128xf32>
    %cst_18 = arith.constant 1.000000e+00 : f32
    %64 = vector.broadcast %cst_18 : f32 to vector<8x128xf32>
    %65 = arith.addf %64, %63 : vector<8x128xf32>
    %66 = arith.divf %64, %65 : vector<8x128xf32>
    %67 = arith.truncf %4 : vector<8x32xf32> to vector<8x32xbf16>
    %c0_19 = arith.constant 0 : index
    %c0_20 = arith.constant 0 : index
    %68 = vector.load %arg7[%c0_19, %c0_20] : memref<32x128xbf16, #tpu.memory_space<vmem>>, vector<32x128xbf16>
    %cst_21 = arith.constant dense<0.000000e+00> : vector<8x128xf32>
    %69 = tpu.matmul %67, %68, %cst_21 {dimension_numbers = #tpu.dot_dimension_numbers<[1], [0], [0], [1], [0, 0, 1, 1], [], []>} : vector<8x32xbf16>, vector<32x128xbf16>, vector<8x128xf32> -> vector<8x128xf32>
    %70 = arith.truncf %69 : vector<8x128xf32> to vector<8x128xbf16>
    %c0_22 = arith.constant 0 : index
    %c0_23 = arith.constant 0 : index
    %71 = vector.load %arg8[%c0_22, %c0_23] : memref<128x32xbf16, #tpu.memory_space<vmem>>, vector<128x32xbf16>
    %cst_24 = arith.constant dense<0.000000e+00> : vector<8x32xf32>
    %72 = tpu.matmul %70, %71, %cst_24 {dimension_numbers = #tpu.dot_dimension_numbers<[1], [0], [0], [1], [0, 0, 1, 1], [], []>} : vector<8x128xbf16>, vector<128x32xbf16>, vector<8x32xf32> -> vector<8x32xf32>
    %c0_25 = arith.constant 0 : index
    %c0_26 = arith.constant 0 : index
    %73 = vector.load %arg9[%c0_25, %c0_26] : memref<1x32xf32, #tpu.memory_space<vmem>>, vector<1x32xf32>
    %74 = vector.broadcast %73 : vector<1x32xf32> to vector<8x32xf32>
    %75 = arith.addf %72, %74 : vector<8x32xf32>
    %76 = arith.negf %75 : vector<8x32xf32>
    %77 = math.exp %76 : vector<8x32xf32>
    %cst_27 = arith.constant 1.000000e+00 : f32
    %78 = vector.broadcast %cst_27 : f32 to vector<8x32xf32>
    %79 = arith.addf %78, %77 : vector<8x32xf32>
    %80 = arith.divf %78, %79 : vector<8x32xf32>
    %81 = arith.mulf %80, %4 : vector<8x32xf32>
    %cst_28 = arith.constant 1.000000e-30 : f32
    %82 = vector.broadcast %cst_28 : f32 to vector<8x128xf32>
    %83 = arith.maximumf %60, %82 : vector<8x128xf32>
    %84 = math.log %83 : vector<8x128xf32>
    %85 = arith.mulf %66, %84 : vector<8x128xf32>
    %86 = math.exp %85 : vector<8x128xf32>
    %cst_29 = arith.constant 0.000000e+00 : f32
    %87 = vector.broadcast %cst_29 : f32 to vector<8x128xf32>
    %88 = arith.subf %87, %60 : vector<8x128xf32>
    %89 = arith.mulf %88, %66 : vector<8x128xf32>
    %90 = arith.mulf %45, %45 : vector<8x128xf32>
    %cst_30 = arith.constant dense<0.000000e+00> : vector<8xf32>
    %91 = vector.multi_reduction <add>, %90, %cst_30 [1] : vector<8x128xf32> to vector<8xf32>
    %92 = vector.shape_cast %91 : vector<8xf32> to vector<8x1xf32>
    %cst_31 = arith.constant 1.000000e-24 : f32
    %93 = vector.broadcast %cst_31 : f32 to vector<8x1xf32>
    %94 = arith.maximumf %92, %93 : vector<8x1xf32>
    %95 = math.rsqrt %94 : vector<8x1xf32>
    %96 = vector.broadcast %95 : vector<8x1xf32> to vector<8x128xf32>
    %97 = arith.mulf %45, %96 : vector<8x128xf32>
    %cst_32 = arith.constant 1.250000e-01 : f32
    %98 = vector.broadcast %cst_32 : f32 to vector<8x128xf32>
    %99 = arith.mulf %44, %98 : vector<8x128xf32>
    %100 = arith.mulf %97, %86 : vector<8x128xf32>
    %101 = tpu.iota {dimensions = array<i32: 0>} : vector<8x8xi32>
    %102 = tpu.iota {dimensions = array<i32: 1>} : vector<8x8xi32>
    %103 = arith.cmpi sge, %101, %102 : vector<8x8xi32>
    %104 = arith.extui %103 : vector<8x8xi1> to vector<8x8xi32>
    %105 = arith.sitofp %104 : vector<8x8xi32> to vector<8x8xf32>
    %cst_33 = arith.constant dense<0.000000e+00> : vector<8x128xf32>
    %106 = tpu.matmul %105, %89, %cst_33 {dimension_numbers = #tpu.dot_dimension_numbers<[1], [0], [0], [1], [0, 0, 1, 1], [], []>} : vector<8x8xf32>, vector<8x128xf32>, vector<8x128xf32> -> vector<8x128xf32>
    %107 = tpu.iota {dimensions = array<i32: 0>} : vector<8x8xi32>
    %108 = tpu.iota {dimensions = array<i32: 1>} : vector<8x8xi32>
    %109 = arith.cmpi sge, %107, %108 : vector<8x8xi32>
    %c0_34 = arith.constant 0 : index
    %c0_35 = arith.constant 0 : index
    %110 = vector.load %arg10[%c0_34, %c0_35] : memref<1x32xf32, #tpu.memory_space<vmem>>, vector<1x32xf32>
    %c0_36 = arith.constant 0 : index
    %c0_37 = arith.constant 0 : index
    %111 = vector.load %arg12[%c0_36, %c0_37] : memref<32x128xf32, #tpu.memory_space<vmem>>, vector<32x128xf32>
    %cst_38 = arith.constant -4.000000e+01 : f32
    %112 = vector.broadcast %cst_38 : f32 to vector<8x128xf32>
    %113 = arith.maximumf %106, %112 : vector<8x128xf32>
    %114 = math.exp %113 : vector<8x128xf32>
    %115 = arith.mulf %99, %114 : vector<8x128xf32>
    %116 = arith.truncf %115 : vector<8x128xf32> to vector<8x128xbf16>
    %cst_39 = arith.constant 0.000000e+00 : f32
    %117 = vector.broadcast %cst_39 : f32 to vector<8x128xf32>
    %118 = arith.subf %117, %113 : vector<8x128xf32>
    %119 = math.exp %118 : vector<8x128xf32>
    %120 = arith.mulf %100, %119 : vector<8x128xf32>
    %121 = arith.truncf %120 : vector<8x128xf32> to vector<8x128xbf16>
    %122 = arith.truncf %81 : vector<8x32xf32> to vector<8x32xbf16>
    %123 = arith.truncf %111 : vector<32x128xf32> to vector<32x128xbf16>
    %cst_40 = arith.constant dense<0.000000e+00> : vector<8x32xf32>
    %124 = tpu.matmul %116, %123, %cst_40 {dimension_numbers = #tpu.dot_dimension_numbers<[1], [1], [0], [0], [0, 0, 1, 0], [], []>} : vector<8x128xbf16>, vector<32x128xbf16>, vector<8x32xf32> -> vector<8x32xf32>
    %cst_41 = arith.constant dense<0.000000e+00> : vector<8x8xf32>
    %125 = tpu.matmul %116, %121, %cst_41 {dimension_numbers = #tpu.dot_dimension_numbers<[1], [1], [0], [0], [0, 0, 1, 0], [], []>} : vector<8x128xbf16>, vector<8x128xbf16>, vector<8x8xf32> -> vector<8x8xf32>
    %cst_42 = arith.constant 0.000000e+00 : f32
    %126 = vector.broadcast %cst_42 : f32 to vector<8x8xf32>
    %127 = arith.select %109, %125, %126 : vector<8x8xi1>, vector<8x8xf32>
    %128 = arith.truncf %127 : vector<8x8xf32> to vector<8x8xbf16>
    %cst_43 = arith.constant dense<0.000000e+00> : vector<8x32xf32>
    %129 = tpu.matmul %128, %122, %cst_43 {dimension_numbers = #tpu.dot_dimension_numbers<[1], [0], [0], [1], [0, 0, 1, 1], [], []>} : vector<8x8xbf16>, vector<8x32xbf16>, vector<8x32xf32> -> vector<8x32xf32>
    %130 = arith.addf %124, %129 : vector<8x32xf32>
    %131 = vector.extract_strided_slice %106 {offsets = [7, 0], sizes = [1, 128], strides = [1, 1]} : vector<8x128xf32> to vector<1x128xf32>
    %132 = vector.broadcast %131 : vector<1x128xf32> to vector<8x128xf32>
    %133 = arith.subf %132, %106 : vector<8x128xf32>
    %134 = math.exp %133 : vector<8x128xf32>
    %135 = arith.mulf %100, %134 : vector<8x128xf32>
    %136 = arith.truncf %135 : vector<8x128xf32> to vector<8x128xbf16>
    %137 = math.exp %131 : vector<1x128xf32>
    %138 = vector.broadcast %137 : vector<1x128xf32> to vector<32x128xf32>
    %139 = arith.mulf %111, %138 : vector<32x128xf32>
    %cst_44 = arith.constant dense<0.000000e+00> : vector<32x128xf32>
    %140 = tpu.matmul %122, %136, %cst_44 {dimension_numbers = #tpu.dot_dimension_numbers<[0], [0], [1], [1], [0, 1, 1, 1], [], []>} : vector<8x32xbf16>, vector<8x128xbf16>, vector<32x128xf32> -> vector<32x128xf32>
    %141 = arith.addf %139, %140 : vector<32x128xf32>
    %142 = vector.broadcast %110 : vector<1x32xf32> to vector<8x32xf32>
    %143 = arith.mulf %35, %142 : vector<8x32xf32>
    %144 = arith.addf %130, %143 : vector<8x32xf32>
    %c0_45 = arith.constant 0 : index
    %c0_46 = arith.constant 0 : index
    %c0_47 = arith.constant 0 : index
    %145 = vector.load %arg11[%c0_45, %c0_46, %c0_47] : memref<1x8x32xf32, #tpu.memory_space<vmem>>, vector<1x8x32xf32>
    %146 = vector.shape_cast %145 : vector<1x8x32xf32> to vector<8x32xf32>
    %147 = vector.shape_cast %144 : vector<8x32xf32> to vector<1x8x32xf32>
    tpu.vector_store %arg11[%c0_45, %c0_46, %c0_47], %147 {strides = array<i32>} : memref<1x8x32xf32, #tpu.memory_space<vmem>>, vector<1x8x32xf32>,
    %c0_48 = arith.constant 0 : index
    %c0_49 = arith.constant 0 : index
    %148 = vector.load %arg12[%c0_48, %c0_49] : memref<32x128xf32, #tpu.memory_space<vmem>>, vector<32x128xf32>
    tpu.vector_store %arg12[%c0_48, %c0_49], %141 {strides = array<i32>} : memref<32x128xf32, #tpu.memory_space<vmem>>, vector<32x128xf32>,
    return
  }
  func.func @transform_0(%arg0: i32, %arg1: i32) -> (i32, i32, i32) {
    %c0_i32 = arith.constant 0 : i32
    %c0_i32_0 = arith.constant 0 : i32
    return %arg0, %arg1, %c0_i32 : i32, i32, i32
  }
  func.func @transform_1(%arg0: i32, %arg1: i32) -> (i32, i32) {
    %c0_i32 = arith.constant 0 : i32
    %c0_i32_0 = arith.constant 0 : i32
    %c0_i32_1 = arith.constant 0 : i32
    return %c0_i32, %c0_i32_0 : i32, i32
  }
  func.func @transform_2(%arg0: i32, %arg1: i32) -> (i32, i32) {
    %c0_i32 = arith.constant 0 : i32
    %c0_i32_0 = arith.constant 0 : i32
    %c0_i32_1 = arith.constant 0 : i32
    return %c0_i32, %c0_i32_0 : i32, i32
  }
  func.func @transform_3(%arg0: i32, %arg1: i32) -> (i32, i32) {
    %c0_i32 = arith.constant 0 : i32
    %c0_i32_0 = arith.constant 0 : i32
    %c0_i32_1 = arith.constant 0 : i32
    return %c0_i32, %c0_i32_0 : i32, i32
  }
  func.func @transform_4(%arg0: i32, %arg1: i32) -> (i32, i32) {
    %c0_i32 = arith.constant 0 : i32
    %c0_i32_0 = arith.constant 0 : i32
    %c0_i32_1 = arith.constant 0 : i32
    return %c0_i32, %c0_i32_0 : i32, i32
  }
  func.func @transform_5(%arg0: i32, %arg1: i32) -> (i32, i32) {
    %c0_i32 = arith.constant 0 : i32
    %c0_i32_0 = arith.constant 0 : i32
    %c0_i32_1 = arith.constant 0 : i32
    return %c0_i32, %c0_i32_0 : i32, i32
  }
  func.func @transform_6(%arg0: i32, %arg1: i32) -> (i32, i32) {
    %c0_i32 = arith.constant 0 : i32
    %c0_i32_0 = arith.constant 0 : i32
    %c0_i32_1 = arith.constant 0 : i32
    return %c0_i32, %c0_i32_0 : i32, i32
  }
  func.func @transform_7(%arg0: i32, %arg1: i32) -> (i32, i32) {
    %c0_i32 = arith.constant 0 : i32
    %c0_i32_0 = arith.constant 0 : i32
    %c0_i32_1 = arith.constant 0 : i32
    return %c0_i32, %c0_i32_0 : i32, i32
  }
  func.func @transform_8(%arg0: i32, %arg1: i32) -> (i32, i32) {
    %c0_i32 = arith.constant 0 : i32
    %c0_i32_0 = arith.constant 0 : i32
    %c0_i32_1 = arith.constant 0 : i32
    return %c0_i32, %c0_i32_0 : i32, i32
  }
  func.func @transform_9(%arg0: i32, %arg1: i32) -> (i32, i32, i32) {
    %c0_i32 = arith.constant 0 : i32
    %c0_i32_0 = arith.constant 0 : i32
    return %arg0, %arg1, %c0_i32 : i32, i32, i32
  }
}

</mosaic_0001>

<llo_original>
// kernel: tpu_custom_call.1
$region0: #{tpu_custom_call.1}
  #allocation0 [shape = 'u32[]', space=smem, size = 0x4, offset = 0x4, fixed_abs, tag = 'smem constant byte address 0x4 - core index']
  #allocation1 [shape = 'u32[144,128]{1,0:T(1,128)}', space=vmem, size = 0x12000, scoped, tag = 'internal scratch']
  #allocation2 [shape = 'f32[32,128]{1,0:T(8,128)}', space=vmem, size = 0x4000, scoped, tag = 'scratch operand']
  #allocation3 [shape = 'f32[3,32]{1,0:T(4,128)}', space=vmem, size = 0x800, scoped, tag = 'scratch operand']
  %s0 = inlined_call_operand.vmem [shape: f32[2,8,32], index: 0, kind: input, shape index: {}]
  %s1 = inlined_call_operand.vmem [shape: f32[4,32], index: 1, kind: input, shape index: {}]
  %s2 = inlined_call_operand.vmem [shape: f32[1,32], index: 2, kind: input, shape index: {}]
  %s3 = inlined_call_operand.vmem [shape: bf16[32,512], index: 3, kind: input, shape index: {}]
  %s4 = inlined_call_operand.hbm [shape: f32[1,512], index: 4, kind: input, shape index: {}]
  %s5 = inlined_call_operand.hbm [shape: bf16[32,128], index: 5, kind: input, shape index: {}]
  %s6 = inlined_call_operand.vmem [shape: bf16[128,32], index: 6, kind: input, shape index: {}]
  %s7 = inlined_call_operand.vmem [shape: f32[1,32], index: 7, kind: input, shape index: {}]
  %s8 = inlined_call_operand.vmem [shape: f32[1,32], index: 8, kind: input, shape index: {}]
  %s9 = inlined_call_operand.hbm [shape: f32[2,8,32], index: 9, kind: output, shape index: {}]
  %s10 = sld [smem:[#allocation0]]
  $region81: #{tpu_custom_call.1} parent=0
    _
  %s12 = ssub.s32 1, %s10
  %s13 = scalar_select 0, %s12, %s10
  $region1: #{tpu_custom_call.1} parent=0
    #allocation4 [shape = 'u8[2048]{0}', space=vmem, size = 0x800, scoped, tag = 'input window, operand 4, single buffered']
    #allocation5 [shape = 's32[2]{0}', space=sflag, size = 0x8, scoped, tag = 'scoped memory for tpu_custom_call.1']
    #allocation6 [shape = 's32[2]{0}', space=sflag, size = 0x8, scoped, tag = 'scoped memory for tpu_custom_call.1']
    #allocation7 [shape = 'u8[8192]{0}', space=vmem, size = 0x2000, scoped, tag = 'input window, operand 5, single buffered']
    #allocation8 [shape = 's32[1]{0}', space=sflag, size = 0x4, scoped, tag = 'scoped memory for tpu_custom_call.1']
    #allocation9 [shape = 'u8[8192]{0}', space=vmem, size = 0x2000, scoped, tag = 'output window, operand 0']
    %14 = vsyncpa [#allocation5], 0
    %15 = vsyncpa [#allocation8], 0
    %16 = vsyncpa [#allocation6], 0
    %s17 = scalar_lea.sflag [#allocation6], 1
    %18 = vsyncpa %s17, 0
    loop: start=0, step=1, limit=4
    $region2: #{tpu_custom_call.1} parent=1 // loop_pre_header
      _
    $region3: #{tpu_custom_call.1} parent=1 // loop_header
      %s20 = sphi 0, %s24
      %p21 = scmp.ge.s32.totalorder %s20, 4
      %s27 = sphi 0, %s39
      %s28 = sphi 0, %s35
      %s29 = sphi 0, %s27
      %s30 = sphi 0, %s28
      %s31 = sphi 0, %s29
      %s32 = sphi 0, %s30
      %s44 = sphi 0, %s46
      %s47 = sphi 0, %s44
      %s48 = sphi 0, %s47
      %s64 = sphi 0, %s48
      %s68 = sphi 0, %s68
      %s70 = sphi 0, %s68
      %s71 = sphi 0, %s70
      %s85 = sphi 0, %s71
      %s89 = sphi 0, %s89
      %s91 = sphi 0, %s89
      %s92 = sphi 0, %s91
      %s106 = sphi 0, %s92
      %s110 = sphi 0, %s110
      %s112 = sphi 0, %s110
      %s113 = sphi 0, %s112
      %s127 = sphi 0, %s113
      %s131 = sphi 0, %s131
      %s133 = sphi 0, %s131
      %s134 = sphi 0, %s133
      %s148 = sphi 0, %s134
      %s152 = sphi 0, %s152
      %s154 = sphi 0, %s152
      %s155 = sphi 0, %s154
      %s169 = sphi 0, %s155
      %s173 = sphi 0, %s173
      %s175 = sphi 0, %s173
      %s176 = sphi 0, %s175
      %s190 = sphi 0, %s176
      %s194 = sphi 0, %s194
      %s196 = sphi 0, %s194
      %s197 = sphi 0, %s196
      %s211 = sphi 0, %s197
      %s215 = sphi 0, %s215
      %s217 = sphi 0, %s215
      %s218 = sphi 0, %s217
      %s232 = sphi 0, %s218
      %s240 = sphi 0, %s242
      %s243 = sphi 0, %s240
      %s244 = sphi 0, %s243
      %s260 = sphi 0, %s244
    $region4: #{tpu_custom_call.1} parent=1 // loop_header_branch
      %23 = sbr.rel (%p21) target = $region8
    $region5: #{tpu_custom_call.1} parent=1 // loop_body
      %s25 = ssub.s32 %s20, 1
      %s26 = ssub.s32 %s20, 2
      %s33 = sadd.s32 1, %s28
      %p34 = scmp.ge.s32.totalorder %s33, 1
      %s35 = scalar_select %p34, 0, %s33
      %s36 = sadd.s32 1, %s27
      %s37 = scalar_select %p34, %s36, %s27
      %p38 = scmp.ge.s32.totalorder %s37, 2
      %s39 = scalar_select %p38, 0, %s37
      %s40 = ssub.s32 %s27, %s39
      %s41 = ssub.s32 %s28, %s35
      %s42 = sor.u32 %s40, %s41
      %p43 = scmp.eq.s32.totalorder %s42, 0
      %s45 = sadd.s32 %s44, 1
      %s46 = scalar_select %p43, %s44, %s45
      %p49 = pneg %p43
      %p50 = scmp.eq.s32.totalorder %s20, 1
      %p51 = por %p49, %p50
      %p52 = scmp.ne.s32.totalorder %s44, %s47
      %p53 = scmp.eq.s32.totalorder %s20, 0
      %p54 = por %p52, %p53
      %p55 = scmp.ne.s32.totalorder %s44, %s47
      %p56 = scmp.eq.s32.totalorder %s25, 1
      %p57 = por %p55, %p56
      %p58 = scmp.ne.s32.totalorder %s47, %s48
      %p59 = scmp.eq.s32.totalorder %s25, 0
      %p60 = por %p58, %p59
      %p61 = scmp.ne.s32.totalorder %s47, %s48
      %p62 = scmp.eq.s32.totalorder %s26, 1
      %p63 = por %p61, %p62
      %p65 = scmp.ne.s32.totalorder %s48, %s64
      %p66 = scmp.eq.s32.totalorder %s26, 0
      %p67 = por %p65, %p66
      %s69 = sadd.s32 %s68, 1
      %p72 = scmp.eq.s32.totalorder %s20, 1
      %p73 = scmp.ne.s32.totalorder %s68, %s70
      %p74 = scmp.eq.s32.totalorder %s20, 0
      %p75 = por %p73, %p74
      %p76 = scmp.ne.s32.totalorder %s68, %s70
      %p77 = scmp.eq.s32.totalorder %s25, 1
      %p78 = por %p76, %p77
      %p79 = scmp.ne.s32.totalorder %s70, %s71
      %p80 = scmp.eq.s32.totalorder %s25, 0
      %p81 = por %p79, %p80
      %p82 = scmp.ne.s32.totalorder %s70, %s71
      %p83 = scmp.eq.s32.totalorder %s26, 1
      %p84 = por %p82, %p83
      %p86 = scmp.ne.s32.totalorder %s71, %s85
      %p87 = scmp.eq.s32.totalorder %s26, 0
      %p88 = por %p86, %p87
      %s90 = sadd.s32 %s89, 1
      %p93 = scmp.eq.s32.totalorder %s20, 1
      %p94 = scmp.ne.s32.totalorder %s89, %s91
      %p95 = scmp.eq.s32.totalorder %s20, 0
      %p96 = por %p94, %p95
      %p97 = scmp.ne.s32.totalorder %s89, %s91
      %p98 = scmp.eq.s32.totalorder %s25, 1
      %p99 = por %p97, %p98
      %p100 = scmp.ne.s32.totalorder %s91, %s92
      %p101 = scmp.eq.s32.totalorder %s25, 0
      %p102 = por %p100, %p101
      %p103 = scmp.ne.s32.totalorder %s91, %s92
      %p104 = scmp.eq.s32.totalorder %s26, 1
      %p105 = por %p103, %p104
      %p107 = scmp.ne.s32.totalorder %s92, %s106
      %p108 = scmp.eq.s32.totalorder %s26, 0
      %p109 = por %p107, %p108
      %s111 = sadd.s32 %s110, 1
      %p114 = scmp.eq.s32.totalorder %s20, 1
      %p115 = scmp.ne.s32.totalorder %s110, %s112
      %p116 = scmp.eq.s32.totalorder %s20, 0
      %p117 = por %p115, %p116
      %p118 = scmp.ne.s32.totalorder %s110, %s112
      %p119 = scmp.eq.s32.totalorder %s25, 1
      %p120 = por %p118, %p119
      %p121 = scmp.ne.s32.totalorder %s112, %s113
      %p122 = scmp.eq.s32.totalorder %s25, 0
      %p123 = por %p121, %p122
      %p124 = scmp.ne.s32.totalorder %s112, %s113
      %p125 = scmp.eq.s32.totalorder %s26, 1
      %p126 = por %p124, %p125
      %p128 = scmp.ne.s32.totalorder %s113, %s127
      %p129 = scmp.eq.s32.totalorder %s26, 0
      %p130 = por %p128, %p129
      %s132 = sadd.s32 %s131, 1
      %p135 = scmp.eq.s32.totalorder %s20, 1
      %p136 = scmp.ne.s32.totalorder %s131, %s133
      %p137 = scmp.eq.s32.totalorder %s20, 0
      %p138 = por %p136, %p137
      %p139 = scmp.ne.s32.totalorder %s131, %s133
      %p140 = scmp.eq.s32.totalorder %s25, 1
      %p141 = por %p139, %p140
      %p142 = scmp.ne.s32.totalorder %s133, %s134
      %p143 = scmp.eq.s32.totalorder %s25, 0
      %p144 = por %p142, %p143
      %p145 = scmp.ne.s32.totalorder %s133, %s134
      %p146 = scmp.eq.s32.totalorder %s26, 1
      %p147 = por %p145, %p146
      %p149 = scmp.ne.s32.totalorder %s134, %s148
      %p150 = scmp.eq.s32.totalorder %s26, 0
      %p151 = por %p149, %p150
      %s153 = sadd.s32 %s152, 1
      %p156 = scmp.eq.s32.totalorder %s20, 1
      %p157 = scmp.ne.s32.totalorder %s152, %s154
      %p158 = scmp.eq.s32.totalorder %s20, 0
      %p159 = por %p157, %p158
      %p160 = scmp.ne.s32.totalorder %s152, %s154
      %p161 = scmp.eq.s32.totalorder %s25, 1
      %p162 = por %p160, %p161
      %p163 = scmp.ne.s32.totalorder %s154, %s155
      %p164 = scmp.eq.s32.totalorder %s25, 0
      %p165 = por %p163, %p164
      %p166 = scmp.ne.s32.totalorder %s154, %s155
      %p167 = scmp.eq.s32.totalorder %s26, 1
      %p168 = por %p166, %p167
      %p170 = scmp.ne.s32.totalorder %s155, %s169
      %p171 = scmp.eq.s32.totalorder %s26, 0
      %p172 = por %p170, %p171
      %s174 = sadd.s32 %s173, 1
      %p177 = scmp.eq.s32.totalorder %s20, 1
      %p178 = scmp.ne.s32.totalorder %s173, %s175
      %p179 = scmp.eq.s32.totalorder %s20, 0
      %p180 = por %p178, %p179
      %p181 = scmp.ne.s32.totalorder %s173, %s175
      %p182 = scmp.eq.s32.totalorder %s25, 1
      %p183 = por %p181, %p182
      %p184 = scmp.ne.s32.totalorder %s175, %s176
      %p185 = scmp.eq.s32.totalorder %s25, 0
      %p186 = por %p184, %p185
      %p187 = scmp.ne.s32.totalorder %s175, %s176
      %p188 = scmp.eq.s32.totalorder %s26, 1
      %p189 = por %p187, %p188
      %p191 = scmp.ne.s32.totalorder %s176, %s190
      %p192 = scmp.eq.s32.totalorder %s26, 0
      %p193 = por %p191, %p192
      %s195 = sadd.s32 %s194, 1
      %p198 = scmp.eq.s32.totalorder %s20, 1
      %p199 = scmp.ne.s32.totalorder %s194, %s196
      %p200 = scmp.eq.s32.totalorder %s20, 0
      %p201 = por %p199, %p200
      %p202 = scmp.ne.s32.totalorder %s194, %s196
      %p203 = scmp.eq.s32.totalorder %s25, 1
      %p204 = por %p202, %p203
      %p205 = scmp.ne.s32.totalorder %s196, %s197
      %p206 = scmp.eq.s32.totalorder %s25, 0
      %p207 = por %p205, %p206
      %p208 = scmp.ne.s32.totalorder %s196, %s197
      %p209 = scmp.eq.s32.totalorder %s26, 1
      %p210 = por %p208, %p209
      %p212 = scmp.ne.s32.totalorder %s197, %s211
      %p213 = scmp.eq.s32.totalorder %s26, 0
      %p214 = por %p212, %p213
      %s216 = sadd.s32 %s215, 1
      %p219 = scmp.eq.s32.totalorder %s20, 1
      %p220 = scmp.ne.s32.totalorder %s215, %s217
      %p221 = scmp.eq.s32.totalorder %s20, 0
      %p222 = por %p220, %p221
      %p223 = scmp.ne.s32.totalorder %s215, %s217
      %p224 = scmp.eq.s32.totalorder %s25, 1
      %p225 = por %p223, %p224
      %p226 = scmp.ne.s32.totalorder %s217, %s218
      %p227 = scmp.eq.s32.totalorder %s25, 0
      %p228 = por %p226, %p227
      %p229 = scmp.ne.s32.totalorder %s217, %s218
      %p230 = scmp.eq.s32.totalorder %s26, 1
      %p231 = por %p229, %p230
      %p233 = scmp.ne.s32.totalorder %s218, %s232
      %p234 = scmp.eq.s32.totalorder %s26, 0
      %p235 = por %p233, %p234
      %s236 = ssub.s32 %s27, %s39
      %s237 = ssub.s32 %s28, %s35
      %s238 = sor.u32 %s236, %s237
      %p239 = scmp.eq.s32.totalorder %s238, 0
      %s241 = sadd.s32 %s240, 1
      %s242 = scalar_select %p239, %s240, %s241
      %p245 = pneg %p239
      %p246 = scmp.eq.s32.totalorder %s20, 1
      %p247 = por %p245, %p246
      %p248 = scmp.ne.s32.totalorder %s240, %s243
      %p249 = scmp.eq.s32.totalorder %s20, 0
      %p250 = por %p248, %p249
      %p251 = scmp.ne.s32.totalorder %s240, %s243
      %p252 = scmp.eq.s32.totalorder %s25, 1
      %p253 = por %p251, %p252
      %p254 = scmp.ne.s32.totalorder %s243, %s244
      %p255 = scmp.eq.s32.totalorder %s25, 0
      %p256 = por %p254, %p255
      %p257 = scmp.ne.s32.totalorder %s243, %s244
      %p258 = scmp.eq.s32.totalorder %s26, 1
      %p259 = por %p257, %p258
      %p261 = scmp.ne.s32.totalorder %s244, %s260
      %p262 = scmp.eq.s32.totalorder %s26, 0
      %p263 = por %p261, %p262
      %p264 = scmp.le.s32.totalorder 1, %s20
      %p265 = scmp.lt.s32.totalorder %s20, 3
      %p266 = pnand %p264, %p265
      %p267 = pneg %p266
      // Predicated region
      $region9: #{tpu_custom_call.1} parent=5 // pred_check
        _
      $region10: #{tpu_custom_call.1} parent=5 // pred_check_branch
        %269 = sbr.rel (%p266) target = $region12
      $region11: #{tpu_custom_call.1} parent=5 // pred_region
        %s270 = ssub.s32 %s20, 1
        // Predicated region
        $region13: #{tpu_custom_call.1} parent=11 // pred_check
          %p271 = pneg %p81
        $region14: #{tpu_custom_call.1} parent=11 // pred_check_branch
          %273 = sbr.rel (%p271) target = $region16
        $region15: #{tpu_custom_call.1} parent=11 // pred_region
          _
        $region16: #{tpu_custom_call.1} parent=11 // pred_fallthru
          _
        // Predicated region
        $region17: #{tpu_custom_call.1} parent=11 // pred_check
          %p274 = pneg %p102
        $region18: #{tpu_custom_call.1} parent=11 // pred_check_branch
          %276 = sbr.rel (%p274) target = $region20
        $region19: #{tpu_custom_call.1} parent=11 // pred_region
          _
        $region20: #{tpu_custom_call.1} parent=11 // pred_fallthru
          _
        // Predicated region
        $region21: #{tpu_custom_call.1} parent=11 // pred_check
          %p277 = pneg %p123
        $region22: #{tpu_custom_call.1} parent=11 // pred_check_branch
          %279 = sbr.rel (%p277) target = $region24
        $region23: #{tpu_custom_call.1} parent=11 // pred_region
          _
        $region24: #{tpu_custom_call.1} parent=11 // pred_fallthru
          _
        // Predicated region
        $region25: #{tpu_custom_call.1} parent=11 // pred_check
          %p280 = pneg %p144
        $region26: #{tpu_custom_call.1} parent=11 // pred_check_branch
          %282 = sbr.rel (%p280) target = $region28
        $region27: #{tpu_custom_call.1} parent=11 // pred_region
          %s284 = ssub.s32 64, 64
          %285 = vsyncadd [#allocation5], %s284
          %s287 = sshll.u32 [#allocation4], 4
          %s288 = int_to_ptr.vmem [resolvable:$true] %s287
          %290 = dma.hbm_to_vmem [thread:$0]  %s4, 64, %s288, [#allocation5]
        $region28: #{tpu_custom_call.1} parent=11 // pred_fallthru
          _
        // Predicated region
        $region29: #{tpu_custom_call.1} parent=11 // pred_check
          %p291 = pneg %p165
        $region30: #{tpu_custom_call.1} parent=11 // pred_check_branch
          %293 = sbr.rel (%p291) target = $region32
        $region31: #{tpu_custom_call.1} parent=11 // pred_region
          %s295 = ssub.s32 256, 256
          %296 = vsyncadd [#allocation8], %s295
          %s297 = sshll.u32 [#allocation7], 4
          %s298 = int_to_ptr.vmem [resolvable:$true] %s297
          %303 = dma.hbm_to_vmem [thread:$0]  %s5, 256, %s298, [#allocation8], 64, 64, 4
        $region32: #{tpu_custom_call.1} parent=11 // pred_fallthru
          _
        // Predicated region
        $region33: #{tpu_custom_call.1} parent=11 // pred_check
          %p304 = pneg %p186
        $region34: #{tpu_custom_call.1} parent=11 // pred_check_branch
          %306 = sbr.rel (%p304) target = $region36
        $region35: #{tpu_custom_call.1} parent=11 // pred_region
          _
        $region36: #{tpu_custom_call.1} parent=11 // pred_fallthru
          _
        // Predicated region
        $region37: #{tpu_custom_call.1} parent=11 // pred_check
          %p307 = pneg %p207
        $region38: #{tpu_custom_call.1} parent=11 // pred_check_branch
          %309 = sbr.rel (%p307) target = $region40
        $region39: #{tpu_custom_call.1} parent=11 // pred_region
          _
        $region40: #{tpu_custom_call.1} parent=11 // pred_fallthru
          _
        // Predicated region
        $region41: #{tpu_custom_call.1} parent=11 // pred_check
          %p310 = pneg %p228
        $region42: #{tpu_custom_call.1} parent=11 // pred_check_branch
          %312 = sbr.rel (%p310) target = $region44
        $region43: #{tpu_custom_call.1} parent=11 // pred_region
          _
        $region44: #{tpu_custom_call.1} parent=11 // pred_fallthru
          _
      $region12: #{tpu_custom_call.1} parent=5 // pred_fallthru
        _
      %p313 = scmp.lt.s32.totalorder %s20, 2
      // Predicated region
      $region45: #{tpu_custom_call.1} parent=5 // pred_check
        %p314 = pneg %p313
      $region46: #{tpu_custom_call.1} parent=5 // pred_check_branch
        %316 = sbr.rel (%p314) target = $region48
      $region47: #{tpu_custom_call.1} parent=5 // pred_region
        // Predicated region
        $region49: #{tpu_custom_call.1} parent=47 // pred_check
          %p317 = pneg %p54
        $region50: #{tpu_custom_call.1} parent=47 // pred_check_branch
          %319 = sbr.rel (%p317) target = $region52
        $region51: #{tpu_custom_call.1} parent=47 // pred_region
          %p320 = scmp.lt.s32.totalorder %s27, 1
          %s321 = scalar_select %p320, %s27, 1
          %p322 = scmp.lt.s32.totalorder %s28, 0
          %s323 = scalar_select %p322, %s28, 0
          %s324 = sadd.s32 %s323, %s321
          %s325 = smul.addr %s324, 8
          %s326 = scalar_lea.vmem %s0, %s325
        $region52: #{tpu_custom_call.1} parent=47 // pred_fallthru
          _
      $region48: #{tpu_custom_call.1} parent=5 // pred_fallthru
        _
      %p327 = scmp.le.s32.totalorder 1, %s20
      %p328 = scmp.lt.s32.totalorder %s20, 3
      %p329 = pnand %p327, %p328
      %p330 = pneg %p329
      // Predicated region
      $region53: #{tpu_custom_call.1} parent=5 // pred_check
        _
      $region54: #{tpu_custom_call.1} parent=5 // pred_check_branch
        %332 = sbr.rel (%p329) target = $region56
      $region55: #{tpu_custom_call.1} parent=5 // pred_region
        %s333 = ssub.s32 %s20, 1
        // Predicated region
        $region57: #{tpu_custom_call.1} parent=55 // pred_check
          %p334 = pneg %p144
        $region58: #{tpu_custom_call.1} parent=55 // pred_check_branch
          %336 = sbr.rel (%p334) target = $region60
        $region59: #{tpu_custom_call.1} parent=55 // pred_region
          %337 = dma.done [#allocation5], 64
        $region60: #{tpu_custom_call.1} parent=55 // pred_fallthru
          _
        // Predicated region
        $region61: #{tpu_custom_call.1} parent=55 // pred_check
          %p338 = pneg %p165
        $region62: #{tpu_custom_call.1} parent=55 // pred_check_branch
          %340 = sbr.rel (%p338) target = $region64
        $region63: #{tpu_custom_call.1} parent=55 // pred_region
          %341 = dma.done [#allocation8], 256
        $region64: #{tpu_custom_call.1} parent=55 // pred_fallthru
          _
        %p342 = scmp.lt.s32.totalorder %s29, 1
        %s343 = scalar_select %p342, %s29, 1
        %p344 = scmp.lt.s32.totalorder %s30, 0
        %s345 = scalar_select %p344, %s30, 0
        %s346 = sadd.s32 %s345, %s343
        %s347 = smul.addr %s346, 8
        %s348 = scalar_lea.vmem %s0, %s347
        %p349 = pneg %p60
        %p350 = pneg %p57
        %p351 = pneg %p81
        %p352 = pneg %p78
        %p353 = pneg %p102
        %p354 = pneg %p99
        %p355 = pneg %p123
        %p356 = pneg %p120
        %p357 = pneg %p144
        %p358 = pneg %p141
        %p359 = pneg %p165
        %p360 = pneg %p162
        %p361 = pneg %p186
        %p362 = pneg %p183
        %p363 = pneg %p207
        %p364 = pneg %p204
        %p365 = pneg %p228
        %p366 = pneg %p225
        %p367 = pneg %p256
        %p368 = pneg %p253
        %s369 = sand.u32 %s243, 1
        %s370 = scalar_lea.sflag [#allocation6], %s369
        %s371 = sand.u32 %s243, 1
        %s372 = smul.addr %s371, 8
        %s373 = scalar_lea.vmem [#allocation9], %s372
        %p374 = scmp.lt.s32.totalorder %s29, 1
        %s375 = scalar_select %p374, %s29, 1
        %p376 = scmp.lt.s32.totalorder %s30, 0
        %s377 = scalar_select %p376, %s30, 0
        %s378 = sadd.s32 %s377, %s375
        %s379 = smul.addr %s378, 8
        %s380 = scalar_lea.vmem %s0, %s379
        %p382 = scmp.eq.s32.totalorder %s30, 0
        // Predicated region
        $region65: #{tpu_custom_call.1} parent=55 // pred_check
          %p383 = pneg %p382
        $region66: #{tpu_custom_call.1} parent=55 // pred_check_branch
          %385 = sbr.rel (%p383) target = $region68
        $region67: #{tpu_custom_call.1} parent=55 // pred_region
          %386 = vst [vmem:[#allocation2] sm:$0xff] 0.0
          %387 = vst [vmem:[#allocation2 + $0x8] sm:$0xff] 0.0
          %388 = vst [vmem:[#allocation2 + $0x10] sm:$0xff] 0.0
          %389 = vst [vmem:[#allocation2 + $0x18] sm:$0xff] 0.0
          %vm390 = vcmask 256000
          %391 = vst.msk [vmem:[#allocation3] sm:$0x7] %vm390, 0.0
        $region68: #{tpu_custom_call.1} parent=55 // pred_fallthru
          _
        %v392 = vld [vmem:[%s380] sm:$0xff]
        %v393 = vld [vmem:[%s1] sm:$0xf]
        %v394 = vld [vmem:[#allocation3] sm:$0x7]
        %v396 = vrot.slane %v392, 5
        %vm398 = vcmask 1042432
        %v399 = vsel %vm398, %v394, %v396
        %v400 = vld [vmem:[%s2] sm:$0x1]
        %v401 = vlaneseq
        %v402 = vshrl.u32 %v401, 7
        %v403 = vsub.s32 0, %v402
        %v404 = vrot.slane %v393, %v403
        %v405 = vmul.f32 %v399, %v404
        %v407 = vlaneseq
        %v408 = vshrl.u32 %v407, 7
        %v409 = vsub.s32 0, %v408
        %v410 = vrot.slane %v400, %v409
        %v412 = vadd.f32 %v410, %v405
        %v413 = vlaneseq
        %v414 = vshrl.u32 %v413, 7
        %v415 = vsub.s32 1, %v414
        %v416 = vrot.slane %v393, %v415
        %v417 = vmul.f32 %v399, %v416
        %v418 = vmul.f32 %v396, %v416
        %vm421 = vcmask 1046528
        %v422 = vrot.slane %v417, 1
        %v423 = vrot.slane %v418, 1
        %v424 = vsel %vm421, %v422, %v423
        %v426 = vadd.f32 %v412, %v424
        %v427 = vlaneseq
        %v428 = vshrl.u32 %v427, 7
        %v429 = vsub.s32 2, %v428
        %v430 = vrot.slane %v393, %v429
        %v431 = vmul.f32 %v399, %v430
        %v432 = vmul.f32 %v396, %v430
        %vm435 = vcmask 1045504
        %v436 = vrot.slane %v431, 2
        %v437 = vrot.slane %v432, 2
        %v438 = vsel %vm435, %v436, %v437
        %v440 = vadd.f32 %v426, %v438
        %v441 = vlaneseq
        %v442 = vshrl.u32 %v441, 7
        %v443 = vsub.s32 3, %v442
        %v444 = vrot.slane %v393, %v443
        %v445 = vmul.f32 %v399, %v444
        %v446 = vmul.f32 %v396, %v444
        %vm449 = vcmask 1044480
        %v450 = vrot.slane %v445, 3
        %v451 = vrot.slane %v446, 3
        %v452 = vsel %vm449, %v450, %v451
        %v454 = vadd.f32 %v440, %v452
        %v455 = vxor.u32 %v454, 2147483648
        %v456 = vmul.f32 %v455, 1.442695
        %v457 = vpow.pop %v456
        %v458 = vadd.f32 %v457, 1.0
        %v459 = vrcp.pop %v458
        %v460 = vmul.f32 1.0, %v459
        %v461 = vmul.f32 %v454, %v460
        %vm462 = vcmask 261125
        %463 = vst.msk [vmem:[#allocation3 - $0x5] sm:$0xe0] %vm462, %v392
        %v464 = vpack.c.bf16 %v461, %v461
        %v465 = vld [vmem:[%s3] sm:$0xff]
        %v466 = vld [vmem:[%s3 + $0x8] sm:$0xff]
        %v467 = vld [vmem:[%s3 + $0x10] sm:$0xff]
        %v468 = vld [vmem:[%s3 + $0x18] sm:$0xff]
        %v469 = vld [vmem:[%s3 + $0x20] sm:$0xff]
        %v470 = vld [vmem:[%s3 + $0x28] sm:$0xff]
        %v471 = vld [vmem:[%s3 + $0x30] sm:$0xff]
        %v472 = vld [vmem:[%s3 + $0x38] sm:$0xff]
        %v473 = vld [vmem:[#allocation4] sm:$0xf]
        %v475 = vlaneseq
        %v476 = vshrl.u32 %v475, 7
        %v477 = vsub.s32 0, %v476
        %v478 = vrot.slane %v473, %v477
        %v479 = vlaneseq
        %v480 = vshrl.u32 %v479, 7
        %v481 = vsub.s32 1, %v480
        %v482 = vrot.slane %v473, %v481
        %v483 = vlaneseq
        %v484 = vshrl.u32 %v483, 7
        %v485 = vsub.s32 2, %v484
        %v486 = vrot.slane %v473, %v485
        %v487 = vlaneseq
        %v488 = vshrl.u32 %v487, 7
        %v489 = vsub.s32 3, %v488
        %v490 = vrot.slane %v473, %v489
        %v503 = vunpack.c.l.b16 %v465
        %v504 = vunpack.c.h.b16 %v465
        %v505 = vunpack.c.l.b16 %v466
        %v506 = vunpack.c.h.b16 %v466
        %v507 = vunpack.c.l.b16 %v467
        %v508 = vunpack.c.h.b16 %v467
        %v509 = vunpack.c.l.b16 %v468
        %v510 = vunpack.c.h.b16 %v468
        %v511 = vunpack.c.l.b16 %v469
        %v512 = vunpack.c.h.b16 %v469
        %v513 = vunpack.c.l.b16 %v470
        %v514 = vunpack.c.h.b16 %v470
        %v515 = vunpack.c.l.b16 %v471
        %v516 = vunpack.c.h.b16 %v471
        %v517 = vunpack.c.l.b16 %v472
        %v518 = vunpack.c.h.b16 %v472
        %v519 = vpack.c.b16 %v507, %v503
        %v520 = vpack.c.b16 %v508, %v504
        %v521 = vpack.c.b16 %v509, %v505
        %v522 = vpack.c.b16 %v510, %v506
        %v523 = vpack.c.b16 %v515, %v511
        %v524 = vpack.c.b16 %v516, %v512
        %v525 = vpack.c.b16 %v517, %v513
        %v526 = vpack.c.b16 %v518, %v514
        %vm535 = vcmask 261120
        %v537 = vsel %vm535, %v464, 0
        %539 = vmatprep.subr.bf16.mxu0 %v520
        %540 = vmatpush1.bf16.msra.mxu0 %v519
        %541 = vmatprep.subr.bf16.mxu0 %v524
        %542 = vmatpush1.bf16.msra.mxu0 %v523
        %543 = vmatprep.subr.bf16.mxu0 0
        %544 = vmatpush1.bf16.msra.mxu0 0
        %545 = vmatprep.subr.bf16.mxu0 0
        %546 = vmatpush1.bf16.msra.mxu0 0
        %547 = vmatprep.subr.bf16.mxu0 0
        %548 = vmatpush1.bf16.msra.mxu0 0
        %549 = vmatprep.subr.bf16.mxu0 0
        %550 = vmatpush1.bf16.msra.mxu0 0
        %551 = vmatprep.subr.bf16.mxu0 0
        %552 = vmatpush1.bf16.msra.mxu0 0
        %553 = vmatprep.subr.bf16.mxu0 0
        %554 = vmatpush1.bf16.msra.mxu0 0
        %555 = vmatprep.subr.bf16.mxu0 0
        %556 = vmatpush1.bf16.msra.mxu0 0
        %557 = vmatprep.subr.bf16.mxu0 0
        %558 = vmatpush1.bf16.msra.mxu0 0
        %559 = vmatprep.subr.bf16.mxu0 0
        %560 = vmatpush1.bf16.msra.mxu0 0
        %561 = vmatprep.subr.bf16.mxu0 0
        %562 = vmatpush1.bf16.msra.mxu0 0
        %563 = vmatprep.subr.bf16.mxu0 0
        %564 = vmatpush1.bf16.msra.mxu0 0
        %565 = vmatprep.subr.bf16.mxu0 0
        %566 = vmatpush1.bf16.msra.mxu0 0
        %567 = vmatprep.subr.bf16.mxu0 0
        %568 = vmatpush1.bf16.msra.mxu0 0
        %569 = vmatprep.subr.bf16.mxu0 0
        %570 = vmatpush1.bf16.msra.mxu0 0
        %571 = vmatprep.mubr.bf16.mxu0 0
        %572 = vmatmul.mubr.bf16.gmra.mrb[0].mxu0 %v537
        %v573 = vpop.f32.mrb[0].mxu0
        %v574 = vadd.f32 %v478, %v573
        %v575 = vpop.f32.mrb[0].mxu0
        %v576 = vadd.f32 %v482, %v575
        %v577 = vpop.f32.mrb[0].mxu0
        %v578 = vpop.f32.mrb[0].mxu0
        %579 = vdwg.mxu0
        %580 = vmatprep.subr.bf16.mxu0 %v522
        %581 = vmatpush1.bf16.msra.mxu0 %v521
        %582 = vmatprep.subr.bf16.mxu0 %v526
        %583 = vmatpush1.bf16.msra.mxu0 %v525
        %584 = vmatprep.subr.bf16.mxu0 0
        %585 = vmatpush1.bf16.msra.mxu0 0
        %586 = vmatprep.subr.bf16.mxu0 0
        %587 = vmatpush1.bf16.msra.mxu0 0
        %588 = vmatprep.subr.bf16.mxu0 0
        %589 = vmatpush1.bf16.msra.mxu0 0
        %590 = vmatprep.subr.bf16.mxu0 0
        %591 = vmatpush1.bf16.msra.mxu0 0
        %592 = vmatprep.subr.bf16.mxu0 0
        %593 = vmatpush1.bf16.msra.mxu0 0
        %594 = vmatprep.subr.bf16.mxu0 0
        %595 = vmatpush1.bf16.msra.mxu0 0
        %596 = vmatprep.subr.bf16.mxu0 0
        %597 = vmatpush1.bf16.msra.mxu0 0
        %598 = vmatprep.subr.bf16.mxu0 0
        %599 = vmatpush1.bf16.msra.mxu0 0
        %600 = vmatprep.subr.bf16.mxu0 0
        %601 = vmatpush1.bf16.msra.mxu0 0
        %602 = vmatprep.subr.bf16.mxu0 0
        %603 = vmatpush1.bf16.msra.mxu0 0
        %604 = vmatprep.subr.bf16.mxu0 0
        %605 = vmatpush1.bf16.msra.mxu0 0
        %606 = vmatprep.subr.bf16.mxu0 0
        %607 = vmatpush1.bf16.msra.mxu0 0
        %608 = vmatprep.subr.bf16.mxu0 0
        %609 = vmatpush1.bf16.msra.mxu0 0
        %610 = vmatprep.subr.bf16.mxu0 0
        %611 = vmatpush1.bf16.msra.mxu0 0
        %612 = vmatprep.mubr.bf16.mxu0 0
        %613 = vmatmul.mubr.bf16.gmra.mrb[0].mxu0 %v537
        %v614 = vpop.f32.mrb[0].mxu0
        %v615 = vadd.f32 %v486, %v614
        %v616 = vpop.f32.mrb[0].mxu0
        %v617 = vadd.f32 %v490, %v616
        %v618 = vpop.f32.mrb[0].mxu0
        %v619 = vpop.f32.mrb[0].mxu0
        %620 = vdwg.mxu0
        %v621 = vmax.f32 %v615, 0.0
        %vm622 = vcmp.ne.f32.partialorder %v615, %v615
        %v623 = vadd.f32 %v615, 0.0
        %v624 = vand.u32 2147483647, %v615
        %v625 = vsub.f32 0.0, %v624
        %v626 = vmul.f32 %v625, 1.442695
        %v627 = vpow.pop %v626
        %v628 = vadd.f32 %v627, 1.0
        %v629 = vlog2.pop %v628
        %v630 = vmul.f32 %v629, 0.6931472
        %v631 = vmul.f32 -0.5, %v627
        %v632 = vadd.f32 %v631, 1.0
        %v633 = vmul.f32 %v632, %v627
        %v634 = vand.u32 2147483647, %v627
        %vm635 = vcmp.lt.f32.partialorder %v634, 0.0004427343
        %v636 = vsel %vm635, %v633, %v630
        %v637 = vadd.f32 %v621, %v636
        %v638 = vsel %vm622, %v623, %v637
        %v639 = vxor.u32 %v617, 2147483648
        %v640 = vmul.f32 %v639, 1.442695
        %v641 = vpow.pop %v640
        %v642 = vadd.f32 %v641, 1.0
        %v643 = vrcp.pop %v642
        %v644 = vmul.f32 1.0, %v643
        %v645 = vpack.c.bf16 %v392, %v392
        %v646 = vld [vmem:[#allocation7] sm:$0xf]
        %v647 = vld [vmem:[#allocation7 + $0x4] sm:$0xf]
        %v648 = vld [vmem:[#allocation7 + $0x8] sm:$0xf]
        %v649 = vld [vmem:[#allocation7 + $0xc] sm:$0xf]
        %v654 = vunpack.c.l.b16 %v646
        %v655 = vunpack.c.l.b16 %v647
        %v656 = vunpack.c.l.b16 %v648
        %v657 = vunpack.c.l.b16 %v649
        %v658 = vpack.c.b16 %v655, %v654
        %v659 = vpack.c.b16 %v657, %v656
        %v663 = vsel %vm535, %v645, 0
        %665 = vmatprep.subr.bf16.mxu0 0
        %666 = vmatpush1.bf16.msra.mxu0 %v658
        %667 = vmatprep.subr.bf16.mxu0 0
        %668 = vmatpush1.bf16.msra.mxu0 %v659
        %669 = vmatprep.subr.bf16.mxu0 0
        %670 = vmatpush1.bf16.msra.mxu0 0
        %671 = vmatprep.subr.bf16.mxu0 0
        %672 = vmatpush1.bf16.msra.mxu0 0
        %673 = vmatprep.subr.bf16.mxu0 0
        %674 = vmatpush1.bf16.msra.mxu0 0
        %675 = vmatprep.subr.bf16.mxu0 0
        %676 = vmatpush1.bf16.msra.mxu0 0
        %677 = vmatprep.subr.bf16.mxu0 0
        %678 = vmatpush1.bf16.msra.mxu0 0
        %679 = vmatprep.subr.bf16.mxu0 0
        %680 = vmatpush1.bf16.msra.mxu0 0
        %681 = vmatprep.subr.bf16.mxu0 0
        %682 = vmatpush1.bf16.msra.mxu0 0
        %683 = vmatprep.subr.bf16.mxu0 0
        %684 = vmatpush1.bf16.msra.mxu0 0
        %685 = vmatprep.subr.bf16.mxu0 0
        %686 = vmatpush1.bf16.msra.mxu0 0
        %687 = vmatprep.subr.bf16.mxu0 0
        %688 = vmatpush1.bf16.msra.mxu0 0
        %689 = vmatprep.subr.bf16.mxu0 0
        %690 = vmatpush1.bf16.msra.mxu0 0
        %691 = vmatprep.subr.bf16.mxu0 0
        %692 = vmatpush1.bf16.msra.mxu0 0
        %693 = vmatprep.subr.bf16.mxu0 0
        %694 = vmatpush1.bf16.msra.mxu0 0
        %695 = vmatprep.subr.bf16.mxu0 0
        %696 = vmatpush1.bf16.msra.mxu0 0
        %697 = vmatprep.mubr.bf16.mxu0 0
        %698 = vmatmul.mubr.bf16.gmra.mrb[0].mxu0 %v663
        %v699 = vpop.f32.mrb[0].mxu0
        %v700 = vadd.f32 0.0, %v699
        %v701 = vpop.f32.mrb[0].mxu0
        %v702 = vpop.f32.mrb[0].mxu0
        %v703 = vpop.f32.mrb[0].mxu0
        %704 = vdwg.mxu0
        %v705 = vpack.c.bf16 %v700, %v700
        %v706 = vld [vmem:[%s6] sm:$0xf]
        %v707 = vld [vmem:[%s6 + $0x4] sm:$0xf]
        %v708 = vld [vmem:[%s6 + $0x8] sm:$0xf]
        %v709 = vld [vmem:[%s6 + $0xc] sm:$0xf]
        %v710 = vld [vmem:[%s6 + $0x10] sm:$0xf]
        %v711 = vld [vmem:[%s6 + $0x14] sm:$0xf]
        %v712 = vld [vmem:[%s6 + $0x18] sm:$0xf]
        %v713 = vld [vmem:[%s6 + $0x1c] sm:$0xf]
        %v714 = vld [vmem:[%s6 + $0x20] sm:$0xf]
        %v715 = vld [vmem:[%s6 + $0x24] sm:$0xf]
        %v716 = vld [vmem:[%s6 + $0x28] sm:$0xf]
        %v717 = vld [vmem:[%s6 + $0x2c] sm:$0xf]
        %v718 = vld [vmem:[%s6 + $0x30] sm:$0xf]
        %v719 = vld [vmem:[%s6 + $0x34] sm:$0xf]
        %v720 = vld [vmem:[%s6 + $0x38] sm:$0xf]
        %v721 = vld [vmem:[%s6 + $0x3c] sm:$0xf]
        %v722 = vld [vmem:[%s7] sm:$0x1]
        %v724 = vlaneseq
        %v725 = vshrl.u32 %v724, 7
        %v726 = vsub.s32 0, %v725
        %v727 = vrot.slane %v722, %v726
        %v745 = vunpack.c.l.b16 %v706
        %v746 = vunpack.c.l.b16 %v707
        %v747 = vunpack.c.l.b16 %v708
        %v748 = vunpack.c.l.b16 %v709
        %v749 = vunpack.c.l.b16 %v710
        %v750 = vunpack.c.l.b16 %v711
        %v751 = vunpack.c.l.b16 %v712
        %v752 = vunpack.c.l.b16 %v713
        %v753 = vunpack.c.l.b16 %v714
        %v754 = vunpack.c.l.b16 %v715
        %v755 = vunpack.c.l.b16 %v716
        %v756 = vunpack.c.l.b16 %v717
        %v757 = vunpack.c.l.b16 %v718
        %v758 = vunpack.c.l.b16 %v719
        %v759 = vunpack.c.l.b16 %v720
        %v760 = vunpack.c.l.b16 %v721
        %v761 = vpack.c.b16 %v746, %v745
        %v762 = vpack.c.b16 %v748, %v747
        %v763 = vpack.c.b16 %v750, %v749
        %v764 = vpack.c.b16 %v752, %v751
        %v765 = vpack.c.b16 %v754, %v753
        %v766 = vpack.c.b16 %v756, %v755
        %v767 = vpack.c.b16 %v758, %v757
        %v768 = vpack.c.b16 %v760, %v759
        %777 = vmatprep.subr.bf16.mxu0 0
        %778 = vmatpush1.bf16.msra.mxu0 %v761
        %779 = vmatprep.subr.bf16.mxu0 0
        %780 = vmatpush1.bf16.msra.mxu0 %v762
        %781 = vmatprep.subr.bf16.mxu0 0
        %782 = vmatpush1.bf16.msra.mxu0 %v763
        %783 = vmatprep.subr.bf16.mxu0 0
        %784 = vmatpush1.bf16.msra.mxu0 %v764
        %785 = vmatprep.subr.bf16.mxu0 0
        %786 = vmatpush1.bf16.msra.mxu0 %v765
        %787 = vmatprep.subr.bf16.mxu0 0
        %788 = vmatpush1.bf16.msra.mxu0 %v766
        %789 = vmatprep.subr.bf16.mxu0 0
        %790 = vmatpush1.bf16.msra.mxu0 %v767
        %791 = vmatprep.subr.bf16.mxu0 0
        %792 = vmatpush1.bf16.msra.mxu0 %v768
        %793 = vmatprep.subr.bf16.mxu0 0
        %794 = vmatpush1.bf16.msra.mxu0 0
        %795 = vmatprep.subr.bf16.mxu0 0
        %796 = vmatpush1.bf16.msra.mxu0 0
        %797 = vmatprep.subr.bf16.mxu0 0
        %798 = vmatpush1.bf16.msra.mxu0 0
        %799 = vmatprep.subr.bf16.mxu0 0
        %800 = vmatpush1.bf16.msra.mxu0 0
        %801 = vmatprep.subr.bf16.mxu0 0
        %802 = vmatpush1.bf16.msra.mxu0 0
        %803 = vmatprep.subr.bf16.mxu0 0
        %804 = vmatpush1.bf16.msra.mxu0 0
        %805 = vmatprep.subr.bf16.mxu0 0
        %806 = vmatpush1.bf16.msra.mxu0 0
        %807 = vmatprep.subr.bf16.mxu0 0
        %808 = vmatpush1.bf16.msra.mxu0 0
        %809 = vmatprep.mubr.bf16.mxu0 0
        %810 = vmatmul.mubr.bf16.gmra.mrb[0].mxu0 %v705
        %v811 = vpop.f32.mrb[0].mxu0
        %v812 = vadd.f32 %v727, %v811
        %v813 = vpop.f32.mrb[0].mxu0
        %v814 = vpop.f32.mrb[0].mxu0
        %v815 = vpop.f32.mrb[0].mxu0
        %816 = vdwg.mxu0
        %v817 = vxor.u32 %v812, 2147483648
        %v818 = vmul.f32 %v817, 1.442695
        %v819 = vpow.pop %v818
        %v820 = vadd.f32 %v819, 1.0
        %v821 = vrcp.pop %v820
        %v822 = vmul.f32 1.0, %v821
        %v823 = vmul.f32 %v822, %v392
        %v824 = vmax.f32 %v638, 1e-30
        %v825 = vlog2.pop %v824
        %v826 = vmul.f32 %v825, 0.6931472
        %v827 = vmul.f32 %v644, %v826
        %v828 = vmul.f32 %v827, 1.442695
        %v829 = vpow.pop %v828
        %v830 = vsub.f32 0.0, %v638
        %v831 = vmul.f32 %v830, %v644
        %v832 = vmul.f32 %v576, %v576
        %833 = vadd.xlane.f32.xlu0 %v832
        %v834 = vpop.xlane.xlu0 %833
        %v835 = vmax.f32 %v834, 1e-24
        %v836 = vrsqrt.pop %v835
        %v837 = vmul.f32 %v576, %v836
        %v838 = vmul.f32 %v574, 0.125
        %v839 = vmul.f32 %v837, %v829
        %v840 = vlaneseq
        %v841 = vshrl.u32 %v840, 7
        %v842 = vlaneseq
        %v843 = vand.u32 %v842, 127
        %vm844 = vcmp.ge.s32.totalorder %v841, %v843
        %v845 = vsel %vm844, 1, 0
        %v846 = vcvt.s32.f32 %v845
        %vm847 = vcmask 64512
        %v849 = vsel %vm847, %v846, 0
        %851 = vmatprep.subr.mxu0 0.0
        %852 = vmatpush1.msra.mxu0 %v831
        %853 = vmatprep.subr.mxu0 0.0
        %854 = vmatpush1.msra.mxu0 0.0
        %855 = vmatprep.subr.mxu0 0.0
        %856 = vmatpush1.msra.mxu0 0.0
        %857 = vmatprep.subr.mxu0 0.0
        %858 = vmatpush1.msra.mxu0 0.0
        %859 = vmatprep.subr.mxu0 0.0
        %860 = vmatpush1.msra.mxu0 0.0
        %861 = vmatprep.subr.mxu0 0.0
        %862 = vmatpush1.msra.mxu0 0.0
        %863 = vmatprep.subr.mxu0 0.0
        %864 = vmatpush1.msra.mxu0 0.0
        %865 = vmatprep.subr.mxu0 0.0
        %866 = vmatpush1.msra.mxu0 0.0
        %867 = vmatprep.subr.mxu0 0.0
        %868 = vmatpush1.msra.mxu0 0.0
        %869 = vmatprep.subr.mxu0 0.0
        %870 = vmatpush1.msra.mxu0 0.0
        %871 = vmatprep.subr.mxu0 0.0
        %872 = vmatpush1.msra.mxu0 0.0
        %873 = vmatprep.subr.mxu0 0.0
        %874 = vmatpush1.msra.mxu0 0.0
        %875 = vmatprep.subr.mxu0 0.0
        %876 = vmatpush1.msra.mxu0 0.0
        %877 = vmatprep.subr.mxu0 0.0
        %878 = vmatpush1.msra.mxu0 0.0
        %879 = vmatprep.subr.mxu0 0.0
        %880 = vmatpush1.msra.mxu0 0.0
        %881 = vmatprep.subr.mxu0 0.0
        %882 = vmatpush1.msra.mxu0 0.0
        %883 = vmatprep.subr.mxu0 0.0
        %884 = vmatpush1.msra.mxu0 0.0
        %885 = vmatprep.subr.mxu0 0.0
        %886 = vmatpush1.msra.mxu0 0.0
        %887 = vmatprep.subr.mxu0 0.0
        %888 = vmatpush1.msra.mxu0 0.0
        %889 = vmatprep.subr.mxu0 0.0
        %890 = vmatpush1.msra.mxu0 0.0
        %891 = vmatprep.subr.mxu0 0.0
        %892 = vmatpush1.msra.mxu0 0.0
        %893 = vmatprep.subr.mxu0 0.0
        %894 = vmatpush1.msra.mxu0 0.0
        %895 = vmatprep.subr.mxu0 0.0
        %896 = vmatpush1.msra.mxu0 0.0
        %897 = vmatprep.subr.mxu0 0.0
        %898 = vmatpush1.msra.mxu0 0.0
        %899 = vmatprep.subr.mxu0 0.0
        %900 = vmatpush1.msra.mxu0 0.0
        %901 = vmatprep.subr.mxu0 0.0
        %902 = vmatpush1.msra.mxu0 0.0
        %903 = vmatprep.subr.mxu0 0.0
        %904 = vmatpush1.msra.mxu0 0.0
        %905 = vmatprep.subr.mxu0 0.0
        %906 = vmatpush1.msra.mxu0 0.0
        %907 = vmatprep.subr.mxu0 0.0
        %908 = vmatpush1.msra.mxu0 0.0
        %909 = vmatprep.subr.mxu0 0.0
        %910 = vmatpush1.msra.mxu0 0.0
        %911 = vmatprep.subr.mxu0 0.0
        %912 = vmatpush1.msra.mxu0 0.0
        %913 = vmatprep.subr.mxu0 0.0
        %914 = vmatpush1.msra.mxu0 0.0
        %915 = vmatprep.mubr.f32.mxu0 0.0
        %916 = vmatmul.mubr.f32.gmra.mrb[0].mxu0 %v849
        %v917 = vpop.f32.mrb[0].mxu0
        %v918 = vadd.f32 0.0, %v917
        %v919 = vpop.f32.mrb[0].mxu0
        %920 = vdwg.mxu0
        %v921 = vld [vmem:[%s8] sm:$0x1]
        %v922 = vld [vmem:[#allocation2] sm:$0xff]
        %v923 = vld [vmem:[#allocation2 + $0x8] sm:$0xff]
        %v924 = vld [vmem:[#allocation2 + $0x10] sm:$0xff]
        %v925 = vld [vmem:[#allocation2 + $0x18] sm:$0xff]
        %v926 = vmax.f32 %v918, -40.0
        %v927 = vmul.f32 %v926, 1.442695
        %v928 = vpow.pop %v927
        %v929 = vmul.f32 %v838, %v928
        %v930 = vpack.c.bf16 %v929, %v929
        %v931 = vsub.f32 0.0, %v926
        %v932 = vmul.f32 %v931, 1.442695
        %v933 = vpow.pop %v932
        %v934 = vmul.f32 %v839, %v933
        %v935 = vpack.c.bf16 %v934, %v934
        %v936 = vpack.c.bf16 %v823, %v823
        %v937 = vpack.c.bf16 %v923, %v922
        %v938 = vpack.c.bf16 %v925, %v924
        %939 = vmatprep.subr.bf16.mxu0 0
        %940 = vmatpush1.bf16.xpose.msra.mxu0 %v935
        %941 = vmatprep.subr.bf16.mxu0 0
        %942 = vmatpush1.bf16.xpose.msra.mxu0 0
        %943 = vmatprep.subr.bf16.mxu0 0
        %944 = vmatpush1.bf16.xpose.msra.mxu0 0
        %945 = vmatprep.subr.bf16.mxu0 0
        %946 = vmatpush1.bf16.xpose.msra.mxu0 0
        %947 = vmatprep.subr.bf16.mxu0 0
        %948 = vmatpush1.bf16.xpose.msra.mxu0 0
        %949 = vmatprep.subr.bf16.mxu0 0
        %950 = vmatpush1.bf16.xpose.msra.mxu0 0
        %951 = vmatprep.subr.bf16.mxu0 0
        %952 = vmatpush1.bf16.xpose.msra.mxu0 0
        %953 = vmatprep.subr.bf16.mxu0 0
        %954 = vmatpush1.bf16.xpose.msra.mxu0 0
        %955 = vmatprep.subr.bf16.mxu0 0
        %956 = vmatpush1.bf16.xpose.msra.mxu0 0
        %957 = vmatprep.subr.bf16.mxu0 0
        %958 = vmatpush1.bf16.xpose.msra.mxu0 0
        %959 = vmatprep.subr.bf16.mxu0 0
        %960 = vmatpush1.bf16.xpose.msra.mxu0 0
        %961 = vmatprep.subr.bf16.mxu0 0
        %962 = vmatpush1.bf16.xpose.msra.mxu0 0
        %963 = vmatprep.subr.bf16.mxu0 0
        %964 = vmatpush1.bf16.xpose.msra.mxu0 0
        %965 = vmatprep.subr.bf16.mxu0 0
        %966 = vmatpush1.bf16.xpose.msra.mxu0 0
        %967 = vmatprep.subr.bf16.mxu0 0
        %968 = vmatpush1.bf16.xpose.msra.mxu0 0
        %969 = vmatprep.subr.bf16.mxu0 0
        %970 = vmatpush1.bf16.xpose.msra.mxu0 0
        %971 = vmatprep.mubr.bf16.mxu0 0
        %972 = vmatmul.mubr.bf16.gmra.mrb[0].mxu0 %v930
        %v973 = vpop.f32.mrb[0].mxu0
        %v974 = vadd.f32 0.0, %v973
        %v975 = vpop.f32.mrb[0].mxu0
        %v976 = vpop.f32.mrb[0].mxu0
        %v977 = vpop.f32.mrb[0].mxu0
        %978 = vdwg.mxu0
        %v979 = vsel %vm844, %v974, 0.0
        %v980 = vpack.c.bf16 %v979, %v979
        %v982 = vsel %vm847, %v980, 0
        %vm984 = vcmask 1043456
        %v986 = vsel %vm984, %v936, 0
        %988 = vmatprep.subr.bf16.mxu0 0
        %989 = vmatpush1.bf16.msra.mxu0 %v986
        %990 = vmatprep.subr.bf16.mxu0 0
        %991 = vmatpush1.bf16.msra.mxu0 0
        %992 = vmatprep.subr.bf16.mxu0 0
        %993 = vmatpush1.bf16.msra.mxu0 0
        %994 = vmatprep.subr.bf16.mxu0 0
        %995 = vmatpush1.bf16.msra.mxu0 0
        %996 = vmatprep.subr.bf16.mxu0 0
        %997 = vmatpush1.bf16.msra.mxu0 0
        %998 = vmatprep.subr.bf16.mxu0 0
        %999 = vmatpush1.bf16.msra.mxu0 0
        %1000 = vmatprep.subr.bf16.mxu0 0
        %1001 = vmatpush1.bf16.msra.mxu0 0
        %1002 = vmatprep.subr.bf16.mxu0 0
        %1003 = vmatpush1.bf16.msra.mxu0 0
        %1004 = vmatprep.subr.bf16.mxu0 0
        %1005 = vmatpush1.bf16.msra.mxu0 0
        %1006 = vmatprep.subr.bf16.mxu0 0
        %1007 = vmatpush1.bf16.msra.mxu0 0
        %1008 = vmatprep.subr.bf16.mxu0 0
        %1009 = vmatpush1.bf16.msra.mxu0 0
        %1010 = vmatprep.subr.bf16.mxu0 0
        %1011 = vmatpush1.bf16.msra.mxu0 0
        %1012 = vmatprep.subr.bf16.mxu0 0
        %1013 = vmatpush1.bf16.msra.mxu0 0
        %1014 = vmatprep.subr.bf16.mxu0 0
        %1015 = vmatpush1.bf16.msra.mxu0 0
        %1016 = vmatprep.subr.bf16.mxu0 0
        %1017 = vmatpush1.bf16.msra.mxu0 0
        %1018 = vmatprep.subr.bf16.mxu0 0
        %1019 = vmatpush1.bf16.msra.mxu0 0
        %1020 = vmatprep.mubr.bf16.mxu0 0
        %1021 = vmatmul.mubr.bf16.gmra.mrb[0].mxu0 %v982
        %v1022 = vpop.f32.mrb[0].mxu0
        %v1023 = vadd.f32 0.0, %v1022
        %v1024 = vpop.f32.mrb[0].mxu0
        %v1025 = vpop.f32.mrb[0].mxu0
        %v1026 = vpop.f32.mrb[0].mxu0
        %1027 = vdwg.mxu0
        %1028 = vmatprep.subr.bf16.mxu0 0
        %1029 = vmatpush1.bf16.xpose.msra.mxu0 %v937
        %1030 = vmatprep.subr.bf16.mxu0 0
        %1031 = vmatpush1.bf16.xpose.msra.mxu0 %v938
        %1032 = vmatprep.subr.bf16.mxu0 0
        %1033 = vmatpush1.bf16.xpose.msra.mxu0 0
        %1034 = vmatprep.subr.bf16.mxu0 0
        %1035 = vmatpush1.bf16.xpose.msra.mxu0 0
        %1036 = vmatprep.subr.bf16.mxu0 0
        %1037 = vmatpush1.bf16.xpose.msra.mxu0 0
        %1038 = vmatprep.subr.bf16.mxu0 0
        %1039 = vmatpush1.bf16.xpose.msra.mxu0 0
        %1040 = vmatprep.subr.bf16.mxu0 0
        %1041 = vmatpush1.bf16.xpose.msra.mxu0 0
        %1042 = vmatprep.subr.bf16.mxu0 0
        %1043 = vmatpush1.bf16.xpose.msra.mxu0 0
        %1044 = vmatprep.subr.bf16.mxu0 0
        %1045 = vmatpush1.bf16.xpose.msra.mxu0 0
        %1046 = vmatprep.subr.bf16.mxu0 0
        %1047 = vmatpush1.bf16.xpose.msra.mxu0 0
        %1048 = vmatprep.subr.bf16.mxu0 0
        %1049 = vmatpush1.bf16.xpose.msra.mxu0 0
        %1050 = vmatprep.subr.bf16.mxu0 0
        %1051 = vmatpush1.bf16.xpose.msra.mxu0 0
        %1052 = vmatprep.subr.bf16.mxu0 0
        %1053 = vmatpush1.bf16.xpose.msra.mxu0 0
        %1054 = vmatprep.subr.bf16.mxu0 0
        %1055 = vmatpush1.bf16.xpose.msra.mxu0 0
        %1056 = vmatprep.subr.bf16.mxu0 0
        %1057 = vmatpush1.bf16.xpose.msra.mxu0 0
        %1058 = vmatprep.subr.bf16.mxu0 0
        %1059 = vmatpush1.bf16.xpose.msra.mxu0 0
        %1060 = vmatprep.mubr.bf16.mxu0 0
        %1061 = vmatmul.mubr.bf16.gmra.mrb[0].mxu0 %v930
        %v1062 = vpop.f32.mrb[0].mxu0
        %v1063 = vadd.f32 %v1023, %v1062
        %v1064 = vpop.f32.mrb[0].mxu0
        %v1065 = vpop.f32.mrb[0].mxu0
        %v1066 = vpop.f32.mrb[0].mxu0
        %1067 = vdwg.mxu0
        %v1068 = vlaneseq
        %v1069 = vshrl.u32 %v1068, 7
        %v1070 = vsub.s32 7, %v1069
        %v1071 = vrot.slane %v918, %v1070
        %v1072 = vsub.f32 %v1071, %v918
        %v1073 = vmul.f32 %v1072, 1.442695
        %v1074 = vpow.pop %v1073
        %v1075 = vmul.f32 %v839, %v1074
        %v1076 = vpack.c.bf16 %v1075, %v1075
        %v1077 = vmul.f32 %v918, 1.442695
        %v1078 = vpow.pop %v1077
        %v1079 = vlaneseq
        %v1080 = vshrl.u32 %v1079, 7
        %v1081 = vsub.s32 7, %v1080
        %v1082 = vrot.slane %v1078, %v1081
        %v1083 = vmul.f32 %v922, %v1082
        %v1084 = vmul.f32 %v923, %v1082
        %v1085 = vmul.f32 %v924, %v1082
        %v1086 = vmul.f32 %v925, %v1082
        %1087 = vxpose.xlu0.c.b16.start [1/8] %v936, 128
        %1088 = vxpose.xlu0.c.b16.cont [2/8] 0, 128
        %1089 = vxpose.xlu0.c.b16.cont [3/8] 0, 128
        %1090 = vxpose.xlu0.c.b16.cont [4/8] 0, 128
        %1091 = vxpose.xlu0.c.b16.cont [5/8] 0, 128
        %1092 = vxpose.xlu0.c.b16.cont [6/8] 0, 128
        %1093 = vxpose.xlu0.c.b16.cont [7/8] 0, 128
        %1094 = vxpose.xlu0.c.b16.end [8/8] 0, 128
        %v1095 = vpop.trf.xlu0
        %v1096 = vpop.trf.xlu0
        %v1097 = vpop.trf.xlu0
        %v1098 = vpop.trf.xlu0
        %v1099 = vpop.trf.xlu0
        %v1100 = vpop.trf.xlu0
        %v1101 = vpop.trf.xlu0
        %v1102 = vpop.trf.xlu0
        %v1104 = vsel %vm847, %v1095, 0
        %v1107 = vsel %vm847, %v1096, 0
        %v1110 = vsel %vm984, %v1076, 0
        %1112 = vmatprep.subr.bf16.mxu0 0
        %1113 = vmatpush1.bf16.msra.mxu0 %v1110
        %1114 = vmatprep.subr.bf16.mxu0 0
        %1115 = vmatpush1.bf16.msra.mxu0 0
        %1116 = vmatprep.subr.bf16.mxu0 0
        %1117 = vmatpush1.bf16.msra.mxu0 0
        %1118 = vmatprep.subr.bf16.mxu0 0
        %1119 = vmatpush1.bf16.msra.mxu0 0
        %1120 = vmatprep.subr.bf16.mxu0 0
        %1121 = vmatpush1.bf16.msra.mxu0 0
        %1122 = vmatprep.subr.bf16.mxu0 0
        %1123 = vmatpush1.bf16.msra.mxu0 0
        %1124 = vmatprep.subr.bf16.mxu0 0
        %1125 = vmatpush1.bf16.msra.mxu0 0
        %1126 = vmatprep.subr.bf16.mxu0 0
        %1127 = vmatpush1.bf16.msra.mxu0 0
        %1128 = vmatprep.subr.bf16.mxu0 0
        %1129 = vmatpush1.bf16.msra.mxu0 0
        %1130 = vmatprep.subr.bf16.mxu0 0
        %1131 = vmatpush1.bf16.msra.mxu0 0
        %1132 = vmatprep.subr.bf16.mxu0 0
        %1133 = vmatpush1.bf16.msra.mxu0 0
        %1134 = vmatprep.subr.bf16.mxu0 0
        %1135 = vmatpush1.bf16.msra.mxu0 0
        %1136 = vmatprep.subr.bf16.mxu0 0
        %1137 = vmatpush1.bf16.msra.mxu0 0
        %1138 = vmatprep.subr.bf16.mxu0 0
        %1139 = vmatpush1.bf16.msra.mxu0 0
        %1140 = vmatprep.subr.bf16.mxu0 0
        %1141 = vmatpush1.bf16.msra.mxu0 0
        %1142 = vmatprep.subr.bf16.mxu0 0
        %1143 = vmatpush1.bf16.msra.mxu0 0
        %1144 = vmatprep.mubr.bf16.mxu0 0
        %1145 = vmatmul.mubr.bf16.gmra.mrb[0].mxu0 %v1104
        %v1146 = vpop.f32.mrb[0].mxu0
        %v1147 = vadd.f32 0.0, %v1146
        %v1148 = vpop.f32.mrb[0].mxu0
        %v1149 = vpop.f32.mrb[0].mxu0
        %v1150 = vadd.f32 0.0, %v1149
        %v1151 = vpop.f32.mrb[0].mxu0
        %1152 = vmatprep.mubr.bf16.mxu0 0
        %1153 = vmatmul.mubr.bf16.gmra.mrb[0].mxu0 %v1107
        %v1154 = vpop.f32.mrb[0].mxu0
        %v1155 = vadd.f32 0.0, %v1154
        %v1156 = vpop.f32.mrb[0].mxu0
        %v1157 = vpop.f32.mrb[0].mxu0
        %v1158 = vadd.f32 0.0, %v1157
        %v1159 = vpop.f32.mrb[0].mxu0
        %1160 = vdwg.mxu0
        %v1161 = vadd.f32 %v1083, %v1147
        %v1162 = vadd.f32 %v1084, %v1150
        %v1163 = vadd.f32 %v1085, %v1155
        %v1164 = vadd.f32 %v1086, %v1158
        %v1166 = vlaneseq
        %v1167 = vshrl.u32 %v1166, 7
        %v1168 = vsub.s32 0, %v1167
        %v1169 = vrot.slane %v921, %v1168
        %v1171 = vmul.f32 %v461, %v1169
        %v1172 = vadd.f32 %v1063, %v1171
        %1173 = vst.msk [vmem:[%s373] sm:$0xff] %vm535, %v1172
        %1174 = vst [vmem:[#allocation2] sm:$0xff] %v1161
        %1175 = vst [vmem:[#allocation2 + $0x8] sm:$0xff] %v1162
        %1176 = vst [vmem:[#allocation2 + $0x10] sm:$0xff] %v1163
        %1177 = vst [vmem:[#allocation2 + $0x18] sm:$0xff] %v1164
        %s1178 = sand.u32 %s243, 1
        %s1179 = scalar_lea.sflag [#allocation6], %s1178
        %s1180 = sand.u32 %s243, 1
        %s1181 = smul.addr %s1180, 8
        %s1182 = scalar_lea.vmem [#allocation9], %s1181
        // Predicated region
        $region69: #{tpu_custom_call.1} parent=55 // pred_check
          %p1183 = pneg %p253
        $region70: #{tpu_custom_call.1} parent=55 // pred_check_branch
          %1185 = sbr.rel (%p1183) target = $region72
        $region71: #{tpu_custom_call.1} parent=55 // pred_region
          %s1187 = ssub.s32 128, 128
          %1188 = vsyncadd %s1179, %s1187
          %s1189 = sadd.s32 %s30, %s29
          %s1190 = smul.addr %s1189, 128
          %s1191 = scalar_lea.hbm %s9, %s1190
          %s1193 = sshll.u32 %s1182, 4
          %s1194 = int_to_ptr.vmem [resolvable:$true] %s1193
          %1196 = dma.vmem_to_hbm [thread:$0]  %s1194, 128, %s1191, %s1179
        $region72: #{tpu_custom_call.1} parent=55 // pred_fallthru
          _
      $region56: #{tpu_custom_call.1} parent=5 // pred_fallthru
        _
      %p1197 = scmp.le.s32.totalorder 2, %s20
      // Predicated region
      $region73: #{tpu_custom_call.1} parent=5 // pred_check
        %p1198 = pneg %p1197
      $region74: #{tpu_custom_call.1} parent=5 // pred_check_branch
        %1200 = sbr.rel (%p1198) target = $region76
      $region75: #{tpu_custom_call.1} parent=5 // pred_region
        %s1201 = ssub.s32 %s20, 2
        // Predicated region
        $region77: #{tpu_custom_call.1} parent=75 // pred_check
          %p1202 = pneg %p259
        $region78: #{tpu_custom_call.1} parent=75 // pred_check_branch
          %1204 = sbr.rel (%p1202) target = $region80
        $region79: #{tpu_custom_call.1} parent=75 // pred_region
          %s1205 = sand.u32 %s244, 1
          %s1206 = scalar_lea.sflag [#allocation6], %s1205
          %s1207 = sand.u32 %s244, 1
          %s1208 = smul.addr %s1207, 8
          %s1209 = scalar_lea.vmem [#allocation9], %s1208
          %1210 = dma.done %s1206, 128
        $region80: #{tpu_custom_call.1} parent=75 // pred_fallthru
          _
      $region76: #{tpu_custom_call.1} parent=5 // pred_fallthru
        _
    $region6: #{tpu_custom_call.1} parent=1 // loop_footer
      %s24 = sadd.s32 1, %s20
    $region7: #{tpu_custom_call.1} parent=1 // loop_footer_branch
      %19 = sbr.rel target = $region3
    $region8: #{tpu_custom_call.1} parent=1 // loop_exit
      _
    %1211 = vsyncpa [#allocation5], 1
    %s1212 = scalar_lea.sflag [#allocation5], 1
    %1213 = vsyncpa %s1212, 1
    %1214 = vsyncpa [#allocation8], 1
    %1215 = vsyncpa [#allocation6], 1
    %s1216 = scalar_lea.sflag [#allocation6], 1
    %1217 = vsyncpa %s1216, 1

// kernel: tpu_custom_call.1
$region0: #{tpu_custom_call.1}
  #allocation0 [shape = 'u32[]', space=smem, size = 0x4, offset = 0x4, fixed_abs, tag = 'smem constant byte address 0x4 - core index']
  #allocation1 [shape = 'u32[144,128]{1,0:T(1,128)}', space=vmem, size = 0x12000, scoped, tag = 'internal scratch']
  #allocation2 [shape = 'f32[32,128]{1,0:T(8,128)}', space=vmem, size = 0x4000, scoped, tag = 'scratch operand']
  #allocation3 [shape = 'f32[3,32]{1,0:T(4,128)}', space=vmem, size = 0x800, scoped, tag = 'scratch operand']
  %s0 = inlined_call_operand.vmem [shape: f32[2,8,32], index: 0, kind: input, shape index: {}]
  %s1 = inlined_call_operand.vmem [shape: f32[4,32], index: 1, kind: input, shape index: {}]
  %s2 = inlined_call_operand.vmem [shape: f32[1,32], index: 2, kind: input, shape index: {}]
  %s3 = inlined_call_operand.vmem [shape: bf16[32,512], index: 3, kind: input, shape index: {}]
  %s4 = inlined_call_operand.hbm [shape: f32[1,512], index: 4, kind: input, shape index: {}]
  %s5 = inlined_call_operand.hbm [shape: bf16[32,128], index: 5, kind: input, shape index: {}]
  %s6 = inlined_call_operand.vmem [shape: bf16[128,32], index: 6, kind: input, shape index: {}]
  %s7 = inlined_call_operand.vmem [shape: f32[1,32], index: 7, kind: input, shape index: {}]
  %s8 = inlined_call_operand.vmem [shape: f32[1,32], index: 8, kind: input, shape index: {}]
  %s9 = inlined_call_operand.hbm [shape: f32[2,8,32], index: 9, kind: output, shape index: {}]
  %s10 = sld [smem:[#allocation0]]
  $region81: #{tpu_custom_call.1} parent=0
    _
  %s12 = ssub.s32 1, %s10
  %s13 = scalar_select 0, %s12, %s10
  $region1: #{tpu_custom_call.1} parent=0
    #allocation4 [shape = 'u8[2048]{0}', space=vmem, size = 0x800, scoped, tag = 'input window, operand 4, single buffered']
    #allocation5 [shape = 's32[2]{0}', space=sflag, size = 0x8, scoped, tag = 'scoped memory for tpu_custom_call.1']
    #allocation6 [shape = 's32[2]{0}', space=sflag, size = 0x8, scoped, tag = 'scoped memory for tpu_custom_call.1']
    #allocation7 [shape = 'u8[8192]{0}', space=vmem, size = 0x2000, scoped, tag = 'input window, operand 5, single buffered']
    #allocation8 [shape = 's32[1]{0}', space=sflag, size = 0x4, scoped, tag = 'scoped memory for tpu_custom_call.1']
    #allocation9 [shape = 'u8[8192]{0}', space=vmem, size = 0x2000, scoped, tag = 'output window, operand 0']
    %14 = vsyncpa [#allocation5], 0
    %15 = vsyncpa [#allocation8], 0
    %16 = vsyncpa [#allocation6], 0
    %s17 = scalar_lea.sflag [#allocation6], 1
    %18 = vsyncpa %s17, 0
    loop: start=0, step=1, limit=4
    $region2: #{tpu_custom_call.1} parent=1 // loop_pre_header
      _
    $region3: #{tpu_custom_call.1} parent=1 // loop_header
      %s20 = sphi 0, %s24
      %p21 = scmp.ge.s32.totalorder %s20, 4
      %s27 = sphi 0, %s39
      %s28 = sphi 0, %s35
      %s29 = sphi 0, %s27
      %s30 = sphi 0, %s28
      %s31 = sphi 0, %s29
      %s32 = sphi 0, %s30
      %s44 = sphi 0, %s46
      %s47 = sphi 0, %s44
      %s48 = sphi 0, %s47
      %s64 = sphi 0, %s48
      %s68 = sphi 0, %s68
      %s70 = sphi 0, %s68
      %s71 = sphi 0, %s70
      %s85 = sphi 0, %s71
      %s89 = sphi 0, %s89
      %s91 = sphi 0, %s89
      %s92 = sphi 0, %s91
      %s106 = sphi 0, %s92
      %s110 = sphi 0, %s110
      %s112 = sphi 0, %s110
      %s113 = sphi 0, %s112
      %s127 = sphi 0, %s113
      %s131 = sphi 0, %s131
      %s133 = sphi 0, %s131
      %s134 = sphi 0, %s133
      %s148 = sphi 0, %s134
      %s152 = sphi 0, %s152
      %s154 = sphi 0, %s152
      %s155 = sphi 0, %s154
      %s169 = sphi 0, %s155
      %s173 = sphi 0, %s173
      %s175 = sphi 0, %s173
      %s176 = sphi 0, %s175
      %s190 = sphi 0, %s176
      %s194 = sphi 0, %s194
      %s196 = sphi 0, %s194
      %s197 = sphi 0, %s196
      %s211 = sphi 0, %s197
      %s215 = sphi 0, %s215
      %s217 = sphi 0, %s215
      %s218 = sphi 0, %s217
      %s232 = sphi 0, %s218
      %s240 = sphi 0, %s242
      %s243 = sphi 0, %s240
      %s244 = sphi 0, %s243
      %s260 = sphi 0, %s244
    $region4: #{tpu_custom_call.1} parent=1 // loop_header_branch
      %23 = sbr.rel (%p21) target = $region8
    $region5: #{tpu_custom_call.1} parent=1 // loop_body
      %s25 = ssub.s32 %s20, 1
      %s26 = ssub.s32 %s20, 2
      %s33 = sadd.s32 1, %s28
      %p34 = scmp.ge.s32.totalorder %s33, 1
      %s35 = scalar_select %p34, 0, %s33
      %s36 = sadd.s32 1, %s27
      %s37 = scalar_select %p34, %s36, %s27
      %p38 = scmp.ge.s32.totalorder %s37, 2
      %s39 = scalar_select %p38, 0, %s37
      %s40 = ssub.s32 %s27, %s39
      %s41 = ssub.s32 %s28, %s35
      %s42 = sor.u32 %s40, %s41
      %p43 = scmp.eq.s32.totalorder %s42, 0
      %s45 = sadd.s32 %s44, 1
      %s46 = scalar_select %p43, %s44, %s45
      %p49 = pneg %p43
      %p50 = scmp.eq.s32.totalorder %s20, 1
      %p51 = por %p49, %p50
      %p52 = scmp.ne.s32.totalorder %s44, %s47
      %p53 = scmp.eq.s32.totalorder %s20, 0
      %p54 = por %p52, %p53
      %p55 = scmp.ne.s32.totalorder %s44, %s47
      %p56 = scmp.eq.s32.totalorder %s25, 1
      %p57 = por %p55, %p56
      %p58 = scmp.ne.s32.totalorder %s47, %s48
      %p59 = scmp.eq.s32.totalorder %s25, 0
      %p60 = por %p58, %p59
      %p61 = scmp.ne.s32.totalorder %s47, %s48
      %p62 = scmp.eq.s32.totalorder %s26, 1
      %p63 = por %p61, %p62
      %p65 = scmp.ne.s32.totalorder %s48, %s64
      %p66 = scmp.eq.s32.totalorder %s26, 0
      %p67 = por %p65, %p66
      %s69 = sadd.s32 %s68, 1
      %p72 = scmp.eq.s32.totalorder %s20, 1
      %p73 = scmp.ne.s32.totalorder %s68, %s70
      %p74 = scmp.eq.s32.totalorder %s20, 0
      %p75 = por %p73, %p74
      %p76 = scmp.ne.s32.totalorder %s68, %s70
      %p77 = scmp.eq.s32.totalorder %s25, 1
      %p78 = por %p76, %p77
      %p79 = scmp.ne.s32.totalorder %s70, %s71
      %p80 = scmp.eq.s32.totalorder %s25, 0
      %p81 = por %p79, %p80
      %p82 = scmp.ne.s32.totalorder %s70, %s71
      %p83 = scmp.eq.s32.totalorder %s26, 1
      %p84 = por %p82, %p83
      %p86 = scmp.ne.s32.totalorder %s71, %s85
      %p87 = scmp.eq.s32.totalorder %s26, 0
      %p88 = por %p86, %p87
      %s90 = sadd.s32 %s89, 1
      %p93 = scmp.eq.s32.totalorder %s20, 1
      %p94 = scmp.ne.s32.totalorder %s89, %s91
      %p95 = scmp.eq.s32.totalorder %s20, 0
      %p96 = por %p94, %p95
      %p97 = scmp.ne.s32.totalorder %s89, %s91
      %p98 = scmp.eq.s32.totalorder %s25, 1
      %p99 = por %p97, %p98
      %p100 = scmp.ne.s32.totalorder %s91, %s92
      %p101 = scmp.eq.s32.totalorder %s25, 0
      %p102 = por %p100, %p101
      %p103 = scmp.ne.s32.totalorder %s91, %s92
      %p104 = scmp.eq.s32.totalorder %s26, 1
      %p105 = por %p103, %p104
      %p107 = scmp.ne.s32.totalorder %s92, %s106
      %p108 = scmp.eq.s32.totalorder %s26, 0
      %p109 = por %p107, %p108
      %s111 = sadd.s32 %s110, 1
      %p114 = scmp.eq.s32.totalorder %s20, 1
      %p115 = scmp.ne.s32.totalorder %s110, %s112
      %p116 = scmp.eq.s32.totalorder %s20, 0
      %p117 = por %p115, %p116
      %p118 = scmp.ne.s32.totalorder %s110, %s112
      %p119 = scmp.eq.s32.totalorder %s25, 1
      %p120 = por %p118, %p119
      %p121 = scmp.ne.s32.totalorder %s112, %s113
      %p122 = scmp.eq.s32.totalorder %s25, 0
      %p123 = por %p121, %p122
      %p124 = scmp.ne.s32.totalorder %s112, %s113
      %p125 = scmp.eq.s32.totalorder %s26, 1
      %p126 = por %p124, %p125
      %p128 = scmp.ne.s32.totalorder %s113, %s127
      %p129 = scmp.eq.s32.totalorder %s26, 0
      %p130 = por %p128, %p129
      %s132 = sadd.s32 %s131, 1
      %p135 = scmp.eq.s32.totalorder %s20, 1
      %p136 = scmp.ne.s32.totalorder %s131, %s133
      %p137 = scmp.eq.s32.totalorder %s20, 0
      %p138 = por %p136, %p137
      %p139 = scmp.ne.s32.totalorder %s131, %s133
      %p140 = scmp.eq.s32.totalorder %s25, 1
      %p141 = por %p139, %p140
      %p142 = scmp.ne.s32.totalorder %s133, %s134
      %p143 = scmp.eq.s32.totalorder %s25, 0
      %p144 = por %p142, %p143
      %p145 = scmp.ne.s32.totalorder %s133, %s134
      %p146 = scmp.eq.s32.totalorder %s26, 1
      %p147 = por %p145, %p146
      %p149 = scmp.ne.s32.totalorder %s134, %s148
      %p150 = scmp.eq.s32.totalorder %s26, 0
      %p151 = por %p149, %p150
      %s153 = sadd.s32 %s152, 1
      %p156 = scmp.eq.s32.totalorder %s20, 1
      %p157 = scmp.ne.s32.totalorder %s152, %s154
      %p158 = scmp.eq.s32.totalorder %s20, 0
      %p159 = por %p157, %p158
      %p160 = scmp.ne.s32.totalorder %s152, %s154
      %p161 = scmp.eq.s32.totalorder %s25, 1
      %p162 = por %p160, %p161
      %p163 = scmp.ne.s32.totalorder %s154, %s155
      %p164 = scmp.eq.s32.totalorder %s25, 0
      %p165 = por %p163, %p164
      %p166 = scmp.ne.s32.totalorder %s154, %s155
      %p167 = scmp.eq.s32.totalorder %s26, 1
      %p168 = por %p166, %p167
      %p170 = scmp.ne.s32.totalorder %s155, %s169
      %p171 = scmp.eq.s32.totalorder %s26, 0
      %p172 = por %p170, %p171
      %s174 = sadd.s32 %s173, 1
      %p177 = scmp.eq.s32.totalorder %s20, 1
      %p178 = scmp.ne.s32.totalorder %s173, %s175
      %p179 = scmp.eq.s32.totalorder %s20, 0
      %p180 = por %p178, %p179
      %p181 = scmp.ne.s32.totalorder %s173, %s175
      %p182 = scmp.eq.s32.totalorder %s25, 1
      %p183 = por %p181, %p182
      %p184 = scmp.ne.s32.totalorder %s175, %s176
      %p185 = scmp.eq.s32.totalorder %s25, 0
      %p186 = por %p184, %p185
      %p187 = scmp.ne.s32.totalorder %s175, %s176
      %p188 = scmp.eq.s32.totalorder %s26, 1
      %p189 = por %p187, %p188
      %p191 = scmp.ne.s32.totalorder %s176, %s190
      %p192 = scmp.eq.s32.totalorder %s26, 0
      %p193 = por %p191, %p192
      %s195 = sadd.s32 %s194, 1
      %p198 = scmp.eq.s32.totalorder %s20, 1
      %p199 = scmp.ne.s32.totalorder %s194, %s196
      %p200 = scmp.eq.s32.totalorder %s20, 0
      %p201 = por %p199, %p200
      %p202 = scmp.ne.s32.totalorder %s194, %s196
      %p203 = scmp.eq.s32.totalorder %s25, 1
      %p204 = por %p202, %p203
      %p205 = scmp.ne.s32.totalorder %s196, %s197
      %p206 = scmp.eq.s32.totalorder %s25, 0
      %p207 = por %p205, %p206
      %p208 = scmp.ne.s32.totalorder %s196, %s197
      %p209 = scmp.eq.s32.totalorder %s26, 1
      %p210 = por %p208, %p209
      %p212 = scmp.ne.s32.totalorder %s197, %s211
      %p213 = scmp.eq.s32.totalorder %s26, 0
      %p214 = por %p212, %p213
      %s216 = sadd.s32 %s215, 1
      %p219 = scmp.eq.s32.totalorder %s20, 1
      %p220 = scmp.ne.s32.totalorder %s215, %s217
      %p221 = scmp.eq.s32.totalorder %s20, 0
      %p222 = por %p220, %p221
      %p223 = scmp.ne.s32.totalorder %s215, %s217
      %p224 = scmp.eq.s32.totalorder %s25, 1
      %p225 = por %p223, %p224
      %p226 = scmp.ne.s32.totalorder %s217, %s218
      %p227 = scmp.eq.s32.totalorder %s25, 0
      %p228 = por %p226, %p227
      %p229 = scmp.ne.s32.totalorder %s217, %s218
      %p230 = scmp.eq.s32.totalorder %s26, 1
      %p231 = por %p229, %p230
      %p233 = scmp.ne.s32.totalorder %s218, %s232
      %p234 = scmp.eq.s32.totalorder %s26, 0
      %p235 = por %p233, %p234
      %s236 = ssub.s32 %s27, %s39
      %s237 = ssub.s32 %s28, %s35
      %s238 = sor.u32 %s236, %s237
      %p239 = scmp.eq.s32.totalorder %s238, 0
      %s241 = sadd.s32 %s240, 1
      %s242 = scalar_select %p239, %s240, %s241
      %p245 = pneg %p239
      %p246 = scmp.eq.s32.totalorder %s20, 1
      %p247 = por %p245, %p246
      %p248 = scmp.ne.s32.totalorder %s240, %s243
      %p249 = scmp.eq.s32.totalorder %s20, 0
      %p250 = por %p248, %p249
      %p251 = scmp.ne.s32.totalorder %s240, %s243
      %p252 = scmp.eq.s32.totalorder %s25, 1
      %p253 = por %p251, %p252
      %p254 = scmp.ne.s32.totalorder %s243, %s244
      %p255 = scmp.eq.s32.totalorder %s25, 0
      %p256 = por %p254, %p255
      %p257 = scmp.ne.s32.totalorder %s243, %s244
      %p258 = scmp.eq.s32.totalorder %s26, 1
      %p259 = por %p257, %p258
      %p261 = scmp.ne.s32.totalorder %s244, %s260
      %p262 = scmp.eq.s32.totalorder %s26, 0
      %p263 = por %p261, %p262
      %p264 = scmp.le.s32.totalorder 1, %s20
      %p265 = scmp.lt.s32.totalorder %s20, 3
      %p266 = pnand %p264, %p265
      %p267 = pneg %p266
      // Predicated region
      $region9: #{tpu_custom_call.1} parent=5 // pred_check
        _
      $region10: #{tpu_custom_call.1} parent=5 // pred_check_branch
        %269 = sbr.rel (%p266) target = $region12
      $region11: #{tpu_custom_call.1} parent=5 // pred_region
        %s270 = ssub.s32 %s20, 1
        // Predicated region
        $region13: #{tpu_custom_call.1} parent=11 // pred_check
          %p271 = pneg %p81
        $region14: #{tpu_custom_call.1} parent=11 // pred_check_branch
          %273 = sbr.rel (%p271) target = $region16
        $region15: #{tpu_custom_call.1} parent=11 // pred_region
          _
        $region16: #{tpu_custom_call.1} parent=11 // pred_fallthru
          _
        // Predicated region
        $region17: #{tpu_custom_call.1} parent=11 // pred_check
          %p274 = pneg %p102
        $region18: #{tpu_custom_call.1} parent=11 // pred_check_branch
          %276 = sbr.rel (%p274) target = $region20
        $region19: #{tpu_custom_call.1} parent=11 // pred_region
          _
        $region20: #{tpu_custom_call.1} parent=11 // pred_fallthru
          _
        // Predicated region
        $region21: #{tpu_custom_call.1} parent=11 // pred_check
          %p277 = pneg %p123
        $region22: #{tpu_custom_call.1} parent=11 // pred_check_branch
          %279 = sbr.rel (%p277) target = $region24
        $region23: #{tpu_custom_call.1} parent=11 // pred_region
          _
        $region24: #{tpu_custom_call.1} parent=11 // pred_fallthru
          _
        // Predicated region
        $region25: #{tpu_custom_call.1} parent=11 // pred_check
          %p280 = pneg %p144
        $region26: #{tpu_custom_call.1} parent=11 // pred_check_branch
          %282 = sbr.rel (%p280) target = $region28
        $region27: #{tpu_custom_call.1} parent=11 // pred_region
          %s284 = ssub.s32 64, 64
          %285 = vsyncadd [#allocation5], %s284
          %s287 = sshll.u32 [#allocation4], 4
          %s288 = int_to_ptr.vmem [resolvable:$true] %s287
          %290 = dma.hbm_to_vmem [thread:$0]  %s4, 64, %s288, [#allocation5]
        $region28: #{tpu_custom_call.1} parent=11 // pred_fallthru
          _
        // Predicated region
        $region29: #{tpu_custom_call.1} parent=11 // pred_check
          %p291 = pneg %p165
        $region30: #{tpu_custom_call.1} parent=11 // pred_check_branch
          %293 = sbr.rel (%p291) target = $region32
        $region31: #{tpu_custom_call.1} parent=11 // pred_region
          %s295 = ssub.s32 256, 256
          %296 = vsyncadd [#allocation8], %s295
          %s297 = sshll.u32 [#allocation7], 4
          %s298 = int_to_ptr.vmem [resolvable:$true] %s297
          %303 = dma.hbm_to_vmem [thread:$0]  %s5, 256, %s298, [#allocation8], 64, 64, 4
        $region32: #{tpu_custom_call.1} parent=11 // pred_fallthru
          _
        // Predicated region
        $region33: #{tpu_custom_call.1} parent=11 // pred_check
          %p304 = pneg %p186
        $region34: #{tpu_custom_call.1} parent=11 // pred_check_branch
          %306 = sbr.rel (%p304) target = $region36
        $region35: #{tpu_custom_call.1} parent=11 // pred_region
          _
        $region36: #{tpu_custom_call.1} parent=11 // pred_fallthru
          _
        // Predicated region
        $region37: #{tpu_custom_call.1} parent=11 // pred_check
          %p307 = pneg %p207
        $region38: #{tpu_custom_call.1} parent=11 // pred_check_branch
          %309 = sbr.rel (%p307) target = $region40
        $region39: #{tpu_custom_call.1} parent=11 // pred_region
          _
        $region40: #{tpu_custom_call.1} parent=11 // pred_fallthru
          _
        // Predicated region
        $region41: #{tpu_custom_call.1} parent=11 // pred_check
          %p310 = pneg %p228
        $region42: #{tpu_custom_call.1} parent=11 // pred_check_branch
          %312 = sbr.rel (%p310) target = $region44
        $region43: #{tpu_custom_call.1} parent=11 // pred_region
          _
        $region44: #{tpu_custom_call.1} parent=11 // pred_fallthru
          _
      $region12: #{tpu_custom_call.1} parent=5 // pred_fallthru
        _
      %p313 = scmp.lt.s32.totalorder %s20, 2
      // Predicated region
      $region45: #{tpu_custom_call.1} parent=5 // pred_check
        %p314 = pneg %p313
      $region46: #{tpu_custom_call.1} parent=5 // pred_check_branch
        %316 = sbr.rel (%p314) target = $region48
      $region47: #{tpu_custom_call.1} parent=5 // pred_region
        // Predicated region
        $region49: #{tpu_custom_call.1} parent=47 // pred_check
          %p317 = pneg %p54
        $region50: #{tpu_custom_call.1} parent=47 // pred_check_branch
          %319 = sbr.rel (%p317) target = $region52
        $region51: #{tpu_custom_call.1} parent=47 // pred_region
          %p320 = scmp.lt.s32.totalorder %s27, 1
          %s321 = scalar_select %p320, %s27, 1
          %p322 = scmp.lt.s32.totalorder %s28, 0
          %s323 = scalar_select %p322, %s28, 0
          %s324 = sadd.s32 %s323, %s321
          %s325 = smul.addr %s324, 8
          %s326 = scalar_lea.vmem %s0, %s325
        $region52: #{tpu_custom_call.1} parent=47 // pred_fallthru
          _
      $region48: #{tpu_custom_call.1} parent=5 // pred_fallthru
        _
      %p327 = scmp.le.s32.totalorder 1, %s20
      %p328 = scmp.lt.s32.totalorder %s20, 3
      %p329 = pnand %p327, %p328
      %p330 = pneg %p329
      // Predicated region
      $region53: #{tpu_custom_call.1} parent=5 // pred_check
        _
      $region54: #{tpu_custom_call.1} parent=5 // pred_check_branch
        %332 = sbr.rel (%p329) target = $region56
      $region55: #{tpu_custom_call.1} parent=5 // pred_region
        %s333 = ssub.s32 %s20, 1
        // Predicated region
        $region57: #{tpu_custom_call.1} parent=55 // pred_check
          %p334 = pneg %p144
        $region58: #{tpu_custom_call.1} parent=55 // pred_check_branch
          %336 = sbr.rel (%p334) target = $region60
        $region59: #{tpu_custom_call.1} parent=55 // pred_region
          %337 = dma.done [#allocation5], 64
        $region60: #{tpu_custom_call.1} parent=55 // pred_fallthru
          _
        // Predicated region
        $region61: #{tpu_custom_call.1} parent=55 // pred_check
          %p338 = pneg %p165
        $region62: #{tpu_custom_call.1} parent=55 // pred_check_branch
          %340 = sbr.rel (%p338) target = $region64
        $region63: #{tpu_custom_call.1} parent=55 // pred_region
          %341 = dma.done [#allocation8], 256
        $region64: #{tpu_custom_call.1} parent=55 // pred_fallthru
          _
        %p342 = scmp.lt.s32.totalorder %s29, 1
        %s343 = scalar_select %p342, %s29, 1
        %p344 = scmp.lt.s32.totalorder %s30, 0
        %s345 = scalar_select %p344, %s30, 0
        %s346 = sadd.s32 %s345, %s343
        %s347 = smul.addr %s346, 8
        %s348 = scalar_lea.vmem %s0, %s347
        %p349 = pneg %p60
        %p350 = pneg %p57
        %p351 = pneg %p81
        %p352 = pneg %p78
        %p353 = pneg %p102
        %p354 = pneg %p99
        %p355 = pneg %p123
        %p356 = pneg %p120
        %p357 = pneg %p144
        %p358 = pneg %p141
        %p359 = pneg %p165
        %p360 = pneg %p162
        %p361 = pneg %p186
        %p362 = pneg %p183
        %p363 = pneg %p207
        %p364 = pneg %p204
        %p365 = pneg %p228
        %p366 = pneg %p225
        %p367 = pneg %p256
        %p368 = pneg %p253
        %s369 = sand.u32 %s243, 1
        %s370 = scalar_lea.sflag [#allocation6], %s369
        %s371 = sand.u32 %s243, 1
        %s372 = smul.addr %s371, 8
        %s373 = scalar_lea.vmem [#allocation9], %s372
        %p374 = scmp.lt.s32.totalorder %s29, 1
        %s375 = scalar_select %p374, %s29, 1
        %p376 = scmp.lt.s32.totalorder %s30, 0
        %s377 = scalar_select %p376, %s30, 0
        %s378 = sadd.s32 %s377, %s375
        %s379 = smul.addr %s378, 8
        %s380 = scalar_lea.vmem %s0, %s379
        %p382 = scmp.eq.s32.totalorder %s30, 0
        // Predicated region
        $region65: #{tpu_custom_call.1} parent=55 // pred_check
          %p383 = pneg %p382
        $region66: #{tpu_custom_call.1} parent=55 // pred_check_branch
          %385 = sbr.rel (%p383) target = $region68
        $region67: #{tpu_custom_call.1} parent=55 // pred_region
          %386 = vst [vmem:[#allocation2] sm:$0xff] 0.0
          %387 = vst [vmem:[#allocation2 + $0x8] sm:$0xff] 0.0
          %388 = vst [vmem:[#allocation2 + $0x10] sm:$0xff] 0.0
          %389 = vst [vmem:[#allocation2 + $0x18] sm:$0xff] 0.0
          %vm390 = vcmask 256000
          %391 = vst.msk [vmem:[#allocation3] sm:$0x7] %vm390, 0.0
        $region68: #{tpu_custom_call.1} parent=55 // pred_fallthru
          _
        %v392 = vld [vmem:[%s380] sm:$0xff]
        %v393 = vld [vmem:[%s1] sm:$0xf]
        %v394 = vld [vmem:[#allocation3] sm:$0x7]
        %v396 = vrot.slane %v392, 5
        %vm398 = vcmask 1042432
        %v399 = vsel %vm398, %v394, %v396
        %v400 = vld [vmem:[%s2] sm:$0x1]
        %v401 = vlaneseq
        %v402 = vshrl.u32 %v401, 7
        %v403 = vsub.s32 0, %v402
        %v404 = vrot.slane %v393, %v403
        %v405 = vmul.f32 %v399, %v404
        %v407 = vlaneseq
        %v408 = vshrl.u32 %v407, 7
        %v409 = vsub.s32 0, %v408
        %v410 = vrot.slane %v400, %v409
        %v412 = vadd.f32 %v410, %v405
        %v413 = vlaneseq
        %v414 = vshrl.u32 %v413, 7
        %v415 = vsub.s32 1, %v414
        %v416 = vrot.slane %v393, %v415
        %v417 = vmul.f32 %v399, %v416
        %v418 = vmul.f32 %v396, %v416
        %vm421 = vcmask 1046528
        %v422 = vrot.slane %v417, 1
        %v423 = vrot.slane %v418, 1
        %v424 = vsel %vm421, %v422, %v423
        %v426 = vadd.f32 %v412, %v424
        %v427 = vlaneseq
        %v428 = vshrl.u32 %v427, 7
        %v429 = vsub.s32 2, %v428
        %v430 = vrot.slane %v393, %v429
        %v431 = vmul.f32 %v399, %v430
        %v432 = vmul.f32 %v396, %v430
        %vm435 = vcmask 1045504
        %v436 = vrot.slane %v431, 2
        %v437 = vrot.slane %v432, 2
        %v438 = vsel %vm435, %v436, %v437
        %v440 = vadd.f32 %v426, %v438
        %v441 = vlaneseq
        %v442 = vshrl.u32 %v441, 7
        %v443 = vsub.s32 3, %v442
        %v444 = vrot.slane %v393, %v443
        %v445 = vmul.f32 %v399, %v444
        %v446 = vmul.f32 %v396, %v444
        %vm449 = vcmask 1044480
        %v450 = vrot.slane %v445, 3
        %v451 = vrot.slane %v446, 3
        %v452 = vsel %vm449, %v450, %v451
        %v454 = vadd.f32 %v440, %v452
        %v455 = vxor.u32 %v454, 2147483648
        %v456 = vmul.f32 %v455, 1.442695
        %v457 = vpow.pop %v456
        %v458 = vadd.f32 %v457, 1.0
        %v459 = vrcp.pop %v458
        %v460 = vmul.f32 1.0, %v459
        %v461 = vmul.f32 %v454, %v460
        %vm462 = vcmask 261125
        %463 = vst.msk [vmem:[#allocation3 - $0x5] sm:$0xe0] %vm462, %v392
        %v464 = vpack.c.bf16 %v461, %v461
        %v465 = vld [vmem:[%s3] sm:$0xff]
        %v466 = vld [vmem:[%s3 + $0x8] sm:$0xff]
        %v467 = vld [vmem:[%s3 + $0x10] sm:$0xff]
        %v468 = vld [vmem:[%s3 + $0x18] sm:$0xff]
        %v469 = vld [vmem:[%s3 + $0x20] sm:$0xff]
        %v470 = vld [vmem:[%s3 + $0x28] sm:$0xff]
        %v471 = vld [vmem:[%s3 + $0x30] sm:$0xff]
        %v472 = vld [vmem:[%s3 + $0x38] sm:$0xff]
        %v473 = vld [vmem:[#allocation4] sm:$0xf]
        %v475 = vlaneseq
        %v476 = vshrl.u32 %v475, 7
        %v477 = vsub.s32 0, %v476
        %v478 = vrot.slane %v473, %v477
        %v479 = vlaneseq
        %v480 = vshrl.u32 %v479, 7
        %v481 = vsub.s32 1, %v480
        %v482 = vrot.slane %v473, %v481
        %v483 = vlaneseq
        %v484 = vshrl.u32 %v483, 7
        %v485 = vsub.s32 2, %v484
        %v486 = vrot.slane %v473, %v485
        %v487 = vlaneseq
        %v488 = vshrl.u32 %v487, 7
        %v489 = vsub.s32 3, %v488
        %v490 = vrot.slane %v473, %v489
        %v503 = vunpack.c.l.b16 %v465
        %v504 = vunpack.c.h.b16 %v465
        %v505 = vunpack.c.l.b16 %v466
        %v506 = vunpack.c.h.b16 %v466
        %v507 = vunpack.c.l.b16 %v467
        %v508 = vunpack.c.h.b16 %v467
        %v509 = vunpack.c.l.b16 %v468
        %v510 = vunpack.c.h.b16 %v468
        %v511 = vunpack.c.l.b16 %v469
        %v512 = vunpack.c.h.b16 %v469
        %v513 = vunpack.c.l.b16 %v470
        %v514 = vunpack.c.h.b16 %v470
        %v515 = vunpack.c.l.b16 %v471
        %v516 = vunpack.c.h.b16 %v471
        %v517 = vunpack.c.l.b16 %v472
        %v518 = vunpack.c.h.b16 %v472
        %v519 = vpack.c.b16 %v507, %v503
        %v520 = vpack.c.b16 %v508, %v504
        %v521 = vpack.c.b16 %v509, %v505
        %v522 = vpack.c.b16 %v510, %v506
        %v523 = vpack.c.b16 %v515, %v511
        %v524 = vpack.c.b16 %v516, %v512
        %v525 = vpack.c.b16 %v517, %v513
        %v526 = vpack.c.b16 %v518, %v514
        %vm535 = vcmask 261120
        %v537 = vsel %vm535, %v464, 0
        %539 = vmatprep.subr.bf16.mxu0 %v520
        %540 = vmatpush1.bf16.msra.mxu0 %v519
        %541 = vmatprep.subr.bf16.mxu0 %v524
        %542 = vmatpush1.bf16.msra.mxu0 %v523
        %543 = vmatprep.subr.bf16.mxu0 0
        %544 = vmatpush1.bf16.msra.mxu0 0
        %545 = vmatprep.subr.bf16.mxu0 0
        %546 = vmatpush1.bf16.msra.mxu0 0
        %547 = vmatprep.subr.bf16.mxu0 0
        %548 = vmatpush1.bf16.msra.mxu0 0
        %549 = vmatprep.subr.bf16.mxu0 0
        %550 = vmatpush1.bf16.msra.mxu0 0
        %551 = vmatprep.subr.bf16.mxu0 0
        %552 = vmatpush1.bf16.msra.mxu0 0
        %553 = vmatprep.subr.bf16.mxu0 0
        %554 = vmatpush1.bf16.msra.mxu0 0
        %555 = vmatprep.subr.bf16.mxu0 0
        %556 = vmatpush1.bf16.msra.mxu0 0
        %557 = vmatprep.subr.bf16.mxu0 0
        %558 = vmatpush1.bf16.msra.mxu0 0
        %559 = vmatprep.subr.bf16.mxu0 0
        %560 = vmatpush1.bf16.msra.mxu0 0
        %561 = vmatprep.subr.bf16.mxu0 0
        %562 = vmatpush1.bf16.msra.mxu0 0
        %563 = vmatprep.subr.bf16.mxu0 0
        %564 = vmatpush1.bf16.msra.mxu0 0
        %565 = vmatprep.subr.bf16.mxu0 0
        %566 = vmatpush1.bf16.msra.mxu0 0
        %567 = vmatprep.subr.bf16.mxu0 0
        %568 = vmatpush1.bf16.msra.mxu0 0
        %569 = vmatprep.subr.bf16.mxu0 0
        %570 = vmatpush1.bf16.msra.mxu0 0
        %571 = vmatprep.mubr.bf16.mxu0 0
        %572 = vmatmul.mubr.bf16.gmra.mrb[0].mxu0 %v537
        %v573 = vpop.f32.mrb[0].mxu0
        %v574 = vadd.f32 %v478, %v573
        %v575 = vpop.f32.mrb[0].mxu0
        %v576 = vadd.f32 %v482, %v575
        %v577 = vpop.f32.mrb[0].mxu0
        %v578 = vpop.f32.mrb[0].mxu0
        %579 = vdwg.mxu0
        %580 = vmatprep.subr.bf16.mxu0 %v522
        %581 = vmatpush1.bf16.msra.mxu0 %v521
        %582 = vmatprep.subr.bf16.mxu0 %v526
        %583 = vmatpush1.bf16.msra.mxu0 %v525
        %584 = vmatprep.subr.bf16.mxu0 0
        %585 = vmatpush1.bf16.msra.mxu0 0
        %586 = vmatprep.subr.bf16.mxu0 0
        %587 = vmatpush1.bf16.msra.mxu0 0
        %588 = vmatprep.subr.bf16.mxu0 0
        %589 = vmatpush1.bf16.msra.mxu0 0
        %590 = vmatprep.subr.bf16.mxu0 0
        %591 = vmatpush1.bf16.msra.mxu0 0
        %592 = vmatprep.subr.bf16.mxu0 0
        %593 = vmatpush1.bf16.msra.mxu0 0
        %594 = vmatprep.subr.bf16.mxu0 0
        %595 = vmatpush1.bf16.msra.mxu0 0
        %596 = vmatprep.subr.bf16.mxu0 0
        %597 = vmatpush1.bf16.msra.mxu0 0
        %598 = vmatprep.subr.bf16.mxu0 0
        %599 = vmatpush1.bf16.msra.mxu0 0
        %600 = vmatprep.subr.bf16.mxu0 0
        %601 = vmatpush1.bf16.msra.mxu0 0
        %602 = vmatprep.subr.bf16.mxu0 0
        %603 = vmatpush1.bf16.msra.mxu0 0
        %604 = vmatprep.subr.bf16.mxu0 0
        %605 = vmatpush1.bf16.msra.mxu0 0
        %606 = vmatprep.subr.bf16.mxu0 0
        %607 = vmatpush1.bf16.msra.mxu0 0
        %608 = vmatprep.subr.bf16.mxu0 0
        %609 = vmatpush1.bf16.msra.mxu0 0
        %610 = vmatprep.subr.bf16.mxu0 0
        %611 = vmatpush1.bf16.msra.mxu0 0
        %612 = vmatprep.mubr.bf16.mxu0 0
        %613 = vmatmul.mubr.bf16.gmra.mrb[0].mxu0 %v537
        %v614 = vpop.f32.mrb[0].mxu0
        %v615 = vadd.f32 %v486, %v614
        %v616 = vpop.f32.mrb[0].mxu0
        %v617 = vadd.f32 %v490, %v616
        %v618 = vpop.f32.mrb[0].mxu0
        %v619 = vpop.f32.mrb[0].mxu0
        %620 = vdwg.mxu0
        %v621 = vmax.f32 %v615, 0.0
        %vm622 = vcmp.ne.f32.partialorder %v615, %v615
        %v623 = vadd.f32 %v615, 0.0
        %v624 = vand.u32 2147483647, %v615
        %v625 = vsub.f32 0.0, %v624
        %v626 = vmul.f32 %v625, 1.442695
        %v627 = vpow.pop %v626
        %v628 = vadd.f32 %v627, 1.0
        %v629 = vlog2.pop %v628
        %v630 = vmul.f32 %v629, 0.6931472
        %v631 = vmul.f32 -0.5, %v627
        %v632 = vadd.f32 %v631, 1.0
        %v633 = vmul.f32 %v632, %v627
        %v634 = vand.u32 2147483647, %v627
        %vm635 = vcmp.lt.f32.partialorder %v634, 0.0004427343
        %v636 = vsel %vm635, %v633, %v630
        %v637 = vadd.f32 %v621, %v636
        %v638 = vsel %vm622, %v623, %v637
        %v639 = vxor.u32 %v617, 2147483648
        %v640 = vmul.f32 %v639, 1.442695
        %v641 = vpow.pop %v640
        %v642 = vadd.f32 %v641, 1.0
        %v643 = vrcp.pop %v642
        %v644 = vmul.f32 1.0, %v643
        %v645 = vpack.c.bf16 %v392, %v392
        %v646 = vld [vmem:[#allocation7] sm:$0xf]
        %v647 = vld [vmem:[#allocation7 + $0x4] sm:$0xf]
        %v648 = vld [vmem:[#allocation7 + $0x8] sm:$0xf]
        %v649 = vld [vmem:[#allocation7 + $0xc] sm:$0xf]
        %v654 = vunpack.c.l.b16 %v646
        %v655 = vunpack.c.l.b16 %v647
        %v656 = vunpack.c.l.b16 %v648
        %v657 = vunpack.c.l.b16 %v649
        %v658 = vpack.c.b16 %v655, %v654
        %v659 = vpack.c.b16 %v657, %v656
        %v663 = vsel %vm535, %v645, 0
        %665 = vmatprep.subr.bf16.mxu0 0
        %666 = vmatpush1.bf16.msra.mxu0 %v658
        %667 = vmatprep.subr.bf16.mxu0 0
        %668 = vmatpush1.bf16.msra.mxu0 %v659
        %669 = vmatprep.subr.bf16.mxu0 0
        %670 = vmatpush1.bf16.msra.mxu0 0
        %671 = vmatprep.subr.bf16.mxu0 0
        %672 = vmatpush1.bf16.msra.mxu0 0
        %673 = vmatprep.subr.bf16.mxu0 0
        %674 = vmatpush1.bf16.msra.mxu0 0
        %675 = vmatprep.subr.bf16.mxu0 0
        %676 = vmatpush1.bf16.msra.mxu0 0
        %677 = vmatprep.subr.bf16.mxu0 0
        %678 = vmatpush1.bf16.msra.mxu0 0
        %679 = vmatprep.subr.bf16.mxu0 0
        %680 = vmatpush1.bf16.msra.mxu0 0
        %681 = vmatprep.subr.bf16.mxu0 0
        %682 = vmatpush1.bf16.msra.mxu0 0
        %683 = vmatprep.subr.bf16.mxu0 0
        %684 = vmatpush1.bf16.msra.mxu0 0
        %685 = vmatprep.subr.bf16.mxu0 0
        %686 = vmatpush1.bf16.msra.mxu0 0
        %687 = vmatprep.subr.bf16.mxu0 0
        %688 = vmatpush1.bf16.msra.mxu0 0
        %689 = vmatprep.subr.bf16.mxu0 0
        %690 = vmatpush1.bf16.msra.mxu0 0
        %691 = vmatprep.subr.bf16.mxu0 0
        %692 = vmatpush1.bf16.msra.mxu0 0
        %693 = vmatprep.subr.bf16.mxu0 0
        %694 = vmatpush1.bf16.msra.mxu0 0
        %695 = vmatprep.subr.bf16.mxu0 0
        %696 = vmatpush1.bf16.msra.mxu0 0
        %697 = vmatprep.mubr.bf16.mxu0 0
        %698 = vmatmul.mubr.bf16.gmra.mrb[0].mxu0 %v663
        %v699 = vpop.f32.mrb[0].mxu0
        %v700 = vadd.f32 0.0, %v699
        %v701 = vpop.f32.mrb[0].mxu0
        %v702 = vpop.f32.mrb[0].mxu0
        %v703 = vpop.f32.mrb[0].mxu0
        %704 = vdwg.mxu0
        %v705 = vpack.c.bf16 %v700, %v700
        %v706 = vld [vmem:[%s6] sm:$0xf]
        %v707 = vld [vmem:[%s6 + $0x4] sm:$0xf]
        %v708 = vld [vmem:[%s6 + $0x8] sm:$0xf]
        %v709 = vld [vmem:[%s6 + $0xc] sm:$0xf]
        %v710 = vld [vmem:[%s6 + $0x10] sm:$0xf]
        %v711 = vld [vmem:[%s6 + $0x14] sm:$0xf]
        %v712 = vld [vmem:[%s6 + $0x18] sm:$0xf]
        %v713 = vld [vmem:[%s6 + $0x1c] sm:$0xf]
        %v714 = vld [vmem:[%s6 + $0x20] sm:$0xf]
        %v715 = vld [vmem:[%s6 + $0x24] sm:$0xf]
        %v716 = vld [vmem:[%s6 + $0x28] sm:$0xf]
        %v717 = vld [vmem:[%s6 + $0x2c] sm:$0xf]
        %v718 = vld [vmem:[%s6 + $0x30] sm:$0xf]
        %v719 = vld [vmem:[%s6 + $0x34] sm:$0xf]
        %v720 = vld [vmem:[%s6 + $0x38] sm:$0xf]
        %v721 = vld [vmem:[%s6 + $0x3c] sm:$0xf]
        %v722 = vld [vmem:[%s7] sm:$0x1]
        %v724 = vlaneseq
        %v725 = vshrl.u32 %v724, 7
        %v726 = vsub.s32 0, %v725
        %v727 = vrot.slane %v722, %v726
        %v745 = vunpack.c.l.b16 %v706
        %v746 = vunpack.c.l.b16 %v707
        %v747 = vunpack.c.l.b16 %v708
        %v748 = vunpack.c.l.b16 %v709
        %v749 = vunpack.c.l.b16 %v710
        %v750 = vunpack.c.l.b16 %v711
        %v751 = vunpack.c.l.b16 %v712
        %v752 = vunpack.c.l.b16 %v713
        %v753 = vunpack.c.l.b16 %v714
        %v754 = vunpack.c.l.b16 %v715
        %v755 = vunpack.c.l.b16 %v716
        %v756 = vunpack.c.l.b16 %v717
        %v757 = vunpack.c.l.b16 %v718
        %v758 = vunpack.c.l.b16 %v719
        %v759 = vunpack.c.l.b16 %v720
        %v760 = vunpack.c.l.b16 %v721
        %v761 = vpack.c.b16 %v746, %v745
        %v762 = vpack.c.b16 %v748, %v747
        %v763 = vpack.c.b16 %v750, %v749
        %v764 = vpack.c.b16 %v752, %v751
        %v765 = vpack.c.b16 %v754, %v753
        %v766 = vpack.c.b16 %v756, %v755
        %v767 = vpack.c.b16 %v758, %v757
        %v768 = vpack.c.b16 %v760, %v759
        %777 = vmatprep.subr.bf16.mxu0 0
        %778 = vmatpush1.bf16.msra.mxu0 %v761
        %779 = vmatprep.subr.bf16.mxu0 0
        %780 = vmatpush1.bf16.msra.mxu0 %v762
        %781 = vmatprep.subr.bf16.mxu0 0
        %782 = vmatpush1.bf16.msra.mxu0 %v763
        %783 = vmatprep.subr.bf16.mxu0 0
        %784 = vmatpush1.bf16.msra.mxu0 %v764
        %785 = vmatprep.subr.bf16.mxu0 0
        %786 = vmatpush1.bf16.msra.mxu0 %v765
        %787 = vmatprep.subr.bf16.mxu0 0
        %788 = vmatpush1.bf16.msra.mxu0 %v766
        %789 = vmatprep.subr.bf16.mxu0 0
        %790 = vmatpush1.bf16.msra.mxu0 %v767
        %791 = vmatprep.subr.bf16.mxu0 0
        %792 = vmatpush1.bf16.msra.mxu0 %v768
        %793 = vmatprep.subr.bf16.mxu0 0
        %794 = vmatpush1.bf16.msra.mxu0 0
        %795 = vmatprep.subr.bf16.mxu0 0
        %796 = vmatpush1.bf16.msra.mxu0 0
        %797 = vmatprep.subr.bf16.mxu0 0
        %798 = vmatpush1.bf16.msra.mxu0 0
        %799 = vmatprep.subr.bf16.mxu0 0
        %800 = vmatpush1.bf16.msra.mxu0 0
        %801 = vmatprep.subr.bf16.mxu0 0
        %802 = vmatpush1.bf16.msra.mxu0 0
        %803 = vmatprep.subr.bf16.mxu0 0
        %804 = vmatpush1.bf16.msra.mxu0 0
        %805 = vmatprep.subr.bf16.mxu0 0
        %806 = vmatpush1.bf16.msra.mxu0 0
        %807 = vmatprep.subr.bf16.mxu0 0
        %808 = vmatpush1.bf16.msra.mxu0 0
        %809 = vmatprep.mubr.bf16.mxu0 0
        %810 = vmatmul.mubr.bf16.gmra.mrb[0].mxu0 %v705
        %v811 = vpop.f32.mrb[0].mxu0
        %v812 = vadd.f32 %v727, %v811
        %v813 = vpop.f32.mrb[0].mxu0
        %v814 = vpop.f32.mrb[0].mxu0
        %v815 = vpop.f32.mrb[0].mxu0
        %816 = vdwg.mxu0
        %v817 = vxor.u32 %v812, 2147483648
        %v818 = vmul.f32 %v817, 1.442695
        %v819 = vpow.pop %v818
        %v820 = vadd.f32 %v819, 1.0
        %v821 = vrcp.pop %v820
        %v822 = vmul.f32 1.0, %v821
        %v823 = vmul.f32 %v822, %v392
        %v824 = vmax.f32 %v638, 1e-30
        %v825 = vlog2.pop %v824
        %v826 = vmul.f32 %v825, 0.6931472
        %v827 = vmul.f32 %v644, %v826
        %v828 = vmul.f32 %v827, 1.442695
        %v829 = vpow.pop %v828
        %v830 = vsub.f32 0.0, %v638
        %v831 = vmul.f32 %v830, %v644
        %v832 = vmul.f32 %v576, %v576
        %833 = vadd.xlane.f32.xlu0 %v832
        %v834 = vpop.xlane.xlu0 %833
        %v835 = vmax.f32 %v834, 1e-24
        %v836 = vrsqrt.pop %v835
        %v837 = vmul.f32 %v576, %v836
        %v838 = vmul.f32 %v574, 0.125
        %v839 = vmul.f32 %v837, %v829
        %v840 = vlaneseq
        %v841 = vshrl.u32 %v840, 7
        %v842 = vlaneseq
        %v843 = vand.u32 %v842, 127
        %vm844 = vcmp.ge.s32.totalorder %v841, %v843
        %v845 = vsel %vm844, 1, 0
        %v846 = vcvt.s32.f32 %v845
        %vm847 = vcmask 64512
        %v849 = vsel %vm847, %v846, 0
        %851 = vmatprep.subr.mxu0 0.0
        %852 = vmatpush1.msra.mxu0 %v831
        %853 = vmatprep.subr.mxu0 0.0
        %854 = vmatpush1.msra.mxu0 0.0
        %855 = vmatprep.subr.mxu0 0.0
        %856 = vmatpush1.msra.mxu0 0.0
        %857 = vmatprep.subr.mxu0 0.0
        %858 = vmatpush1.msra.mxu0 0.0
        %859 = vmatprep.subr.mxu0 0.0
        %860 = vmatpush1.msra.mxu0 0.0
        %861 = vmatprep.subr.mxu0 0.0
        %862 = vmatpush1.msra.mxu0 0.0
        %863 = vmatprep.subr.mxu0 0.0
        %864 = vmatpush1.msra.mxu0 0.0
        %865 = vmatprep.subr.mxu0 0.0
        %866 = vmatpush1.msra.mxu0 0.0
        %867 = vmatprep.subr.mxu0 0.0
        %868 = vmatpush1.msra.mxu0 0.0
        %869 = vmatprep.subr.mxu0 0.0
        %870 = vmatpush1.msra.mxu0 0.0
        %871 = vmatprep.subr.mxu0 0.0
        %872 = vmatpush1.msra.mxu0 0.0
        %873 = vmatprep.subr.mxu0 0.0
        %874 = vmatpush1.msra.mxu0 0.0
        %875 = vmatprep.subr.mxu0 0.0
        %876 = vmatpush1.msra.mxu0 0.0
        %877 = vmatprep.subr.mxu0 0.0
        %878 = vmatpush1.msra.mxu0 0.0
        %879 = vmatprep.subr.mxu0 0.0
        %880 = vmatpush1.msra.mxu0 0.0
        %881 = vmatprep.subr.mxu0 0.0
        %882 = vmatpush1.msra.mxu0 0.0
        %883 = vmatprep.subr.mxu0 0.0
        %884 = vmatpush1.msra.mxu0 0.0
        %885 = vmatprep.subr.mxu0 0.0
        %886 = vmatpush1.msra.mxu0 0.0
        %887 = vmatprep.subr.mxu0 0.0
        %888 = vmatpush1.msra.mxu0 0.0
        %889 = vmatprep.subr.mxu0 0.0
        %890 = vmatpush1.msra.mxu0 0.0
        %891 = vmatprep.subr.mxu0 0.0
        %892 = vmatpush1.msra.mxu0 0.0
        %893 = vmatprep.subr.mxu0 0.0
        %894 = vmatpush1.msra.mxu0 0.0
        %895 = vmatprep.subr.mxu0 0.0
        %896 = vmatpush1.msra.mxu0 0.0
        %897 = vmatprep.subr.mxu0 0.0
        %898 = vmatpush1.msra.mxu0 0.0
        %899 = vmatprep.subr.mxu0 0.0
        %900 = vmatpush1.msra.mxu0 0.0
        %901 = vmatprep.subr.mxu0 0.0
        %902 = vmatpush1.msra.mxu0 0.0
        %903 = vmatprep.subr.mxu0 0.0
        %904 = vmatpush1.msra.mxu0 0.0
        %905 = vmatprep.subr.mxu0 0.0
        %906 = vmatpush1.msra.mxu0 0.0
        %907 = vmatprep.subr.mxu0 0.0
        %908 = vmatpush1.msra.mxu0 0.0
        %909 = vmatprep.subr.mxu0 0.0
        %910 = vmatpush1.msra.mxu0 0.0
        %911 = vmatprep.subr.mxu0 0.0
        %912 = vmatpush1.msra.mxu0 0.0
        %913 = vmatprep.subr.mxu0 0.0
        %914 = vmatpush1.msra.mxu0 0.0
        %915 = vmatprep.mubr.f32.mxu0 0.0
        %916 = vmatmul.mubr.f32.gmra.mrb[0].mxu0 %v849
        %v917 = vpop.f32.mrb[0].mxu0
        %v918 = vadd.f32 0.0, %v917
        %v919 = vpop.f32.mrb[0].mxu0
        %920 = vdwg.mxu0
        %v921 = vld [vmem:[%s8] sm:$0x1]
        %v922 = vld [vmem:[#allocation2] sm:$0xff]
        %v923 = vld [vmem:[#allocation2 + $0x8] sm:$0xff]
        %v924 = vld [vmem:[#allocation2 + $0x10] sm:$0xff]
        %v925 = vld [vmem:[#allocation2 + $0x18] sm:$0xff]
        %v926 = vmax.f32 %v918, -40.0
        %v927 = vmul.f32 %v926, 1.442695
        %v928 = vpow.pop %v927
        %v929 = vmul.f32 %v838, %v928
        %v930 = vpack.c.bf16 %v929, %v929
        %v931 = vsub.f32 0.0, %v926
        %v932 = vmul.f32 %v931, 1.442695
        %v933 = vpow.pop %v932
        %v934 = vmul.f32 %v839, %v933
        %v935 = vpack.c.bf16 %v934, %v934
        %v936 = vpack.c.bf16 %v823, %v823
        %v937 = vpack.c.bf16 %v923, %v922
        %v938 = vpack.c.bf16 %v925, %v924
        %939 = vmatprep.subr.bf16.mxu0 0
        %940 = vmatpush1.bf16.xpose.msra.mxu0 %v935
        %941 = vmatprep.subr.bf16.mxu0 0
        %942 = vmatpush1.bf16.xpose.msra.mxu0 0
        %943 = vmatprep.subr.bf16.mxu0 0
        %944 = vmatpush1.bf16.xpose.msra.mxu0 0
        %945 = vmatprep.subr.bf16.mxu0 0
        %946 = vmatpush1.bf16.xpose.msra.mxu0 0
        %947 = vmatprep.subr.bf16.mxu0 0
        %948 = vmatpush1.bf16.xpose.msra.mxu0 0
        %949 = vmatprep.subr.bf16.mxu0 0
        %950 = vmatpush1.bf16.xpose.msra.mxu0 0
        %951 = vmatprep.subr.bf16.mxu0 0
        %952 = vmatpush1.bf16.xpose.msra.mxu0 0
        %953 = vmatprep.subr.bf16.mxu0 0
        %954 = vmatpush1.bf16.xpose.msra.mxu0 0
        %955 = vmatprep.subr.bf16.mxu0 0
        %956 = vmatpush1.bf16.xpose.msra.mxu0 0
        %957 = vmatprep.subr.bf16.mxu0 0
        %958 = vmatpush1.bf16.xpose.msra.mxu0 0
        %959 = vmatprep.subr.bf16.mxu0 0
        %960 = vmatpush1.bf16.xpose.msra.mxu0 0
        %961 = vmatprep.subr.bf16.mxu0 0
        %962 = vmatpush1.bf16.xpose.msra.mxu0 0
        %963 = vmatprep.subr.bf16.mxu0 0
        %964 = vmatpush1.bf16.xpose.msra.mxu0 0
        %965 = vmatprep.subr.bf16.mxu0 0
        %966 = vmatpush1.bf16.xpose.msra.mxu0 0
        %967 = vmatprep.subr.bf16.mxu0 0
        %968 = vmatpush1.bf16.xpose.msra.mxu0 0
        %969 = vmatprep.subr.bf16.mxu0 0
        %970 = vmatpush1.bf16.xpose.msra.mxu0 0
        %971 = vmatprep.mubr.bf16.mxu0 0
        %972 = vmatmul.mubr.bf16.gmra.mrb[0].mxu0 %v930
        %v973 = vpop.f32.mrb[0].mxu0
        %v974 = vadd.f32 0.0, %v973
        %v975 = vpop.f32.mrb[0].mxu0
        %v976 = vpop.f32.mrb[0].mxu0
        %v977 = vpop.f32.mrb[0].mxu0
        %978 = vdwg.mxu0
        %v979 = vsel %vm844, %v974, 0.0
        %v980 = vpack.c.bf16 %v979, %v979
        %v982 = vsel %vm847, %v980, 0
        %vm984 = vcmask 1043456
        %v986 = vsel %vm984, %v936, 0
        %988 = vmatprep.subr.bf16.mxu0 0
        %989 = vmatpush1.bf16.msra.mxu0 %v986
        %990 = vmatprep.subr.bf16.mxu0 0
        %991 = vmatpush1.bf16.msra.mxu0 0
        %992 = vmatprep.subr.bf16.mxu0 0
        %993 = vmatpush1.bf16.msra.mxu0 0
        %994 = vmatprep.subr.bf16.mxu0 0
        %995 = vmatpush1.bf16.msra.mxu0 0
        %996 = vmatprep.subr.bf16.mxu0 0
        %997 = vmatpush1.bf16.msra.mxu0 0
        %998 = vmatprep.subr.bf16.mxu0 0
        %999 = vmatpush1.bf16.msra.mxu0 0
        %1000 = vmatprep.subr.bf16.mxu0 0
        %1001 = vmatpush1.bf16.msra.mxu0 0
        %1002 = vmatprep.subr.bf16.mxu0 0
        %1003 = vmatpush1.bf16.msra.mxu0 0
        %1004 = vmatprep.subr.bf16.mxu0 0
        %1005 = vmatpush1.bf16.msra.mxu0 0
        %1006 = vmatprep.subr.bf16.mxu0 0
        %1007 = vmatpush1.bf16.msra.mxu0 0
        %1008 = vmatprep.subr.bf16.mxu0 0
        %1009 = vmatpush1.bf16.msra.mxu0 0
        %1010 = vmatprep.subr.bf16.mxu0 0
        %1011 = vmatpush1.bf16.msra.mxu0 0
        %1012 = vmatprep.subr.bf16.mxu0 0
        %1013 = vmatpush1.bf16.msra.mxu0 0
        %1014 = vmatprep.subr.bf16.mxu0 0
        %1015 = vmatpush1.bf16.msra.mxu0 0
        %1016 = vmatprep.subr.bf16.mxu0 0
        %1017 = vmatpush1.bf16.msra.mxu0 0
        %1018 = vmatprep.subr.bf16.mxu0 0
        %1019 = vmatpush1.bf16.msra.mxu0 0
        %1020 = vmatprep.mubr.bf16.mxu0 0
        %1021 = vmatmul.mubr.bf16.gmra.mrb[0].mxu0 %v982
        %v1022 = vpop.f32.mrb[0].mxu0
        %v1023 = vadd.f32 0.0, %v1022
        %v1024 = vpop.f32.mrb[0].mxu0
        %v1025 = vpop.f32.mrb[0].mxu0
        %v1026 = vpop.f32.mrb[0].mxu0
        %1027 = vdwg.mxu0
        %1028 = vmatprep.subr.bf16.mxu0 0
        %1029 = vmatpush1.bf16.xpose.msra.mxu0 %v937
        %1030 = vmatprep.subr.bf16.mxu0 0
        %1031 = vmatpush1.bf16.xpose.msra.mxu0 %v938
        %1032 = vmatprep.subr.bf16.mxu0 0
        %1033 = vmatpush1.bf16.xpose.msra.mxu0 0
        %1034 = vmatprep.subr.bf16.mxu0 0
        %1035 = vmatpush1.bf16.xpose.msra.mxu0 0
        %1036 = vmatprep.subr.bf16.mxu0 0
        %1037 = vmatpush1.bf16.xpose.msra.mxu0 0
        %1038 = vmatprep.subr.bf16.mxu0 0
        %1039 = vmatpush1.bf16.xpose.msra.mxu0 0
        %1040 = vmatprep.subr.bf16.mxu0 0
        %1041 = vmatpush1.bf16.xpose.msra.mxu0 0
        %1042 = vmatprep.subr.bf16.mxu0 0
        %1043 = vmatpush1.bf16.xpose.msra.mxu0 0
        %1044 = vmatprep.subr.bf16.mxu0 0
        %1045 = vmatpush1.bf16.xpose.msra.mxu0 0
        %1046 = vmatprep.subr.bf16.mxu0 0
        %1047 = vmatpush1.bf16.xpose.msra.mxu0 0
        %1048 = vmatprep.subr.bf16.mxu0 0
        %1049 = vmatpush1.bf16.xpose.msra.mxu0 0
        %1050 = vmatprep.subr.bf16.mxu0 0
        %1051 = vmatpush1.bf16.xpose.msra.mxu0 0
        %1052 = vmatprep.subr.bf16.mxu0 0
        %1053 = vmatpush1.bf16.xpose.msra.mxu0 0
        %1054 = vmatprep.subr.bf16.mxu0 0
        %1055 = vmatpush1.bf16.xpose.msra.mxu0 0
        %1056 = vmatprep.subr.bf16.mxu0 0
        %1057 = vmatpush1.bf16.xpose.msra.mxu0 0
        %1058 = vmatprep.subr.bf16.mxu0 0
        %1059 = vmatpush1.bf16.xpose.msra.mxu0 0
        %1060 = vmatprep.mubr.bf16.mxu0 0
        %1061 = vmatmul.mubr.bf16.gmra.mrb[0].mxu0 %v930
        %v1062 = vpop.f32.mrb[0].mxu0
        %v1063 = vadd.f32 %v1023, %v1062
        %v1064 = vpop.f32.mrb[0].mxu0
        %v1065 = vpop.f32.mrb[0].mxu0
        %v1066 = vpop.f32.mrb[0].mxu0
        %1067 = vdwg.mxu0
        %v1068 = vlaneseq
        %v1069 = vshrl.u32 %v1068, 7
        %v1070 = vsub.s32 7, %v1069
        %v1071 = vrot.slane %v918, %v1070
        %v1072 = vsub.f32 %v1071, %v918
        %v1073 = vmul.f32 %v1072, 1.442695
        %v1074 = vpow.pop %v1073
        %v1075 = vmul.f32 %v839, %v1074
        %v1076 = vpack.c.bf16 %v1075, %v1075
        %v1077 = vmul.f32 %v918, 1.442695
        %v1078 = vpow.pop %v1077
        %v1079 = vlaneseq
        %v1080 = vshrl.u32 %v1079, 7
        %v1081 = vsub.s32 7, %v1080
        %v1082 = vrot.slane %v1078, %v1081
        %v1083 = vmul.f32 %v922, %v1082
        %v1084 = vmul.f32 %v923, %v1082
        %v1085 = vmul.f32 %v924, %v1082
        %v1086 = vmul.f32 %v925, %v1082
        %1087 = vxpose.xlu0.c.b16.start [1/8] %v936, 128
        %1088 = vxpose.xlu0.c.b16.cont [2/8] 0, 128
        %1089 = vxpose.xlu0.c.b16.cont [3/8] 0, 128
        %1090 = vxpose.xlu0.c.b16.cont [4/8] 0, 128
        %1091 = vxpose.xlu0.c.b16.cont [5/8] 0, 128
        %1092 = vxpose.xlu0.c.b16.cont [6/8] 0, 128
        %1093 = vxpose.xlu0.c.b16.cont [7/8] 0, 128
        %1094 = vxpose.xlu0.c.b16.end [8/8] 0, 128
        %v1095 = vpop.trf.xlu0
        %v1096 = vpop.trf.xlu0
        %v1097 = vpop.trf.xlu0
        %v1098 = vpop.trf.xlu0
        %v1099 = vpop.trf.xlu0
        %v1100 = vpop.trf.xlu0
        %v1101 = vpop.trf.xlu0
        %v1102 = vpop.trf.xlu0
        %v1104 = vsel %vm847, %v1095, 0
        %v1107 = vsel %vm847, %v1096, 0
        %v1110 = vsel %vm984, %v1076, 0
        %1112 = vmatprep.subr.bf16.mxu0 0
        %1113 = vmatpush1.bf16.msra.mxu0 %v1110
        %1114 = vmatprep.subr.bf16.mxu0 0
        %1115 = vmatpush1.bf16.msra.mxu0 0
        %1116 = vmatprep.subr.bf16.mxu0 0
        %1117 = vmatpush1.bf16.msra.mxu0 0
        %1118 = vmatprep.subr.bf16.mxu0 0
        %1119 = vmatpush1.bf16.msra.mxu0 0
        %1120 = vmatprep.subr.bf16.mxu0 0
        %1121 = vmatpush1.bf16.msra.mxu0 0
        %1122 = vmatprep.subr.bf16.mxu0 0
        %1123 = vmatpush1.bf16.msra.mxu0 0
        %1124 = vmatprep.subr.bf16.mxu0 0
        %1125 = vmatpush1.bf16.msra.mxu0 0
        %1126 = vmatprep.subr.bf16.mxu0 0
        %1127 = vmatpush1.bf16.msra.mxu0 0
        %1128 = vmatprep.subr.bf16.mxu0 0
        %1129 = vmatpush1.bf16.msra.mxu0 0
        %1130 = vmatprep.subr.bf16.mxu0 0
        %1131 = vmatpush1.bf16.msra.mxu0 0
        %1132 = vmatprep.subr.bf16.mxu0 0
        %1133 = vmatpush1.bf16.msra.mxu0 0
        %1134 = vmatprep.subr.bf16.mxu0 0
        %1135 = vmatpush1.bf16.msra.mxu0 0
        %1136 = vmatprep.subr.bf16.mxu0 0
        %1137 = vmatpush1.bf16.msra.mxu0 0
        %1138 = vmatprep.subr.bf16.mxu0 0
        %1139 = vmatpush1.bf16.msra.mxu0 0
        %1140 = vmatprep.subr.bf16.mxu0 0
        %1141 = vmatpush1.bf16.msra.mxu0 0
        %1142 = vmatprep.subr.bf16.mxu0 0
        %1143 = vmatpush1.bf16.msra.mxu0 0
        %1144 = vmatprep.mubr.bf16.mxu0 0
        %1145 = vmatmul.mubr.bf16.gmra.mrb[0].mxu0 %v1104
        %v1146 = vpop.f32.mrb[0].mxu0
        %v1147 = vadd.f32 0.0, %v1146
        %v1148 = vpop.f32.mrb[0].mxu0
        %v1149 = vpop.f32.mrb[0].mxu0
        %v1150 = vadd.f32 0.0, %v1149
        %v1151 = vpop.f32.mrb[0].mxu0
        %1152 = vmatprep.mubr.bf16.mxu0 0
        %1153 = vmatmul.mubr.bf16.gmra.mrb[0].mxu0 %v1107
        %v1154 = vpop.f32.mrb[0].mxu0
        %v1155 = vadd.f32 0.0, %v1154
        %v1156 = vpop.f32.mrb[0].mxu0
        %v1157 = vpop.f32.mrb[0].mxu0
        %v1158 = vadd.f32 0.0, %v1157
        %v1159 = vpop.f32.mrb[0].mxu0
        %1160 = vdwg.mxu0
        %v1161 = vadd.f32 %v1083, %v1147
        %v1162 = vadd.f32 %v1084, %v1150
        %v1163 = vadd.f32 %v1085, %v1155
        %v1164 = vadd.f32 %v1086, %v1158
        %v1166 = vlaneseq
        %v1167 = vshrl.u32 %v1166, 7
        %v1168 = vsub.s32 0, %v1167
        %v1169 = vrot.slane %v921, %v1168
        %v1171 = vmul.f32 %v461, %v1169
        %v1172 = vadd.f32 %v1063, %v1171
        %1173 = vst.msk [vmem:[%s373] sm:$0xff] %vm535, %v1172
        %1174 = vst [vmem:[#allocation2] sm:$0xff] %v1161
        %1175 = vst [vmem:[#allocation2 + $0x8] sm:$0xff] %v1162
        %1176 = vst [vmem:[#allocation2 + $0x10] sm:$0xff] %v1163
        %1177 = vst [vmem:[#allocation2 + $0x18] sm:$0xff] %v1164
        %s1178 = sand.u32 %s243, 1
        %s1179 = scalar_lea.sflag [#allocation6], %s1178
        %s1180 = sand.u32 %s243, 1
        %s1181 = smul.addr %s1180, 8
        %s1182 = scalar_lea.vmem [#allocation9], %s1181
        // Predicated region
        $region69: #{tpu_custom_call.1} parent=55 // pred_check
          %p1183 = pneg %p253
        $region70: #{tpu_custom_call.1} parent=55 // pred_check_branch
          %1185 = sbr.rel (%p1183) target = $region72
        $region71: #{tpu_custom_call.1} parent=55 // pred_region
          %s1187 = ssub.s32 128, 128
          %1188 = vsyncadd %s1179, %s1187
          %s1189 = sadd.s32 %s30, %s29
          %s1190 = smul.addr %s1189, 128
          %s1191 = scalar_lea.hbm %s9, %s1190
          %s1193 = sshll.u32 %s1182, 4
          %s1194 = int_to_ptr.vmem [resolvable:$true] %s1193
          %1196 = dma.vmem_to_hbm [thread:$0]  %s1194, 128, %s1191, %s1179
        $region72: #{tpu_custom_call.1} parent=55 // pred_fallthru
          _
      $region56: #{tpu_custom_call.1} parent=5 // pred_fallthru
        _
      %p1197 = scmp.le.s32.totalorder 2, %s20
      // Predicated region
      $region73: #{tpu_custom_call.1} parent=5 // pred_check
        %p1198 = pneg %p1197
      $region74: #{tpu_custom_call.1} parent=5 // pred_check_branch
        %1200 = sbr.rel (%p1198) target = $region76
      $region75: #{tpu_custom_call.1} parent=5 // pred_region
        %s1201 = ssub.s32 %s20, 2
        // Predicated region
        $region77: #{tpu_custom_call.1} parent=75 // pred_check
          %p1202 = pneg %p259
        $region78: #{tpu_custom_call.1} parent=75 // pred_check_branch
          %1204 = sbr.rel (%p1202) target = $region80
        $region79: #{tpu_custom_call.1} parent=75 // pred_region
          %s1205 = sand.u32 %s244, 1
          %s1206 = scalar_lea.sflag [#allocation6], %s1205
          %s1207 = sand.u32 %s244, 1
          %s1208 = smul.addr %s1207, 8
          %s1209 = scalar_lea.vmem [#allocation9], %s1208
          %1210 = dma.done %s1206, 128
        $region80: #{tpu_custom_call.1} parent=75 // pred_fallthru
          _
      $region76: #{tpu_custom_call.1} parent=5 // pred_fallthru
        _
    $region6: #{tpu_custom_call.1} parent=1 // loop_footer
      %s24 = sadd.s32 1, %s20
    $region7: #{tpu_custom_call.1} parent=1 // loop_footer_branch
      %19 = sbr.rel target = $region3
    $region8: #{tpu_custom_call.1} parent=1 // loop_exit
      _
    %1211 = vsyncpa [#allocation5], 1
    %s1212 = scalar_lea.sflag [#allocation5], 1
    %1213 = vsyncpa %s1212, 1
    %1214 = vsyncpa [#allocation8], 1
    %1215 = vsyncpa [#allocation6], 1
    %s1216 = scalar_lea.sflag [#allocation6], 1
    %1217 = vsyncpa %s1216, 1

</llo_original>
